<compile_context>
chip_gen: v7x
topology: tpu7x:2x2x1
jax: 0.10.0
libtpu: 0.0.40
codegen_flags: <defaults>
</compile_context>

<pallas_src>
import functools

import jax
import jax.numpy as jnp
from jax.experimental import pallas as pl
from jax.experimental.pallas import tpu as pltpu

NEG_SLOPE = 0.2               # LeakyReLU(0.2)
BN_EPS = 1e-5                 # torch.nn.BatchNorm2d default eps


def _round_up(x, m):
    return (x + m - 1) // m * m


# ------------------------- VMEM budget / tile choice -------------------------

_VMEM_CACHE = None


def _vmem_params():
    """(vmem_limit_bytes, tile working-set budget) derived per chip generation."""
    global _VMEM_CACHE
    if _VMEM_CACHE is None:
        try:
            cap = int(getattr(pltpu.get_tpu_info(), "vmem_capacity_bytes", 0))
        except Exception:
            cap = 0
        if cap <= 0:
            cap = 64 * 1024 * 1024          # conservative (v7x-sized) fallback
        limit = min(cap * 3 // 4, 96 * 1024 * 1024)   # <=48 MiB on v7x, 96 on v5e/v6e
        budget = limit * 3 // 5                        # headroom for compiler scratch
        _VMEM_CACHE = (limit, budget)
    return _VMEM_CACHE


_TM_CANDS = (512, 256, 128, 64, 32, 16, 8)
_TK_CANDS = (2048, 1024, 512, 256, 128)
_TN_SPLITS = (1024, 512, 256, 128)


def _conv_tiles(M, K, OC, budget):
    """Pick (tm, tk, tn, Np) for the conv matmul under a VMEM budget."""
    # Lane-pad output channels: 128 for small OC, 256-aligned above that
    # (v6e/v7x MXU is 2x256^2; v5e's 4x128^2 is happy with either).
    Np = 128 if OC <= 128 else _round_up(OC, 256)

    tm_cap = _round_up(M, 8)
    if tm_cap >= 256:              # keep >=2 M blocks so both v7x TCs get work
        tm_cap //= 2
    tm_cands = [t for t in _TM_CANDS if t <= tm_cap] or [8]

    tk_cap = _round_up(K, 128)
    tk_cands = [t for t in _TK_CANDS if t <= tk_cap] or [tk_cap]

    # Prefer tn == Np so the (huge) im2col LHS streams from HBM exactly once.
    tn_cands = [Np] + [t for t in _TN_SPLITS if t < Np and Np % t == 0]

    def vmem_need(tm, tk, tn):
        return (2 * tm * tk * 2        # bf16 LHS tile, double-buffered
                + 2 * tk * tn * 2      # bf16 RHS tile, double-buffered
                + 2 * tm * tn * 2      # bf16 out tile, double-buffered
                + tm * tn * 4          # f32 accumulator scratch
                + 2 * 3 * tn * 4)      # bias + stats tiles (tiny)

    for tn in tn_cands:
        for tk in tk_cands:
            for tm in tm_cands:
                if vmem_need(tm, tk, tn) <= budget:
                    return tm, tk, tn, Np
    return tm_cands[-1], tk_cands[-1], tn_cands[-1], Np


def _pick_m_tile(Mp):
    """M tile for the elementwise affine kernel (Mp is a multiple of 8)."""
    cap = Mp if Mp < 256 else Mp // 2   # >=2 blocks for v7x megacore when big
    for t in _TM_CANDS:
        if t <= cap and Mp % t == 0:
            return t
    return Mp


# ----------------------------- Pallas kernels ------------------------------

def _conv_mm_kernel(p_ref, w_ref, b_ref, o_ref, stats_ref, acc_ref,
                    *, act, with_stats, m_real, tm):
    """One (TM, TN) tile of act(P @ W + b), accumulated over the K grid axis.

    Optionally emits masked per-channel partial sum / sum-of-squares of the
    f32 tile (used to fuse BatchNorm batch statistics into the conv pass)."""
    # Hoisted out of the pl.when bodies: program_id inside a cond sub-jaxpr
    # breaks the interpret/CPU lowering path.
    mi = pl.program_id(0)
    k = pl.program_id(2)
    k_last = pl.num_programs(2) - 1

    @pl.when(k == 0)
    def _init():
        acc_ref[...] = jnp.zeros_like(acc_ref)

    acc_ref[...] += jnp.dot(p_ref[...], w_ref[...],
                            preferred_element_type=jnp.float32)

    @pl.when(k == k_last)
    def _finalize():
        y = acc_ref[...] + b_ref[...]              # f32 epilogue math
        if act == "leaky_relu":
            y = jnp.where(y >= 0, y, NEG_SLOPE * y)
        elif act == "sigmoid":
            y = jax.nn.sigmoid(y)                  # stable; exp goes to the EUP
        o_ref[...] = y.astype(o_ref.dtype)         # bf16 writeback

        if with_stats:
            # Per-channel partial statistics of this tile from the f32 values;
            # rows beyond the real M (padding) are masked out.
            row = jax.lax.broadcasted_iota(jnp.int32, (tm, 1), 0) + mi * tm
            valid = (row < m_real).astype(jnp.float32)
            ym = y * valid
            stats_ref[0, 0:1, :] = jnp.sum(ym, axis=0, keepdims=True)
            stats_ref[0, 1:2, :] = jnp.sum(ym * ym, axis=0, keepdims=True)


def _affine_lrelu_kernel(y_ref, scale_ref, shift_ref, o_ref):
    """Fused BatchNorm-affine (precomputed scale/shift) + LeakyReLU(0.2)."""
    z = y_ref[...].astype(jnp.float32) * scale_ref[...] + shift_ref[...]
    o_ref[...] = jnp.where(z >= 0, z, NEG_SLOPE * z).astype(o_ref.dtype)


# ------------------------------ kernel wrappers -----------------------------

def conv_matmul(patches, w2d, bias, act, with_stats=False):
    """act(patches @ w2d + bias) with a tiled K-accumulating Pallas kernel.

    Returns:
      y     : (Mp, Np) bf16 (M / channel padded; padded channels stay zero)
      stats : (nbm, 2, Np) f32; rows 0/1 hold per-M-block channel sums /
              sums-of-squares over the real rows (only valid if with_stats).
    """
    M, K = patches.shape
    _, OC = w2d.shape
    limit, budget = _vmem_params()
    tm, tk, tn, Np = _conv_tiles(M, K, OC, budget)
    Mp = _round_up(M, tm)
    Kp = _round_up(K, tk)
    nbm, nbn, nbk = Mp // tm, Np // tn, Kp // tk

    # bf16 operands for the MXU (LHS is already bf16), f32 accumulation.
    p = jnp.pad(patches.astype(jnp.bfloat16), ((0, Mp - M), (0, Kp - K)))
    w = jnp.pad(w2d, ((0, Kp - K), (0, Np - OC))).astype(jnp.bfloat16)
    b = jnp.pad(bias, (0, Np - OC)).astype(jnp.float32).reshape(1, Np)

    y, stats = pl.pallas_call(
        functools.partial(_conv_mm_kernel, act=act, with_stats=with_stats,
                          m_real=M, tm=tm),
        out_shape=(jax.ShapeDtypeStruct((Mp, Np), jnp.bfloat16),
                   jax.ShapeDtypeStruct((nbm, 2, Np), jnp.float32)),
        grid=(nbm, nbn, nbk),
        in_specs=[pl.BlockSpec((tm, tk), lambda i, j, k: (i, k)),
                  pl.BlockSpec((tk, tn), lambda i, j, k: (k, j)),
                  pl.BlockSpec((1, tn), lambda i, j, k: (0, j))],
        out_specs=(pl.BlockSpec((tm, tn), lambda i, j, k: (i, j)),
                   pl.BlockSpec((1, 2, tn), lambda i, j, k: (i, 0, j))),
        scratch_shapes=[pltpu.VMEM((tm, tn), jnp.float32)],
        compiler_params=pltpu.CompilerParams(
            dimension_semantics=("parallel", "parallel", "arbitrary"),
            vmem_limit_bytes=limit),
    )(p, w, b)
    return y, stats


def affine_lrelu(y, scale, shift):
    """Tiled fused BN-affine + LeakyReLU over an (Mp, Np) bf16 activation."""
    Mp, Np = y.shape
    limit, _ = _vmem_params()
    tm = _pick_m_tile(Mp)
    return pl.pallas_call(
        _affine_lrelu_kernel,
        out_shape=jax.ShapeDtypeStruct((Mp, Np), jnp.bfloat16),
        grid=(Mp // tm,),
        in_specs=[pl.BlockSpec((tm, Np), lambda i: (i, 0)),
                  pl.BlockSpec((1, Np), lambda i: (0, 0)),
                  pl.BlockSpec((1, Np), lambda i: (0, 0))],
        out_specs=pl.BlockSpec((tm, Np), lambda i: (i, 0)),
        compiler_params=pltpu.CompilerParams(
            dimension_semantics=("parallel",),
            vmem_limit_bytes=limit),
    )(y,
      scale.reshape(1, Np).astype(jnp.float32),
      shift.reshape(1, Np).astype(jnp.float32))


# --------------------------------- glue -------------------------------------
# NHWC bf16 everywhere.  Stride-2 4x4 convs: space-to-depth turns them into
# 2x2 stride-1 convs, so the im2col LHS is only a 4x expansion (vs 16x naive).

def _patches_s2(x):
    """LHS for Conv2d(k=4, s=2, p=1) on NHWC input x."""
    N, H, W, C = x.shape
    xp = jnp.pad(x, ((0, 0), (1, 1), (1, 1), (0, 0)))
    Hs, Ws = (H + 2) // 2, (W + 2) // 2
    s = xp.reshape(N, Hs, 2, Ws, 2, C)
    s = jnp.transpose(s, (0, 1, 3, 2, 4, 5)).reshape(N, Hs, Ws, 4 * C)
    OH, OW = H // 2, W // 2
    cols = [s[:, di:di + OH, dj:dj + OW, :] for di in (0, 1) for dj in (0, 1)]
    p = jnp.stack(cols, axis=3).reshape(N * OH * OW, 16 * C)
    return p, (N, OH, OW)


def _weights_s2(w, cin_total):
    """(OC, Cr, 4, 4) -> (16*cin_total, OC), matching _patches_s2 K ordering."""
    OC, Cr, _, _ = w.shape
    wp = jnp.pad(w, ((0, 0), (0, cin_total - Cr), (0, 0), (0, 0)))
    w6 = wp.reshape(OC, cin_total, 2, 2, 2, 2)          # (OC, C, di, ph, dj, pw)
    return jnp.transpose(w6, (2, 4, 3, 5, 1, 0)).reshape(16 * cin_total, OC)


def _patches_s1(x, kh=4, kw=4):
    """LHS for Conv2d(k, s=1, p=0) on NHWC input x (tiny final layer)."""
    N, H, W, C = x.shape
    OH, OW = H - kh + 1, W - kw + 1
    cols = [x[:, i:i + OH, j:j + OW, :] for i in range(kh) for j in range(kw)]
    p = jnp.stack(cols, axis=3).reshape(N * OH * OW, kh * kw * C)
    return p, (N, OH, OW)


def _weights_s1(w, cin_total):
    OC, Cr, kh, kw = w.shape
    wp = jnp.pad(w, ((0, 0), (0, cin_total - Cr), (0, 0), (0, 0)))
    return jnp.transpose(wp, (2, 3, 1, 0)).reshape(kh * kw * cin_total, OC)


def conv_d_forward(x_nchw, params):
    """Replicates Conv_D.forward: conv/lrelu, n_layers x (conv/bn/lrelu), conv/sigmoid."""
    # NCHW -> NHWC once, bf16 once (halves every downstream im2col HBM stream).
    x = jnp.transpose(x_nchw, (0, 2, 3, 1)).astype(jnp.bfloat16)

    # first block: Conv2d(4, s=2, p=1) + LeakyReLU(0.2) fused in the epilogue
    w, b = params["convs"][0]
    patches, (N, OH, OW) = _patches_s2(x)
    y, _ = conv_matmul(patches, _weights_s2(w, x.shape[-1]), b, act="leaky_relu")
    M, OC = N * OH * OW, w.shape[0]
    x = y[:M, :OC].reshape(N, OH, OW, OC)

    # middle blocks: Conv2d(4, s=2, p=1) + BatchNorm2d (batch stats) + LeakyReLU(0.2)
    for li, (gamma, beta) in enumerate(params["bns"]):
        w, b = params["convs"][1 + li]
        patches, (N, OH, OW) = _patches_s2(x)
        y, stats = conv_matmul(patches, _weights_s2(w, x.shape[-1]), b,
                               act=None, with_stats=True)
        M, OC = N * OH * OW, w.shape[0]
        Np = y.shape[1]
        # BN batch statistics from the conv kernel's fused f32 partial sums.
        # Note: single-pass E[x^2] - mean^2 (clamped); training-mode biased var.
        s1 = jnp.sum(stats[:, 0, :], axis=0)
        s2 = jnp.sum(stats[:, 1, :], axis=0)
        mean = s1 / M
        var = jnp.maximum(s2 / M - mean * mean, 0.0)
        gam = jnp.pad(gamma, (0, Np - gamma.shape[0]))
        bet = jnp.pad(beta, (0, Np - beta.shape[0]))
        scale = gam * jax.lax.rsqrt(var + BN_EPS)
        shift = bet - mean * scale
        y = affine_lrelu(y, scale, shift)
        x = y[:M, :OC].reshape(N, OH, OW, OC)

    # final block: Conv2d(4, s=1, p=0) + Sigmoid
    w, b = params["convs"][-1]
    patches, (N, OH, OW) = _patches_s1(x)
    y, _ = conv_matmul(patches, _weights_s1(w, x.shape[-1]), b, act="sigmoid")
    M, OC = N * OH * OW, w.shape[0]
    out = y[:M, :OC].reshape(N, OH, OW, OC).astype(jnp.float32)
    return jnp.transpose(out, (0, 3, 1, 2))     # back to NCHW at the boundary


# ------------------------------ parameter init -------------------------------

def init_params(key, input_nc=3, ndf=8, n_layers=2):
    convs, bns = [], []
    cur = ndf
    k_iter = jax.random.split(key, 2 * (n_layers + 2))
    ki = 0

    def conv_init(oc, ic):
        nonlocal ki
        w = 0.05 * jax.random.normal(k_iter[ki], (oc, ic, 4, 4), jnp.float32); ki += 1
        b = 0.05 * jax.random.normal(k_iter[ki], (oc,), jnp.float32); ki += 1
        return w, b

    convs.append(conv_init(cur, input_nc))
    for _ in range(n_layers):
        convs.append(conv_init(cur * 2, cur))
        bns.append((jnp.ones((cur * 2,), jnp.float32),     # BatchNorm2d default gamma
                    jnp.zeros((cur * 2,), jnp.float32)))   # BatchNorm2d default beta
        cur *= 2
    convs.append(conv_init(1, cur))
    return {"convs": convs, "bns": bns}


if __name__ == "__main__":
    key = jax.random.PRNGKey(0)
    kx, kp = jax.random.split(key)
    # small synthetic config: input_nc=3, ndf=8, n_layers=2, 32x32 input
    params = init_params(kp, input_nc=3, ndf=8, n_layers=2)
    x = jax.random.normal(kx, (2, 3, 32, 32), jnp.float32)

    out = jax.jit(conv_d_forward)(x, params)    # expected shape (2, 1, 1, 1)
    jax.block_until_ready(out)
    assert out.shape == (2, 1, 1, 1), out.shape
    print("KERNEL_OK")
</pallas_src>

<mosaic_0001>
module attributes {stable_mosaic.version = 11 : i64} {
  func.func @_conv_mm_kernel(%arg0: i32, %arg1: i32, %arg2: i32, %arg3: memref<256x128xbf16, #tpu.memory_space<vmem>>, %arg4: memref<128x128xbf16, #tpu.memory_space<vmem>>, %arg5: memref<1x128xf32, #tpu.memory_space<vmem>>, %arg6: memref<256x128xbf16, #tpu.memory_space<vmem>>, %arg7: memref<1x2x128xf32, #tpu.memory_space<vmem>>, %arg8: memref<256x128xf32, #tpu.memory_space<vmem>>) attributes {dimension_semantics = [#tpu.dimension_semantics<parallel>, #tpu.dimension_semantics<parallel>, #tpu.dimension_semantics<arbitrary>], iteration_bounds = array<i64: 2, 1, 1>, scalar_prefetch = 0 : i64, scratch_operands = 1 : i64, tpu.core_type = #tpu.core_type<tc>, window_params = [{transform_indices = @transform_0, window_bounds = array<i64: 256, 128>}, {transform_indices = @transform_1, window_bounds = array<i64: 128, 128>}, {transform_indices = @transform_2, window_bounds = array<i64: 1, 128>}, {transform_indices = @transform_3, window_bounds = array<i64: 256, 128>}, {transform_indices = @transform_4, window_bounds = array<i64: 1, 2, 128>}]} {
    %c0_i32 = arith.constant 0 : i32
    %0 = arith.cmpi eq, %arg2, %c0_i32 : i32
    %1 = arith.extui %0 : i1 to i32
    %c0_i32_0 = arith.constant 0 : i32
    %2 = arith.cmpi ne, %1, %c0_i32_0 : i32
    scf.if %2 {
      %cst_10 = arith.constant 0.000000e+00 : f32
      %12 = vector.broadcast %cst_10 : f32 to vector<256x128xf32>
      %c0_11 = arith.constant 0 : index
      %c0_12 = arith.constant 0 : index
      %13 = vector.load %arg8[%c0_11, %c0_12] : memref<256x128xf32, #tpu.memory_space<vmem>>, vector<256x128xf32>
      tpu.vector_store %arg8[%c0_11, %c0_12], %12 {strides = array<i32>} : memref<256x128xf32, #tpu.memory_space<vmem>>, vector<256x128xf32>,
    } else {
    }
    %c0 = arith.constant 0 : index
    %c0_1 = arith.constant 0 : index
    %3 = vector.load %arg8[%c0, %c0_1] : memref<256x128xf32, #tpu.memory_space<vmem>>, vector<256x128xf32>
    %c0_2 = arith.constant 0 : index
    %c0_3 = arith.constant 0 : index
    %4 = vector.load %arg3[%c0_2, %c0_3] : memref<256x128xbf16, #tpu.memory_space<vmem>>, vector<256x128xbf16>
    %c0_4 = arith.constant 0 : index
    %c0_5 = arith.constant 0 : index
    %5 = vector.load %arg4[%c0_4, %c0_5] : memref<128x128xbf16, #tpu.memory_space<vmem>>, vector<128x128xbf16>
    %cst = arith.constant dense<0.000000e+00> : vector<256x128xf32>
    %6 = tpu.matmul %4, %5, %cst {dimension_numbers = #tpu.dot_dimension_numbers<[1], [0], [0], [1], [0, 0, 1, 1], [], []>} : vector<256x128xbf16>, vector<128x128xbf16>, vector<256x128xf32> -> vector<256x128xf32>
    %7 = arith.addf %3, %6 : vector<256x128xf32>
    %c0_6 = arith.constant 0 : index
    %c0_7 = arith.constant 0 : index
    %8 = vector.load %arg8[%c0_6, %c0_7] : memref<256x128xf32, #tpu.memory_space<vmem>>, vector<256x128xf32>
    tpu.vector_store %arg8[%c0_6, %c0_7], %7 {strides = array<i32>} : memref<256x128xf32, #tpu.memory_space<vmem>>, vector<256x128xf32>,
    %c0_i32_8 = arith.constant 0 : i32
    %9 = arith.cmpi eq, %arg2, %c0_i32_8 : i32
    %10 = arith.extui %9 : i1 to i32
    %c0_i32_9 = arith.constant 0 : i32
    %11 = arith.cmpi ne, %10, %c0_i32_9 : i32
    scf.if %11 {
      %c0_10 = arith.constant 0 : index
      %c0_11 = arith.constant 0 : index
      %12 = vector.load %arg8[%c0_10, %c0_11] : memref<256x128xf32, #tpu.memory_space<vmem>>, vector<256x128xf32>
      %c0_12 = arith.constant 0 : index
      %c0_13 = arith.constant 0 : index
      %13 = vector.load %arg5[%c0_12, %c0_13] : memref<1x128xf32, #tpu.memory_space<vmem>>, vector<1x128xf32>
      %14 = vector.broadcast %13 : vector<1x128xf32> to vector<256x128xf32>
      %15 = arith.addf %12, %14 : vector<256x128xf32>
      %cst_14 = arith.constant 0.000000e+00 : f32
      %16 = vector.broadcast %cst_14 : f32 to vector<256x128xf32>
      %17 = arith.cmpf oge, %15, %16 : vector<256x128xf32>
      %cst_15 = arith.constant 2.000000e-01 : f32
      %18 = vector.broadcast %cst_15 : f32 to vector<256x128xf32>
      %19 = arith.mulf %18, %15 : vector<256x128xf32>
      %20 = arith.select %17, %15, %19 : vector<256x128xi1>, vector<256x128xf32>
      %21 = arith.truncf %20 : vector<256x128xf32> to vector<256x128xbf16>
      %c0_16 = arith.constant 0 : index
      %c0_17 = arith.constant 0 : index
      %22 = vector.load %arg6[%c0_16, %c0_17] : memref<256x128xbf16, #tpu.memory_space<vmem>>, vector<256x128xbf16>
      tpu.vector_store %arg6[%c0_16, %c0_17], %21 {strides = array<i32>} : memref<256x128xbf16, #tpu.memory_space<vmem>>, vector<256x128xbf16>,
    } else {
    }
    return
  }
  func.func @transform_0(%arg0: i32, %arg1: i32, %arg2: i32) -> (i32, i32) {
    %c0_i32 = arith.constant 0 : i32
    return %arg0, %arg2 : i32, i32
  }
  func.func @transform_1(%arg0: i32, %arg1: i32, %arg2: i32) -> (i32, i32) {
    %c0_i32 = arith.constant 0 : i32
    return %arg2, %arg1 : i32, i32
  }
  func.func @transform_2(%arg0: i32, %arg1: i32, %arg2: i32) -> (i32, i32) {
    %c0_i32 = arith.constant 0 : i32
    %c0_i32_0 = arith.constant 0 : i32
    return %c0_i32, %arg1 : i32, i32
  }
  func.func @transform_3(%arg0: i32, %arg1: i32, %arg2: i32) -> (i32, i32) {
    %c0_i32 = arith.constant 0 : i32
    return %arg0, %arg1 : i32, i32
  }
  func.func @transform_4(%arg0: i32, %arg1: i32, %arg2: i32) -> (i32, i32, i32) {
    %c0_i32 = arith.constant 0 : i32
    %c0_i32_0 = arith.constant 0 : i32
    return %arg0, %c0_i32, %arg1 : i32, i32, i32
  }
}

module attributes {stable_mosaic.version = 11 : i64} {
  func.func @_conv_mm_kernel(%arg0: i32, %arg1: i32, %arg2: i32, %arg3: memref<128x128xbf16, #tpu.memory_space<vmem>>, %arg4: memref<128x128xbf16, #tpu.memory_space<vmem>>, %arg5: memref<1x128xf32, #tpu.memory_space<vmem>>, %arg6: memref<128x128xbf16, #tpu.memory_space<vmem>>, %arg7: memref<1x2x128xf32, #tpu.memory_space<vmem>>, %arg8: memref<128x128xf32, #tpu.memory_space<vmem>>) attributes {dimension_semantics = [#tpu.dimension_semantics<parallel>, #tpu.dimension_semantics<parallel>, #tpu.dimension_semantics<arbitrary>], iteration_bounds = array<i64: 1, 1, 1>, scalar_prefetch = 0 : i64, scratch_operands = 1 : i64, tpu.core_type = #tpu.core_type<tc>, window_params = [{transform_indices = @transform_0, window_bounds = array<i64: 128, 128>}, {transform_indices = @transform_1, window_bounds = array<i64: 128, 128>}, {transform_indices = @transform_2, window_bounds = array<i64: 1, 128>}, {transform_indices = @transform_3, window_bounds = array<i64: 128, 128>}, {transform_indices = @transform_4, window_bounds = array<i64: 1, 2, 128>}]} {
    %c0_i32 = arith.constant 0 : i32
    %0 = arith.cmpi eq, %arg2, %c0_i32 : i32
    %1 = arith.extui %0 : i1 to i32
    %c0_i32_0 = arith.constant 0 : i32
    %2 = arith.cmpi ne, %1, %c0_i32_0 : i32
    scf.if %2 {
      %cst_10 = arith.constant 0.000000e+00 : f32
      %12 = vector.broadcast %cst_10 : f32 to vector<128x128xf32>
      %c0_11 = arith.constant 0 : index
      %c0_12 = arith.constant 0 : index
      %13 = vector.load %arg8[%c0_11, %c0_12] : memref<128x128xf32, #tpu.memory_space<vmem>>, vector<128x128xf32>
      tpu.vector_store %arg8[%c0_11, %c0_12], %12 {strides = array<i32>} : memref<128x128xf32, #tpu.memory_space<vmem>>, vector<128x128xf32>,
    } else {
    }
    %c0 = arith.constant 0 : index
    %c0_1 = arith.constant 0 : index
    %3 = vector.load %arg8[%c0, %c0_1] : memref<128x128xf32, #tpu.memory_space<vmem>>, vector<128x128xf32>
    %c0_2 = arith.constant 0 : index
    %c0_3 = arith.constant 0 : index
    %4 = vector.load %arg3[%c0_2, %c0_3] : memref<128x128xbf16, #tpu.memory_space<vmem>>, vector<128x128xbf16>
    %c0_4 = arith.constant 0 : index
    %c0_5 = arith.constant 0 : index
    %5 = vector.load %arg4[%c0_4, %c0_5] : memref<128x128xbf16, #tpu.memory_space<vmem>>, vector<128x128xbf16>
    %cst = arith.constant dense<0.000000e+00> : vector<128x128xf32>
    %6 = tpu.matmul %4, %5, %cst {dimension_numbers = #tpu.dot_dimension_numbers<[1], [0], [0], [1], [0, 0, 1, 1], [], []>} : vector<128x128xbf16>, vector<128x128xbf16>, vector<128x128xf32> -> vector<128x128xf32>
    %7 = arith.addf %3, %6 : vector<128x128xf32>
    %c0_6 = arith.constant 0 : index
    %c0_7 = arith.constant 0 : index
    %8 = vector.load %arg8[%c0_6, %c0_7] : memref<128x128xf32, #tpu.memory_space<vmem>>, vector<128x128xf32>
    tpu.vector_store %arg8[%c0_6, %c0_7], %7 {strides = array<i32>} : memref<128x128xf32, #tpu.memory_space<vmem>>, vector<128x128xf32>,
    %c0_i32_8 = arith.constant 0 : i32
    %9 = arith.cmpi eq, %arg2, %c0_i32_8 : i32
    %10 = arith.extui %9 : i1 to i32
    %c0_i32_9 = arith.constant 0 : i32
    %11 = arith.cmpi ne, %10, %c0_i32_9 : i32
    scf.if %11 {
      %c0_10 = arith.constant 0 : index
      %c0_11 = arith.constant 0 : index
      %12 = vector.load %arg8[%c0_10, %c0_11] : memref<128x128xf32, #tpu.memory_space<vmem>>, vector<128x128xf32>
      %c0_12 = arith.constant 0 : index
      %c0_13 = arith.constant 0 : index
      %13 = vector.load %arg5[%c0_12, %c0_13] : memref<1x128xf32, #tpu.memory_space<vmem>>, vector<1x128xf32>
      %14 = vector.broadcast %13 : vector<1x128xf32> to vector<128x128xf32>
      %15 = arith.addf %12, %14 : vector<128x128xf32>
      %16 = arith.truncf %15 : vector<128x128xf32> to vector<128x128xbf16>
      %c0_14 = arith.constant 0 : index
      %c0_15 = arith.constant 0 : index
      %17 = vector.load %arg6[%c0_14, %c0_15] : memref<128x128xbf16, #tpu.memory_space<vmem>>, vector<128x128xbf16>
      tpu.vector_store %arg6[%c0_14, %c0_15], %16 {strides = array<i32>} : memref<128x128xbf16, #tpu.memory_space<vmem>>, vector<128x128xbf16>,
      %18 = tpu.iota {dimensions = array<i32: 0>} : vector<128x1xi32>
      %c128_i32 = arith.constant 128 : i32
      %19 = arith.muli %arg0, %c128_i32 : i32
      %20 = vector.broadcast %19 : i32 to vector<128x1xi32>
      %21 = arith.addi %18, %20 : vector<128x1xi32>
      %c128_i32_16 = arith.constant 128 : i32
      %22 = vector.broadcast %c128_i32_16 : i32 to vector<128x1xi32>
      %23 = arith.cmpi slt, %21, %22 : vector<128x1xi32>
      %24 = arith.extui %23 : vector<128x1xi1> to vector<128x1xi32>
      %25 = arith.sitofp %24 : vector<128x1xi32> to vector<128x1xf32>
      %26 = vector.broadcast %25 : vector<128x1xf32> to vector<128x128xf32>
      %27 = arith.mulf %15, %26 : vector<128x128xf32>
      %cst_17 = arith.constant dense<0.000000e+00> : vector<128xf32>
      %28 = vector.multi_reduction <add>, %27, %cst_17 [0] : vector<128x128xf32> to vector<128xf32>
      %29 = vector.shape_cast %28 : vector<128xf32> to vector<1x128xf32>
      %c0_18 = arith.constant 0 : index
      %c0_19 = arith.constant 0 : index
      %c0_20 = arith.constant 0 : index
      %30 = vector.load %arg7[%c0_18, %c0_19, %c0_20] : memref<1x2x128xf32, #tpu.memory_space<vmem>>, vector<1x1x128xf32>
      %31 = vector.shape_cast %30 : vector<1x1x128xf32> to vector<1x128xf32>
      %32 = vector.shape_cast %29 : vector<1x128xf32> to vector<1x1x128xf32>
      tpu.vector_store %arg7[%c0_18, %c0_19, %c0_20], %32 {strides = array<i32>} : memref<1x2x128xf32, #tpu.memory_space<vmem>>, vector<1x1x128xf32>,
      %33 = arith.mulf %27, %27 : vector<128x128xf32>
      %cst_21 = arith.constant dense<0.000000e+00> : vector<128xf32>
      %34 = vector.multi_reduction <add>, %33, %cst_21 [0] : vector<128x128xf32> to vector<128xf32>
      %35 = vector.shape_cast %34 : vector<128xf32> to vector<1x128xf32>
      %c0_22 = arith.constant 0 : index
      %c1 = arith.constant 1 : index
      %c0_23 = arith.constant 0 : index
      %36 = vector.load %arg7[%c0_22, %c1, %c0_23] : memref<1x2x128xf32, #tpu.memory_space<vmem>>, vector<1x1x128xf32>
      %37 = vector.shape_cast %36 : vector<1x1x128xf32> to vector<1x128xf32>
      %38 = vector.shape_cast %35 : vector<1x128xf32> to vector<1x1x128xf32>
      tpu.vector_store %arg7[%c0_22, %c1, %c0_23], %38 {strides = array<i32>} : memref<1x2x128xf32, #tpu.memory_space<vmem>>, vector<1x1x128xf32>,
    } else {
    }
    return
  }
  func.func @transform_0(%arg0: i32, %arg1: i32, %arg2: i32) -> (i32, i32) {
    %c0_i32 = arith.constant 0 : i32
    return %arg0, %arg2 : i32, i32
  }
  func.func @transform_1(%arg0: i32, %arg1: i32, %arg2: i32) -> (i32, i32) {
    %c0_i32 = arith.constant 0 : i32
    return %arg2, %arg1 : i32, i32
  }
  func.func @transform_2(%arg0: i32, %arg1: i32, %arg2: i32) -> (i32, i32) {
    %c0_i32 = arith.constant 0 : i32
    %c0_i32_0 = arith.constant 0 : i32
    return %c0_i32, %arg1 : i32, i32
  }
  func.func @transform_3(%arg0: i32, %arg1: i32, %arg2: i32) -> (i32, i32) {
    %c0_i32 = arith.constant 0 : i32
    return %arg0, %arg1 : i32, i32
  }
  func.func @transform_4(%arg0: i32, %arg1: i32, %arg2: i32) -> (i32, i32, i32) {
    %c0_i32 = arith.constant 0 : i32
    %c0_i32_0 = arith.constant 0 : i32
    return %arg0, %c0_i32, %arg1 : i32, i32, i32
  }
}

module attributes {stable_mosaic.version = 11 : i64} {
  func.func @_affine_lrelu_kernel(%arg0: i32, %arg1: memref<128x128xbf16, #tpu.memory_space<vmem>>, %arg2: memref<1x128xf32, #tpu.memory_space<vmem>>, %arg3: memref<1x128xf32, #tpu.memory_space<vmem>>, %arg4: memref<128x128xbf16, #tpu.memory_space<vmem>>) attributes {dimension_semantics = [#tpu.dimension_semantics<parallel>], iteration_bounds = array<i64: 1>, scalar_prefetch = 0 : i64, scratch_operands = 0 : i64, tpu.core_type = #tpu.core_type<tc>, window_params = [{transform_indices = @transform_0, window_bounds = array<i64: 128, 128>}, {pipeline_mode = #tpu.pipeline_mode<synchronous>, transform_indices = @transform_1, window_bounds = array<i64: 1, 128>}, {pipeline_mode = #tpu.pipeline_mode<synchronous>, transform_indices = @transform_2, window_bounds = array<i64: 1, 128>}, {transform_indices = @transform_3, window_bounds = array<i64: 128, 128>}]} {
    %c0 = arith.constant 0 : index
    %c0_0 = arith.constant 0 : index
    %0 = vector.load %arg1[%c0, %c0_0] : memref<128x128xbf16, #tpu.memory_space<vmem>>, vector<128x128xbf16>
    %1 = arith.extf %0 : vector<128x128xbf16> to vector<128x128xf32>
    %c0_1 = arith.constant 0 : index
    %c0_2 = arith.constant 0 : index
    %2 = vector.load %arg2[%c0_1, %c0_2] : memref<1x128xf32, #tpu.memory_space<vmem>>, vector<1x128xf32>
    %3 = vector.broadcast %2 : vector<1x128xf32> to vector<128x128xf32>
    %4 = arith.mulf %1, %3 : vector<128x128xf32>
    %c0_3 = arith.constant 0 : index
    %c0_4 = arith.constant 0 : index
    %5 = vector.load %arg3[%c0_3, %c0_4] : memref<1x128xf32, #tpu.memory_space<vmem>>, vector<1x128xf32>
    %6 = vector.broadcast %5 : vector<1x128xf32> to vector<128x128xf32>
    %7 = arith.addf %4, %6 : vector<128x128xf32>
    %cst = arith.constant 0.000000e+00 : f32
    %8 = vector.broadcast %cst : f32 to vector<128x128xf32>
    %9 = arith.cmpf oge, %7, %8 : vector<128x128xf32>
    %cst_5 = arith.constant 2.000000e-01 : f32
    %10 = vector.broadcast %cst_5 : f32 to vector<128x128xf32>
    %11 = arith.mulf %10, %7 : vector<128x128xf32>
    %12 = arith.select %9, %7, %11 : vector<128x128xi1>, vector<128x128xf32>
    %13 = arith.truncf %12 : vector<128x128xf32> to vector<128x128xbf16>
    %c0_6 = arith.constant 0 : index
    %c0_7 = arith.constant 0 : index
    %14 = vector.load %arg4[%c0_6, %c0_7] : memref<128x128xbf16, #tpu.memory_space<vmem>>, vector<128x128xbf16>
    tpu.vector_store %arg4[%c0_6, %c0_7], %13 {strides = array<i32>} : memref<128x128xbf16, #tpu.memory_space<vmem>>, vector<128x128xbf16>,
    return
  }
  func.func @transform_0(%arg0: i32) -> (i32, i32) {
    %c0_i32 = arith.constant 0 : i32
    %c0_i32_0 = arith.constant 0 : i32
    return %arg0, %c0_i32 : i32, i32
  }
  func.func @transform_1(%arg0: i32) -> (i32, i32) {
    %c0_i32 = arith.constant 0 : i32
    %c0_i32_0 = arith.constant 0 : i32
    %c0_i32_1 = arith.constant 0 : i32
    return %c0_i32, %c0_i32_0 : i32, i32
  }
  func.func @transform_2(%arg0: i32) -> (i32, i32) {
    %c0_i32 = arith.constant 0 : i32
    %c0_i32_0 = arith.constant 0 : i32
    %c0_i32_1 = arith.constant 0 : i32
    return %c0_i32, %c0_i32_0 : i32, i32
  }
  func.func @transform_3(%arg0: i32) -> (i32, i32) {
    %c0_i32 = arith.constant 0 : i32
    %c0_i32_0 = arith.constant 0 : i32
    return %arg0, %c0_i32 : i32, i32
  }
}

module attributes {stable_mosaic.version = 11 : i64} {
  func.func @_affine_lrelu_kernel(%arg0: i32, %arg1: memref<32x128xbf16, #tpu.memory_space<vmem>>, %arg2: memref<1x128xf32, #tpu.memory_space<vmem>>, %arg3: memref<1x128xf32, #tpu.memory_space<vmem>>, %arg4: memref<32x128xbf16, #tpu.memory_space<vmem>>) attributes {dimension_semantics = [#tpu.dimension_semantics<parallel>], iteration_bounds = array<i64: 1>, scalar_prefetch = 0 : i64, scratch_operands = 0 : i64, tpu.core_type = #tpu.core_type<tc>, window_params = [{transform_indices = @transform_0, window_bounds = array<i64: 32, 128>}, {pipeline_mode = #tpu.pipeline_mode<synchronous>, transform_indices = @transform_1, window_bounds = array<i64: 1, 128>}, {pipeline_mode = #tpu.pipeline_mode<synchronous>, transform_indices = @transform_2, window_bounds = array<i64: 1, 128>}, {transform_indices = @transform_3, window_bounds = array<i64: 32, 128>}]} {
    %c0 = arith.constant 0 : index
    %c0_0 = arith.constant 0 : index
    %0 = vector.load %arg1[%c0, %c0_0] : memref<32x128xbf16, #tpu.memory_space<vmem>>, vector<32x128xbf16>
    %1 = arith.extf %0 : vector<32x128xbf16> to vector<32x128xf32>
    %c0_1 = arith.constant 0 : index
    %c0_2 = arith.constant 0 : index
    %2 = vector.load %arg2[%c0_1, %c0_2] : memref<1x128xf32, #tpu.memory_space<vmem>>, vector<1x128xf32>
    %3 = vector.broadcast %2 : vector<1x128xf32> to vector<32x128xf32>
    %4 = arith.mulf %1, %3 : vector<32x128xf32>
    %c0_3 = arith.constant 0 : index
    %c0_4 = arith.constant 0 : index
    %5 = vector.load %arg3[%c0_3, %c0_4] : memref<1x128xf32, #tpu.memory_space<vmem>>, vector<1x128xf32>
    %6 = vector.broadcast %5 : vector<1x128xf32> to vector<32x128xf32>
    %7 = arith.addf %4, %6 : vector<32x128xf32>
    %cst = arith.constant 0.000000e+00 : f32
    %8 = vector.broadcast %cst : f32 to vector<32x128xf32>
    %9 = arith.cmpf oge, %7, %8 : vector<32x128xf32>
    %cst_5 = arith.constant 2.000000e-01 : f32
    %10 = vector.broadcast %cst_5 : f32 to vector<32x128xf32>
    %11 = arith.mulf %10, %7 : vector<32x128xf32>
    %12 = arith.select %9, %7, %11 : vector<32x128xi1>, vector<32x128xf32>
    %13 = arith.truncf %12 : vector<32x128xf32> to vector<32x128xbf16>
    %c0_6 = arith.constant 0 : index
    %c0_7 = arith.constant 0 : index
    %14 = vector.load %arg4[%c0_6, %c0_7] : memref<32x128xbf16, #tpu.memory_space<vmem>>, vector<32x128xbf16>
    tpu.vector_store %arg4[%c0_6, %c0_7], %13 {strides = array<i32>} : memref<32x128xbf16, #tpu.memory_space<vmem>>, vector<32x128xbf16>,
    return
  }
  func.func @transform_0(%arg0: i32) -> (i32, i32) {
    %c0_i32 = arith.constant 0 : i32
    %c0_i32_0 = arith.constant 0 : i32
    return %arg0, %c0_i32 : i32, i32
  }
  func.func @transform_1(%arg0: i32) -> (i32, i32) {
    %c0_i32 = arith.constant 0 : i32
    %c0_i32_0 = arith.constant 0 : i32
    %c0_i32_1 = arith.constant 0 : i32
    return %c0_i32, %c0_i32_0 : i32, i32
  }
  func.func @transform_2(%arg0: i32) -> (i32, i32) {
    %c0_i32 = arith.constant 0 : i32
    %c0_i32_0 = arith.constant 0 : i32
    %c0_i32_1 = arith.constant 0 : i32
    return %c0_i32, %c0_i32_0 : i32, i32
  }
  func.func @transform_3(%arg0: i32) -> (i32, i32) {
    %c0_i32 = arith.constant 0 : i32
    %c0_i32_0 = arith.constant 0 : i32
    return %arg0, %c0_i32 : i32, i32
  }
}

module attributes {stable_mosaic.version = 11 : i64} {
  func.func @_conv_mm_kernel(%arg0: i32, %arg1: i32, %arg2: i32, %arg3: memref<32x256xbf16, #tpu.memory_space<vmem>>, %arg4: memref<256x128xbf16, #tpu.memory_space<vmem>>, %arg5: memref<1x128xf32, #tpu.memory_space<vmem>>, %arg6: memref<32x128xbf16, #tpu.memory_space<vmem>>, %arg7: memref<1x2x128xf32, #tpu.memory_space<vmem>>, %arg8: memref<32x128xf32, #tpu.memory_space<vmem>>) attributes {dimension_semantics = [#tpu.dimension_semantics<parallel>, #tpu.dimension_semantics<parallel>, #tpu.dimension_semantics<arbitrary>], iteration_bounds = array<i64: 1, 1, 1>, scalar_prefetch = 0 : i64, scratch_operands = 1 : i64, tpu.core_type = #tpu.core_type<tc>, window_params = [{transform_indices = @transform_0, window_bounds = array<i64: 32, 256>}, {transform_indices = @transform_1, window_bounds = array<i64: 256, 128>}, {transform_indices = @transform_2, window_bounds = array<i64: 1, 128>}, {transform_indices = @transform_3, window_bounds = array<i64: 32, 128>}, {transform_indices = @transform_4, window_bounds = array<i64: 1, 2, 128>}]} {
    %c0_i32 = arith.constant 0 : i32
    %0 = arith.cmpi eq, %arg2, %c0_i32 : i32
    %1 = arith.extui %0 : i1 to i32
    %c0_i32_0 = arith.constant 0 : i32
    %2 = arith.cmpi ne, %1, %c0_i32_0 : i32
    scf.if %2 {
      %cst_10 = arith.constant 0.000000e+00 : f32
      %12 = vector.broadcast %cst_10 : f32 to vector<32x128xf32>
      %c0_11 = arith.constant 0 : index
      %c0_12 = arith.constant 0 : index
      %13 = vector.load %arg8[%c0_11, %c0_12] : memref<32x128xf32, #tpu.memory_space<vmem>>, vector<32x128xf32>
      tpu.vector_store %arg8[%c0_11, %c0_12], %12 {strides = array<i32>} : memref<32x128xf32, #tpu.memory_space<vmem>>, vector<32x128xf32>,
    } else {
    }
    %c0 = arith.constant 0 : index
    %c0_1 = arith.constant 0 : index
    %3 = vector.load %arg8[%c0, %c0_1] : memref<32x128xf32, #tpu.memory_space<vmem>>, vector<32x128xf32>
    %c0_2 = arith.constant 0 : index
    %c0_3 = arith.constant 0 : index
    %4 = vector.load %arg3[%c0_2, %c0_3] : memref<32x256xbf16, #tpu.memory_space<vmem>>, vector<32x256xbf16>
    %c0_4 = arith.constant 0 : index
    %c0_5 = arith.constant 0 : index
    %5 = vector.load %arg4[%c0_4, %c0_5] : memref<256x128xbf16, #tpu.memory_space<vmem>>, vector<256x128xbf16>
    %cst = arith.constant dense<0.000000e+00> : vector<32x128xf32>
    %6 = tpu.matmul %4, %5, %cst {dimension_numbers = #tpu.dot_dimension_numbers<[1], [0], [0], [1], [0, 0, 1, 1], [], []>} : vector<32x256xbf16>, vector<256x128xbf16>, vector<32x128xf32> -> vector<32x128xf32>
    %7 = arith.addf %3, %6 : vector<32x128xf32>
    %c0_6 = arith.constant 0 : index
    %c0_7 = arith.constant 0 : index
    %8 = vector.load %arg8[%c0_6, %c0_7] : memref<32x128xf32, #tpu.memory_space<vmem>>, vector<32x128xf32>
    tpu.vector_store %arg8[%c0_6, %c0_7], %7 {strides = array<i32>} : memref<32x128xf32, #tpu.memory_space<vmem>>, vector<32x128xf32>,
    %c0_i32_8 = arith.constant 0 : i32
    %9 = arith.cmpi eq, %arg2, %c0_i32_8 : i32
    %10 = arith.extui %9 : i1 to i32
    %c0_i32_9 = arith.constant 0 : i32
    %11 = arith.cmpi ne, %10, %c0_i32_9 : i32
    scf.if %11 {
      %c0_10 = arith.constant 0 : index
      %c0_11 = arith.constant 0 : index
      %12 = vector.load %arg8[%c0_10, %c0_11] : memref<32x128xf32, #tpu.memory_space<vmem>>, vector<32x128xf32>
      %c0_12 = arith.constant 0 : index
      %c0_13 = arith.constant 0 : index
      %13 = vector.load %arg5[%c0_12, %c0_13] : memref<1x128xf32, #tpu.memory_space<vmem>>, vector<1x128xf32>
      %14 = vector.broadcast %13 : vector<1x128xf32> to vector<32x128xf32>
      %15 = arith.addf %12, %14 : vector<32x128xf32>
      %16 = arith.truncf %15 : vector<32x128xf32> to vector<32x128xbf16>
      %c0_14 = arith.constant 0 : index
      %c0_15 = arith.constant 0 : index
      %17 = vector.load %arg6[%c0_14, %c0_15] : memref<32x128xbf16, #tpu.memory_space<vmem>>, vector<32x128xbf16>
      tpu.vector_store %arg6[%c0_14, %c0_15], %16 {strides = array<i32>} : memref<32x128xbf16, #tpu.memory_space<vmem>>, vector<32x128xbf16>,
      %18 = tpu.iota {dimensions = array<i32: 0>} : vector<32x1xi32>
      %c32_i32 = arith.constant 32 : i32
      %19 = arith.muli %arg0, %c32_i32 : i32
      %20 = vector.broadcast %19 : i32 to vector<32x1xi32>
      %21 = arith.addi %18, %20 : vector<32x1xi32>
      %c32_i32_16 = arith.constant 32 : i32
      %22 = vector.broadcast %c32_i32_16 : i32 to vector<32x1xi32>
      %23 = arith.cmpi slt, %21, %22 : vector<32x1xi32>
      %24 = arith.extui %23 : vector<32x1xi1> to vector<32x1xi32>
      %25 = arith.sitofp %24 : vector<32x1xi32> to vector<32x1xf32>
      %26 = vector.broadcast %25 : vector<32x1xf32> to vector<32x128xf32>
      %27 = arith.mulf %15, %26 : vector<32x128xf32>
      %cst_17 = arith.constant dense<0.000000e+00> : vector<128xf32>
      %28 = vector.multi_reduction <add>, %27, %cst_17 [0] : vector<32x128xf32> to vector<128xf32>
      %29 = vector.shape_cast %28 : vector<128xf32> to vector<1x128xf32>
      %c0_18 = arith.constant 0 : index
      %c0_19 = arith.constant 0 : index
      %c0_20 = arith.constant 0 : index
      %30 = vector.load %arg7[%c0_18, %c0_19, %c0_20] : memref<1x2x128xf32, #tpu.memory_space<vmem>>, vector<1x1x128xf32>
      %31 = vector.shape_cast %30 : vector<1x1x128xf32> to vector<1x128xf32>
      %32 = vector.shape_cast %29 : vector<1x128xf32> to vector<1x1x128xf32>
      tpu.vector_store %arg7[%c0_18, %c0_19, %c0_20], %32 {strides = array<i32>} : memref<1x2x128xf32, #tpu.memory_space<vmem>>, vector<1x1x128xf32>,
      %33 = arith.mulf %27, %27 : vector<32x128xf32>
      %cst_21 = arith.constant dense<0.000000e+00> : vector<128xf32>
      %34 = vector.multi_reduction <add>, %33, %cst_21 [0] : vector<32x128xf32> to vector<128xf32>
      %35 = vector.shape_cast %34 : vector<128xf32> to vector<1x128xf32>
      %c0_22 = arith.constant 0 : index
      %c1 = arith.constant 1 : index
      %c0_23 = arith.constant 0 : index
      %36 = vector.load %arg7[%c0_22, %c1, %c0_23] : memref<1x2x128xf32, #tpu.memory_space<vmem>>, vector<1x1x128xf32>
      %37 = vector.shape_cast %36 : vector<1x1x128xf32> to vector<1x128xf32>
      %38 = vector.shape_cast %35 : vector<1x128xf32> to vector<1x1x128xf32>
      tpu.vector_store %arg7[%c0_22, %c1, %c0_23], %38 {strides = array<i32>} : memref<1x2x128xf32, #tpu.memory_space<vmem>>, vector<1x1x128xf32>,
    } else {
    }
    return
  }
  func.func @transform_0(%arg0: i32, %arg1: i32, %arg2: i32) -> (i32, i32) {
    %c0_i32 = arith.constant 0 : i32
    return %arg0, %arg2 : i32, i32
  }
  func.func @transform_1(%arg0: i32, %arg1: i32, %arg2: i32) -> (i32, i32) {
    %c0_i32 = arith.constant 0 : i32
    return %arg2, %arg1 : i32, i32
  }
  func.func @transform_2(%arg0: i32, %arg1: i32, %arg2: i32) -> (i32, i32) {
    %c0_i32 = arith.constant 0 : i32
    %c0_i32_0 = arith.constant 0 : i32
    return %c0_i32, %arg1 : i32, i32
  }
  func.func @transform_3(%arg0: i32, %arg1: i32, %arg2: i32) -> (i32, i32) {
    %c0_i32 = arith.constant 0 : i32
    return %arg0, %arg1 : i32, i32
  }
  func.func @transform_4(%arg0: i32, %arg1: i32, %arg2: i32) -> (i32, i32, i32) {
    %c0_i32 = arith.constant 0 : i32
    %c0_i32_0 = arith.constant 0 : i32
    return %arg0, %c0_i32, %arg1 : i32, i32, i32
  }
}

module attributes {stable_mosaic.version = 11 : i64} {
  func.func @_conv_mm_kernel(%arg0: i32, %arg1: i32, %arg2: i32, %arg3: memref<8x512xbf16, #tpu.memory_space<vmem>>, %arg4: memref<512x128xbf16, #tpu.memory_space<vmem>>, %arg5: memref<1x128xf32, #tpu.memory_space<vmem>>, %arg6: memref<8x128xbf16, #tpu.memory_space<vmem>>, %arg7: memref<1x2x128xf32, #tpu.memory_space<vmem>>, %arg8: memref<8x128xf32, #tpu.memory_space<vmem>>) attributes {dimension_semantics = [#tpu.dimension_semantics<parallel>, #tpu.dimension_semantics<parallel>, #tpu.dimension_semantics<arbitrary>], iteration_bounds = array<i64: 1, 1, 1>, scalar_prefetch = 0 : i64, scratch_operands = 1 : i64, tpu.core_type = #tpu.core_type<tc>, window_params = [{transform_indices = @transform_0, window_bounds = array<i64: 8, 512>}, {transform_indices = @transform_1, window_bounds = array<i64: 512, 128>}, {transform_indices = @transform_2, window_bounds = array<i64: 1, 128>}, {transform_indices = @transform_3, window_bounds = array<i64: 8, 128>}, {transform_indices = @transform_4, window_bounds = array<i64: 1, 2, 128>}]} {
    %c0_i32 = arith.constant 0 : i32
    %0 = arith.cmpi eq, %arg2, %c0_i32 : i32
    %1 = arith.extui %0 : i1 to i32
    %c0_i32_0 = arith.constant 0 : i32
    %2 = arith.cmpi ne, %1, %c0_i32_0 : i32
    scf.if %2 {
      %cst_10 = arith.constant 0.000000e+00 : f32
      %12 = vector.broadcast %cst_10 : f32 to vector<8x128xf32>
      %c0_11 = arith.constant 0 : index
      %c0_12 = arith.constant 0 : index
      %13 = vector.load %arg8[%c0_11, %c0_12] : memref<8x128xf32, #tpu.memory_space<vmem>>, vector<8x128xf32>
      tpu.vector_store %arg8[%c0_11, %c0_12], %12 {strides = array<i32>} : memref<8x128xf32, #tpu.memory_space<vmem>>, vector<8x128xf32>,
    } else {
    }
    %c0 = arith.constant 0 : index
    %c0_1 = arith.constant 0 : index
    %3 = vector.load %arg8[%c0, %c0_1] : memref<8x128xf32, #tpu.memory_space<vmem>>, vector<8x128xf32>
    %c0_2 = arith.constant 0 : index
    %c0_3 = arith.constant 0 : index
    %4 = vector.load %arg3[%c0_2, %c0_3] : memref<8x512xbf16, #tpu.memory_space<vmem>>, vector<8x512xbf16>
    %c0_4 = arith.constant 0 : index
    %c0_5 = arith.constant 0 : index
    %5 = vector.load %arg4[%c0_4, %c0_5] : memref<512x128xbf16, #tpu.memory_space<vmem>>, vector<512x128xbf16>
    %cst = arith.constant dense<0.000000e+00> : vector<8x128xf32>
    %6 = tpu.matmul %4, %5, %cst {dimension_numbers = #tpu.dot_dimension_numbers<[1], [0], [0], [1], [0, 0, 1, 1], [], []>} : vector<8x512xbf16>, vector<512x128xbf16>, vector<8x128xf32> -> vector<8x128xf32>
    %7 = arith.addf %3, %6 : vector<8x128xf32>
    %c0_6 = arith.constant 0 : index
    %c0_7 = arith.constant 0 : index
    %8 = vector.load %arg8[%c0_6, %c0_7] : memref<8x128xf32, #tpu.memory_space<vmem>>, vector<8x128xf32>
    tpu.vector_store %arg8[%c0_6, %c0_7], %7 {strides = array<i32>} : memref<8x128xf32, #tpu.memory_space<vmem>>, vector<8x128xf32>,
    %c0_i32_8 = arith.constant 0 : i32
    %9 = arith.cmpi eq, %arg2, %c0_i32_8 : i32
    %10 = arith.extui %9 : i1 to i32
    %c0_i32_9 = arith.constant 0 : i32
    %11 = arith.cmpi ne, %10, %c0_i32_9 : i32
    scf.if %11 {
      %c0_10 = arith.constant 0 : index
      %c0_11 = arith.constant 0 : index
      %12 = vector.load %arg8[%c0_10, %c0_11] : memref<8x128xf32, #tpu.memory_space<vmem>>, vector<8x128xf32>
      %c0_12 = arith.constant 0 : index
      %c0_13 = arith.constant 0 : index
      %13 = vector.load %arg5[%c0_12, %c0_13] : memref<1x128xf32, #tpu.memory_space<vmem>>, vector<1x128xf32>
      %14 = vector.broadcast %13 : vector<1x128xf32> to vector<8x128xf32>
      %15 = arith.addf %12, %14 : vector<8x128xf32>
      %16 = arith.negf %15 : vector<8x128xf32>
      %17 = math.exp %16 : vector<8x128xf32>
      %cst_14 = arith.constant 1.000000e+00 : f32
      %18 = vector.broadcast %cst_14 : f32 to vector<8x128xf32>
      %19 = arith.addf %18, %17 : vector<8x128xf32>
      %20 = arith.divf %18, %19 : vector<8x128xf32>
      %21 = arith.truncf %20 : vector<8x128xf32> to vector<8x128xbf16>
      %c0_15 = arith.constant 0 : index
      %c0_16 = arith.constant 0 : index
      %22 = vector.load %arg6[%c0_15, %c0_16] : memref<8x128xbf16, #tpu.memory_space<vmem>>, vector<8x128xbf16>
      tpu.vector_store %arg6[%c0_15, %c0_16], %21 {strides = array<i32>} : memref<8x128xbf16, #tpu.memory_space<vmem>>, vector<8x128xbf16>,
    } else {
    }
    return
  }
  func.func @transform_0(%arg0: i32, %arg1: i32, %arg2: i32) -> (i32, i32) {
    %c0_i32 = arith.constant 0 : i32
    return %arg0, %arg2 : i32, i32
  }
  func.func @transform_1(%arg0: i32, %arg1: i32, %arg2: i32) -> (i32, i32) {
    %c0_i32 = arith.constant 0 : i32
    return %arg2, %arg1 : i32, i32
  }
  func.func @transform_2(%arg0: i32, %arg1: i32, %arg2: i32) -> (i32, i32) {
    %c0_i32 = arith.constant 0 : i32
    %c0_i32_0 = arith.constant 0 : i32
    return %c0_i32, %arg1 : i32, i32
  }
  func.func @transform_3(%arg0: i32, %arg1: i32, %arg2: i32) -> (i32, i32) {
    %c0_i32 = arith.constant 0 : i32
    return %arg0, %arg1 : i32, i32
  }
  func.func @transform_4(%arg0: i32, %arg1: i32, %arg2: i32) -> (i32, i32, i32) {
    %c0_i32 = arith.constant 0 : i32
    %c0_i32_0 = arith.constant 0 : i32
    return %arg0, %c0_i32, %arg1 : i32, i32, i32
  }
}

</mosaic_0001>

<llo_original>
// kernel: conv_d_forward.6
$region0: #{conv_d_forward.6}
  #allocation0 [shape = 'u32[]', space=smem, size = 0x4, offset = 0x4, fixed_abs, tag = 'smem constant byte address 0x4 - core index']
  #allocation1 [shape = 'u32[144,128]{1,0:T(1,128)}', space=vmem, size = 0x12000, scoped, tag = 'internal scratch']
  #allocation2 [shape = 'f32[256,128]{1,0:T(8,128)}', space=vmem, size = 0x20000, scoped, tag = 'scratch operand']
  %s0 = inlined_call_operand.vmem [shape: bf16[512,128], index: 0, kind: input, shape index: {}]
  %s1 = inlined_call_operand.vmem [shape: bf16[128,128], index: 1, kind: input, shape index: {}]
  %s2 = inlined_call_operand.vmem [shape: f32[1,128], index: 2, kind: input, shape index: {}]
  %s3 = inlined_call_operand.vmem [shape: bf16[512,128], index: 3, kind: output, shape index: {0}]
  %s4 = inlined_call_operand.hbm [shape: f32[2,2,128], index: 4, kind: output, shape index: {1}]
  %5 = xla_tuple %s3, %s4
  %s6 = sld [smem:[#allocation0]]
  $region61: #{conv_d_forward.6} parent=0
    _
  %s8 = ssub.s32 1, %s6
  %s9 = scalar_select 0, %s8, %s6
  $region1: #{conv_d_forward.6} parent=0
    #allocation3 [shape = 'u8[2048]{0}', space=vmem, size = 0x800, scoped, tag = 'output window, operand 1']
    #allocation4 [shape = 's32[2]{0}', space=sflag, size = 0x8, scoped, tag = 'scoped memory for conv_d_forward.6']
    %10 = vsyncpa [#allocation4], 0
    %s11 = scalar_lea.sflag [#allocation4], 1
    %12 = vsyncpa %s11, 0
    loop: start=0, step=1, limit=4
    $region2: #{conv_d_forward.6} parent=1 // loop_pre_header
      _
    $region3: #{conv_d_forward.6} parent=1 // loop_header
      %s14 = sphi 0, %s18
      %p15 = scmp.ge.s32.totalorder %s14, 4
      %s21 = sphi 0, %s40
      %s22 = sphi 0, %s36
      %s23 = sphi 0, %s32
      %s24 = sphi 0, %s21
      %s25 = sphi 0, %s22
      %s26 = sphi 0, %s23
      %s27 = sphi 0, %s24
      %s28 = sphi 0, %s25
      %s29 = sphi 0, %s26
      %s45 = sphi 0, %s47
      %s48 = sphi 0, %s45
      %s49 = sphi 0, %s48
      %s65 = sphi 0, %s49
      %s73 = sphi 0, %s75
      %s76 = sphi 0, %s73
      %s77 = sphi 0, %s76
      %s93 = sphi 0, %s77
      %s99 = sphi 0, %s101
      %s102 = sphi 0, %s99
      %s103 = sphi 0, %s102
      %s119 = sphi 0, %s103
      %s127 = sphi 0, %s129
      %s130 = sphi 0, %s127
      %s131 = sphi 0, %s130
      %s147 = sphi 0, %s131
      %s155 = sphi 0, %s157
      %s158 = sphi 0, %s155
      %s159 = sphi 0, %s158
      %s175 = sphi 0, %s159
    $region4: #{conv_d_forward.6} parent=1 // loop_header_branch
      %17 = sbr.rel (%p15) target = $region8
    $region5: #{conv_d_forward.6} parent=1 // loop_body
      %s19 = ssub.s32 %s14, 1
      %s20 = ssub.s32 %s14, 2
      %s30 = sadd.s32 1, %s23
      %p31 = scmp.ge.s32.totalorder %s30, 1
      %s32 = scalar_select %p31, 0, %s30
      %s33 = sadd.s32 1, %s22
      %s34 = scalar_select %p31, %s33, %s22
      %p35 = scmp.ge.s32.totalorder %s34, 1
      %s36 = scalar_select %p35, 0, %s34
      %s37 = sadd.s32 1, %s21
      %s38 = scalar_select %p35, %s37, %s21
      %p39 = scmp.ge.s32.totalorder %s38, 2
      %s40 = scalar_select %p39, 0, %s38
      %s41 = ssub.s32 %s21, %s40
      %s42 = ssub.s32 %s23, %s32
      %s43 = sor.u32 %s41, %s42
      %p44 = scmp.eq.s32.totalorder %s43, 0
      %s46 = sadd.s32 %s45, 1
      %s47 = scalar_select %p44, %s45, %s46
      %p50 = pneg %p44
      %p51 = scmp.eq.s32.totalorder %s14, 1
      %p52 = por %p50, %p51
      %p53 = scmp.ne.s32.totalorder %s45, %s48
      %p54 = scmp.eq.s32.totalorder %s14, 0
      %p55 = por %p53, %p54
      %p56 = scmp.ne.s32.totalorder %s45, %s48
      %p57 = scmp.eq.s32.totalorder %s19, 1
      %p58 = por %p56, %p57
      %p59 = scmp.ne.s32.totalorder %s48, %s49
      %p60 = scmp.eq.s32.totalorder %s19, 0
      %p61 = por %p59, %p60
      %p62 = scmp.ne.s32.totalorder %s48, %s49
      %p63 = scmp.eq.s32.totalorder %s20, 1
      %p64 = por %p62, %p63
      %p66 = scmp.ne.s32.totalorder %s49, %s65
      %p67 = scmp.eq.s32.totalorder %s20, 0
      %p68 = por %p66, %p67
      %s69 = ssub.s32 %s23, %s32
      %s70 = ssub.s32 %s22, %s36
      %s71 = sor.u32 %s69, %s70
      %p72 = scmp.eq.s32.totalorder %s71, 0
      %s74 = sadd.s32 %s73, 1
      %s75 = scalar_select %p72, %s73, %s74
      %p78 = pneg %p72
      %p79 = scmp.eq.s32.totalorder %s14, 1
      %p80 = por %p78, %p79
      %p81 = scmp.ne.s32.totalorder %s73, %s76
      %p82 = scmp.eq.s32.totalorder %s14, 0
      %p83 = por %p81, %p82
      %p84 = scmp.ne.s32.totalorder %s73, %s76
      %p85 = scmp.eq.s32.totalorder %s19, 1
      %p86 = por %p84, %p85
      %p87 = scmp.ne.s32.totalorder %s76, %s77
      %p88 = scmp.eq.s32.totalorder %s19, 0
      %p89 = por %p87, %p88
      %p90 = scmp.ne.s32.totalorder %s76, %s77
      %p91 = scmp.eq.s32.totalorder %s20, 1
      %p92 = por %p90, %p91
      %p94 = scmp.ne.s32.totalorder %s77, %s93
      %p95 = scmp.eq.s32.totalorder %s20, 0
      %p96 = por %p94, %p95
      %s97 = ssub.s32 %s22, %s36
      %p98 = scmp.eq.s32.totalorder %s97, 0
      %s100 = sadd.s32 %s99, 1
      %s101 = scalar_select %p98, %s99, %s100
      %p104 = pneg %p98
      %p105 = scmp.eq.s32.totalorder %s14, 1
      %p106 = por %p104, %p105
      %p107 = scmp.ne.s32.totalorder %s99, %s102
      %p108 = scmp.eq.s32.totalorder %s14, 0
      %p109 = por %p107, %p108
      %p110 = scmp.ne.s32.totalorder %s99, %s102
      %p111 = scmp.eq.s32.totalorder %s19, 1
      %p112 = por %p110, %p111
      %p113 = scmp.ne.s32.totalorder %s102, %s103
      %p114 = scmp.eq.s32.totalorder %s19, 0
      %p115 = por %p113, %p114
      %p116 = scmp.ne.s32.totalorder %s102, %s103
      %p117 = scmp.eq.s32.totalorder %s20, 1
      %p118 = por %p116, %p117
      %p120 = scmp.ne.s32.totalorder %s103, %s119
      %p121 = scmp.eq.s32.totalorder %s20, 0
      %p122 = por %p120, %p121
      %s123 = ssub.s32 %s21, %s40
      %s124 = ssub.s32 %s22, %s36
      %s125 = sor.u32 %s123, %s124
      %p126 = scmp.eq.s32.totalorder %s125, 0
      %s128 = sadd.s32 %s127, 1
      %s129 = scalar_select %p126, %s127, %s128
      %p132 = pneg %p126
      %p133 = scmp.eq.s32.totalorder %s14, 1
      %p134 = por %p132, %p133
      %p135 = scmp.ne.s32.totalorder %s127, %s130
      %p136 = scmp.eq.s32.totalorder %s14, 0
      %p137 = por %p135, %p136
      %p138 = scmp.ne.s32.totalorder %s127, %s130
      %p139 = scmp.eq.s32.totalorder %s19, 1
      %p140 = por %p138, %p139
      %p141 = scmp.ne.s32.totalorder %s130, %s131
      %p142 = scmp.eq.s32.totalorder %s19, 0
      %p143 = por %p141, %p142
      %p144 = scmp.ne.s32.totalorder %s130, %s131
      %p145 = scmp.eq.s32.totalorder %s20, 1
      %p146 = por %p144, %p145
      %p148 = scmp.ne.s32.totalorder %s131, %s147
      %p149 = scmp.eq.s32.totalorder %s20, 0
      %p150 = por %p148, %p149
      %s151 = ssub.s32 %s21, %s40
      %s152 = ssub.s32 %s22, %s36
      %s153 = sor.u32 %s151, %s152
      %p154 = scmp.eq.s32.totalorder %s153, 0
      %s156 = sadd.s32 %s155, 1
      %s157 = scalar_select %p154, %s155, %s156
      %p160 = pneg %p154
      %p161 = scmp.eq.s32.totalorder %s14, 1
      %p162 = por %p160, %p161
      %p163 = scmp.ne.s32.totalorder %s155, %s158
      %p164 = scmp.eq.s32.totalorder %s14, 0
      %p165 = por %p163, %p164
      %p166 = scmp.ne.s32.totalorder %s155, %s158
      %p167 = scmp.eq.s32.totalorder %s19, 1
      %p168 = por %p166, %p167
      %p169 = scmp.ne.s32.totalorder %s158, %s159
      %p170 = scmp.eq.s32.totalorder %s19, 0
      %p171 = por %p169, %p170
      %p172 = scmp.ne.s32.totalorder %s158, %s159
      %p173 = scmp.eq.s32.totalorder %s20, 1
      %p174 = por %p172, %p173
      %p176 = scmp.ne.s32.totalorder %s159, %s175
      %p177 = scmp.eq.s32.totalorder %s20, 0
      %p178 = por %p176, %p177
      %p179 = scmp.le.s32.totalorder 1, %s14
      %p180 = scmp.lt.s32.totalorder %s14, 3
      %p181 = pnand %p179, %p180
      %p182 = pneg %p181
      // Predicated region
      $region9: #{conv_d_forward.6} parent=5 // pred_check
        _
      $region10: #{conv_d_forward.6} parent=5 // pred_check_branch
        %184 = sbr.rel (%p181) target = $region12
      $region11: #{conv_d_forward.6} parent=5 // pred_region
        %s185 = ssub.s32 %s14, 1
        // Predicated region
        $region13: #{conv_d_forward.6} parent=11 // pred_check
          %p186 = pneg %p89
        $region14: #{conv_d_forward.6} parent=11 // pred_check_branch
          %188 = sbr.rel (%p186) target = $region16
        $region15: #{conv_d_forward.6} parent=11 // pred_region
          %s189 = smul.u32 16, %s26
          %p190 = scmp.lt.s32.totalorder %s189, 15
          %s191 = scalar_select %p190, %s189, 15
          %p192 = scmp.lt.s32.totalorder %s25, 0
          %s193 = scalar_select %p192, %s25, 0
          %s194 = sadd.s32 %s193, %s191
          %s195 = smul.addr %s194, 4
          %s196 = scalar_lea.vmem %s1, %s195
          %s197 = smul.u32 16, %s26
        $region16: #{conv_d_forward.6} parent=11 // pred_fallthru
          _
        // Predicated region
        $region17: #{conv_d_forward.6} parent=11 // pred_check
          %p198 = pneg %p115
        $region18: #{conv_d_forward.6} parent=11 // pred_check_branch
          %200 = sbr.rel (%p198) target = $region20
        $region19: #{conv_d_forward.6} parent=11 // pred_region
          %p201 = scmp.lt.s32.totalorder %s25, 0
          %s202 = scalar_select %p201, %s25, 0
          %s203 = scalar_lea.vmem %s2, %s202
        $region20: #{conv_d_forward.6} parent=11 // pred_fallthru
          _
      $region12: #{conv_d_forward.6} parent=5 // pred_fallthru
        _
      %p204 = scmp.lt.s32.totalorder %s14, 2
      // Predicated region
      $region21: #{conv_d_forward.6} parent=5 // pred_check
        %p205 = pneg %p204
      $region22: #{conv_d_forward.6} parent=5 // pred_check_branch
        %207 = sbr.rel (%p205) target = $region24
      $region23: #{conv_d_forward.6} parent=5 // pred_region
        // Predicated region
        $region25: #{conv_d_forward.6} parent=23 // pred_check
          %p208 = pneg %p55
        $region26: #{conv_d_forward.6} parent=23 // pred_check_branch
          %210 = sbr.rel (%p208) target = $region28
        $region27: #{conv_d_forward.6} parent=23 // pred_region
          %s211 = smul.u32 32, %s21
          %p212 = scmp.lt.s32.totalorder %s211, 63
          %s213 = scalar_select %p212, %s211, 63
          %p214 = scmp.lt.s32.totalorder %s23, 0
          %s215 = scalar_select %p214, %s23, 0
          %s216 = sadd.s32 %s215, %s213
          %s217 = smul.addr %s216, 4
          %s218 = scalar_lea.vmem %s0, %s217
          %s219 = smul.u32 32, %s21
        $region28: #{conv_d_forward.6} parent=23 // pred_fallthru
          _
      $region24: #{conv_d_forward.6} parent=5 // pred_fallthru
        _
      %p220 = scmp.le.s32.totalorder 1, %s14
      %p221 = scmp.lt.s32.totalorder %s14, 3
      %p222 = pnand %p220, %p221
      %p223 = pneg %p222
      // Predicated region
      $region29: #{conv_d_forward.6} parent=5 // pred_check
        _
      $region30: #{conv_d_forward.6} parent=5 // pred_check_branch
        %225 = sbr.rel (%p222) target = $region32
      $region31: #{conv_d_forward.6} parent=5 // pred_region
        %s226 = ssub.s32 %s14, 1
        %s227 = smul.u32 32, %s24
        %p228 = scmp.lt.s32.totalorder %s227, 63
        %s229 = scalar_select %p228, %s227, 63
        %p230 = scmp.lt.s32.totalorder %s26, 0
        %s231 = scalar_select %p230, %s26, 0
        %s232 = sadd.s32 %s231, %s229
        %s233 = smul.addr %s232, 4
        %s234 = scalar_lea.vmem %s0, %s233
        %p235 = pneg %p61
        %p236 = pneg %p58
        %s237 = smul.u32 16, %s26
        %p238 = scmp.lt.s32.totalorder %s237, 15
        %s239 = scalar_select %p238, %s237, 15
        %p240 = scmp.lt.s32.totalorder %s25, 0
        %s241 = scalar_select %p240, %s25, 0
        %s242 = sadd.s32 %s241, %s239
        %s243 = smul.addr %s242, 4
        %s244 = scalar_lea.vmem %s1, %s243
        %p245 = pneg %p89
        %p246 = pneg %p86
        %p247 = scmp.lt.s32.totalorder %s25, 0
        %s248 = scalar_select %p247, %s25, 0
        %s249 = scalar_lea.vmem %s2, %s248
        %p250 = pneg %p115
        %p251 = pneg %p112
        %p252 = pneg %p143
        %p253 = pneg %p140
        %s254 = smul.u32 32, %s24
        %p255 = scmp.lt.s32.totalorder %s254, 63
        %s256 = scalar_select %p255, %s254, 63
        %p257 = scmp.lt.s32.totalorder %s25, 0
        %s258 = scalar_select %p257, %s25, 0
        %s259 = sadd.s32 %s258, %s256
        %s260 = smul.addr %s259, 4
        %s261 = scalar_lea.vmem %s3, %s260
        %p262 = pneg %p171
        %p263 = pneg %p168
        %s264 = sand.u32 %s158, 1
        %s265 = scalar_lea.sflag [#allocation4], %s264
        %s266 = sand.u32 %s158, 1
        %s267 = smul.addr %s266, 2
        %s268 = scalar_lea.vmem [#allocation3], %s267
        %s269 = smul.u32 32, %s24
        %p270 = scmp.lt.s32.totalorder %s269, 63
        %s271 = scalar_select %p270, %s269, 63
        %p272 = scmp.lt.s32.totalorder %s26, 0
        %s273 = scalar_select %p272, %s26, 0
        %s274 = sadd.s32 %s273, %s271
        %s275 = smul.addr %s274, 4
        %s276 = scalar_lea.vmem %s0, %s275
        %s277 = smul.u32 32, %s24
        %s278 = smul.u32 16, %s26
        %p279 = scmp.lt.s32.totalorder %s278, 15
        %s280 = scalar_select %p279, %s278, 15
        %p281 = scmp.lt.s32.totalorder %s25, 0
        %s282 = scalar_select %p281, %s25, 0
        %s283 = sadd.s32 %s282, %s280
        %s284 = smul.addr %s283, 4
        %s285 = scalar_lea.vmem %s1, %s284
        %s286 = smul.u32 16, %s26
        %p287 = scmp.lt.s32.totalorder %s25, 0
        %s288 = scalar_select %p287, %s25, 0
        %s289 = scalar_lea.vmem %s2, %s288
        %s290 = smul.u32 32, %s24
        %p291 = scmp.lt.s32.totalorder %s290, 63
        %s292 = scalar_select %p291, %s290, 63
        %p293 = scmp.lt.s32.totalorder %s25, 0
        %s294 = scalar_select %p293, %s25, 0
        %s295 = sadd.s32 %s294, %s292
        %s296 = smul.addr %s295, 4
        %s297 = scalar_lea.vmem %s3, %s296
        %s298 = smul.u32 32, %s24
        %p300 = scmp.eq.s32.totalorder %s26, 0
        // Predicated region
        $region33: #{conv_d_forward.6} parent=31 // pred_check
          %p301 = pneg %p300
        $region34: #{conv_d_forward.6} parent=31 // pred_check_branch
          %303 = sbr.rel (%p301) target = $region36
        $region35: #{conv_d_forward.6} parent=31 // pred_region
          %304 = vst [vmem:[#allocation2] sm:$0xff] 0.0
          %305 = vst [vmem:[#allocation2 + $0x8] sm:$0xff] 0.0
          %306 = vst [vmem:[#allocation2 + $0x10] sm:$0xff] 0.0
          %307 = vst [vmem:[#allocation2 + $0x18] sm:$0xff] 0.0
          %308 = vst [vmem:[#allocation2 + $0x20] sm:$0xff] 0.0
          %309 = vst [vmem:[#allocation2 + $0x28] sm:$0xff] 0.0
          %310 = vst [vmem:[#allocation2 + $0x30] sm:$0xff] 0.0
          %311 = vst [vmem:[#allocation2 + $0x38] sm:$0xff] 0.0
          %312 = vst [vmem:[#allocation2 + $0x40] sm:$0xff] 0.0
          %313 = vst [vmem:[#allocation2 + $0x48] sm:$0xff] 0.0
          %314 = vst [vmem:[#allocation2 + $0x50] sm:$0xff] 0.0
          %315 = vst [vmem:[#allocation2 + $0x58] sm:$0xff] 0.0
          %316 = vst [vmem:[#allocation2 + $0x60] sm:$0xff] 0.0
          %317 = vst [vmem:[#allocation2 + $0x68] sm:$0xff] 0.0
          %318 = vst [vmem:[#allocation2 + $0x70] sm:$0xff] 0.0
          %319 = vst [vmem:[#allocation2 + $0x78] sm:$0xff] 0.0
          %320 = vst [vmem:[#allocation2 + $0x80] sm:$0xff] 0.0
          %321 = vst [vmem:[#allocation2 + $0x88] sm:$0xff] 0.0
          %322 = vst [vmem:[#allocation2 + $0x90] sm:$0xff] 0.0
          %323 = vst [vmem:[#allocation2 + $0x98] sm:$0xff] 0.0
          %324 = vst [vmem:[#allocation2 + $0xa0] sm:$0xff] 0.0
          %325 = vst [vmem:[#allocation2 + $0xa8] sm:$0xff] 0.0
          %326 = vst [vmem:[#allocation2 + $0xb0] sm:$0xff] 0.0
          %327 = vst [vmem:[#allocation2 + $0xb8] sm:$0xff] 0.0
          %328 = vst [vmem:[#allocation2 + $0xc0] sm:$0xff] 0.0
          %329 = vst [vmem:[#allocation2 + $0xc8] sm:$0xff] 0.0
          %330 = vst [vmem:[#allocation2 + $0xd0] sm:$0xff] 0.0
          %331 = vst [vmem:[#allocation2 + $0xd8] sm:$0xff] 0.0
          %332 = vst [vmem:[#allocation2 + $0xe0] sm:$0xff] 0.0
          %333 = vst [vmem:[#allocation2 + $0xe8] sm:$0xff] 0.0
          %334 = vst [vmem:[#allocation2 + $0xf0] sm:$0xff] 0.0
          %335 = vst [vmem:[#allocation2 + $0xf8] sm:$0xff] 0.0
        $region36: #{conv_d_forward.6} parent=31 // pred_fallthru
          _
        %v336 = vld [vmem:[#allocation2] sm:$0xff]
        %v337 = vld [vmem:[#allocation2 + $0x8] sm:$0xff]
        %v338 = vld [vmem:[#allocation2 + $0x10] sm:$0xff]
        %v339 = vld [vmem:[#allocation2 + $0x18] sm:$0xff]
        %v340 = vld [vmem:[#allocation2 + $0x20] sm:$0xff]
        %v341 = vld [vmem:[#allocation2 + $0x28] sm:$0xff]
        %v342 = vld [vmem:[#allocation2 + $0x30] sm:$0xff]
        %v343 = vld [vmem:[#allocation2 + $0x38] sm:$0xff]
        %v344 = vld [vmem:[#allocation2 + $0x40] sm:$0xff]
        %v345 = vld [vmem:[#allocation2 + $0x48] sm:$0xff]
        %v346 = vld [vmem:[#allocation2 + $0x50] sm:$0xff]
        %v347 = vld [vmem:[#allocation2 + $0x58] sm:$0xff]
        %v348 = vld [vmem:[#allocation2 + $0x60] sm:$0xff]
        %v349 = vld [vmem:[#allocation2 + $0x68] sm:$0xff]
        %v350 = vld [vmem:[#allocation2 + $0x70] sm:$0xff]
        %v351 = vld [vmem:[#allocation2 + $0x78] sm:$0xff]
        %v352 = vld [vmem:[#allocation2 + $0x80] sm:$0xff]
        %v353 = vld [vmem:[#allocation2 + $0x88] sm:$0xff]
        %v354 = vld [vmem:[#allocation2 + $0x90] sm:$0xff]
        %v355 = vld [vmem:[#allocation2 + $0x98] sm:$0xff]
        %v356 = vld [vmem:[#allocation2 + $0xa0] sm:$0xff]
        %v357 = vld [vmem:[#allocation2 + $0xa8] sm:$0xff]
        %v358 = vld [vmem:[#allocation2 + $0xb0] sm:$0xff]
        %v359 = vld [vmem:[#allocation2 + $0xb8] sm:$0xff]
        %v360 = vld [vmem:[#allocation2 + $0xc0] sm:$0xff]
        %v361 = vld [vmem:[#allocation2 + $0xc8] sm:$0xff]
        %v362 = vld [vmem:[#allocation2 + $0xd0] sm:$0xff]
        %v363 = vld [vmem:[#allocation2 + $0xd8] sm:$0xff]
        %v364 = vld [vmem:[#allocation2 + $0xe0] sm:$0xff]
        %v365 = vld [vmem:[#allocation2 + $0xe8] sm:$0xff]
        %v366 = vld [vmem:[#allocation2 + $0xf0] sm:$0xff]
        %v367 = vld [vmem:[#allocation2 + $0xf8] sm:$0xff]
        %v368 = vld [vmem:[%s276] sm:$0xf]
        %v369 = vld [vmem:[%s276 + $0x4] sm:$0xf]
        %v370 = vld [vmem:[%s276 + $0x8] sm:$0xf]
        %v371 = vld [vmem:[%s276 + $0xc] sm:$0xf]
        %v372 = vld [vmem:[%s276 + $0x10] sm:$0xf]
        %v373 = vld [vmem:[%s276 + $0x14] sm:$0xf]
        %v374 = vld [vmem:[%s276 + $0x18] sm:$0xf]
        %v375 = vld [vmem:[%s276 + $0x1c] sm:$0xf]
        %v376 = vld [vmem:[%s276 + $0x20] sm:$0xf]
        %v377 = vld [vmem:[%s276 + $0x24] sm:$0xf]
        %v378 = vld [vmem:[%s276 + $0x28] sm:$0xf]
        %v379 = vld [vmem:[%s276 + $0x2c] sm:$0xf]
        %v380 = vld [vmem:[%s276 + $0x30] sm:$0xf]
        %v381 = vld [vmem:[%s276 + $0x34] sm:$0xf]
        %v382 = vld [vmem:[%s276 + $0x38] sm:$0xf]
        %v383 = vld [vmem:[%s276 + $0x3c] sm:$0xf]
        %v384 = vld [vmem:[%s276 + $0x40] sm:$0xf]
        %v385 = vld [vmem:[%s276 + $0x44] sm:$0xf]
        %v386 = vld [vmem:[%s276 + $0x48] sm:$0xf]
        %v387 = vld [vmem:[%s276 + $0x4c] sm:$0xf]
        %v388 = vld [vmem:[%s276 + $0x50] sm:$0xf]
        %v389 = vld [vmem:[%s276 + $0x54] sm:$0xf]
        %v390 = vld [vmem:[%s276 + $0x58] sm:$0xf]
        %v391 = vld [vmem:[%s276 + $0x5c] sm:$0xf]
        %v392 = vld [vmem:[%s276 + $0x60] sm:$0xf]
        %v393 = vld [vmem:[%s276 + $0x64] sm:$0xf]
        %v394 = vld [vmem:[%s276 + $0x68] sm:$0xf]
        %v395 = vld [vmem:[%s276 + $0x6c] sm:$0xf]
        %v396 = vld [vmem:[%s276 + $0x70] sm:$0xf]
        %v397 = vld [vmem:[%s276 + $0x74] sm:$0xf]
        %v398 = vld [vmem:[%s276 + $0x78] sm:$0xf]
        %v399 = vld [vmem:[%s276 + $0x7c] sm:$0xf]
        %v400 = vld [vmem:[%s285] sm:$0xf]
        %v401 = vld [vmem:[%s285 + $0x4] sm:$0xf]
        %v402 = vld [vmem:[%s285 + $0x8] sm:$0xf]
        %v403 = vld [vmem:[%s285 + $0xc] sm:$0xf]
        %v404 = vld [vmem:[%s285 + $0x10] sm:$0xf]
        %v405 = vld [vmem:[%s285 + $0x14] sm:$0xf]
        %v406 = vld [vmem:[%s285 + $0x18] sm:$0xf]
        %v407 = vld [vmem:[%s285 + $0x1c] sm:$0xf]
        %v408 = vld [vmem:[%s285 + $0x20] sm:$0xf]
        %v409 = vld [vmem:[%s285 + $0x24] sm:$0xf]
        %v410 = vld [vmem:[%s285 + $0x28] sm:$0xf]
        %v411 = vld [vmem:[%s285 + $0x2c] sm:$0xf]
        %v412 = vld [vmem:[%s285 + $0x30] sm:$0xf]
        %v413 = vld [vmem:[%s285 + $0x34] sm:$0xf]
        %v414 = vld [vmem:[%s285 + $0x38] sm:$0xf]
        %v415 = vld [vmem:[%s285 + $0x3c] sm:$0xf]
        %v448 = vunpack.c.l.b16 %v368
        %v449 = vunpack.c.l.b16 %v369
        %v450 = vunpack.c.l.b16 %v370
        %v451 = vunpack.c.l.b16 %v371
        %v452 = vunpack.c.l.b16 %v372
        %v453 = vunpack.c.l.b16 %v373
        %v454 = vunpack.c.l.b16 %v374
        %v455 = vunpack.c.l.b16 %v375
        %v456 = vunpack.c.l.b16 %v376
        %v457 = vunpack.c.l.b16 %v377
        %v458 = vunpack.c.l.b16 %v378
        %v459 = vunpack.c.l.b16 %v379
        %v460 = vunpack.c.l.b16 %v380
        %v461 = vunpack.c.l.b16 %v381
        %v462 = vunpack.c.l.b16 %v382
        %v463 = vunpack.c.l.b16 %v383
        %v464 = vunpack.c.l.b16 %v384
        %v465 = vunpack.c.l.b16 %v385
        %v466 = vunpack.c.l.b16 %v386
        %v467 = vunpack.c.l.b16 %v387
        %v468 = vunpack.c.l.b16 %v388
        %v469 = vunpack.c.l.b16 %v389
        %v470 = vunpack.c.l.b16 %v390
        %v471 = vunpack.c.l.b16 %v391
        %v472 = vunpack.c.l.b16 %v392
        %v473 = vunpack.c.l.b16 %v393
        %v474 = vunpack.c.l.b16 %v394
        %v475 = vunpack.c.l.b16 %v395
        %v476 = vunpack.c.l.b16 %v396
        %v477 = vunpack.c.l.b16 %v397
        %v478 = vunpack.c.l.b16 %v398
        %v479 = vunpack.c.l.b16 %v399
        %v480 = vpack.c.b16 %v449, %v448
        %v481 = vpack.c.b16 %v451, %v450
        %v482 = vpack.c.b16 %v453, %v452
        %v483 = vpack.c.b16 %v455, %v454
        %v484 = vpack.c.b16 %v457, %v456
        %v485 = vpack.c.b16 %v459, %v458
        %v486 = vpack.c.b16 %v461, %v460
        %v487 = vpack.c.b16 %v463, %v462
        %v488 = vpack.c.b16 %v465, %v464
        %v489 = vpack.c.b16 %v467, %v466
        %v490 = vpack.c.b16 %v469, %v468
        %v491 = vpack.c.b16 %v471, %v470
        %v492 = vpack.c.b16 %v473, %v472
        %v493 = vpack.c.b16 %v475, %v474
        %v494 = vpack.c.b16 %v477, %v476
        %v495 = vpack.c.b16 %v479, %v478
        %v528 = vunpack.c.l.b16 %v400
        %v529 = vunpack.c.l.b16 %v401
        %v530 = vunpack.c.l.b16 %v402
        %v531 = vunpack.c.l.b16 %v403
        %v532 = vunpack.c.l.b16 %v404
        %v533 = vunpack.c.l.b16 %v405
        %v534 = vunpack.c.l.b16 %v406
        %v535 = vunpack.c.l.b16 %v407
        %v536 = vunpack.c.l.b16 %v408
        %v537 = vunpack.c.l.b16 %v409
        %v538 = vunpack.c.l.b16 %v410
        %v539 = vunpack.c.l.b16 %v411
        %v540 = vunpack.c.l.b16 %v412
        %v541 = vunpack.c.l.b16 %v413
        %v542 = vunpack.c.l.b16 %v414
        %v543 = vunpack.c.l.b16 %v415
        %v544 = vpack.c.b16 %v529, %v528
        %v545 = vpack.c.b16 %v531, %v530
        %v546 = vpack.c.b16 %v533, %v532
        %v547 = vpack.c.b16 %v535, %v534
        %v548 = vpack.c.b16 %v537, %v536
        %v549 = vpack.c.b16 %v539, %v538
        %v550 = vpack.c.b16 %v541, %v540
        %v551 = vpack.c.b16 %v543, %v542
        %560 = vmatprep.subr.bf16.mxu0 0
        %561 = vmatpush1.bf16.msra.mxu0 %v544
        %562 = vmatprep.subr.bf16.mxu0 0
        %563 = vmatpush1.bf16.msra.mxu0 %v545
        %564 = vmatprep.subr.bf16.mxu0 0
        %565 = vmatpush1.bf16.msra.mxu0 %v546
        %566 = vmatprep.subr.bf16.mxu0 0
        %567 = vmatpush1.bf16.msra.mxu0 %v547
        %568 = vmatprep.subr.bf16.mxu0 0
        %569 = vmatpush1.bf16.msra.mxu0 %v548
        %570 = vmatprep.subr.bf16.mxu0 0
        %571 = vmatpush1.bf16.msra.mxu0 %v549
        %572 = vmatprep.subr.bf16.mxu0 0
        %573 = vmatpush1.bf16.msra.mxu0 %v550
        %574 = vmatprep.subr.bf16.mxu0 0
        %575 = vmatpush1.bf16.msra.mxu0 %v551
        %576 = vmatprep.subr.bf16.mxu0 0
        %577 = vmatpush1.bf16.msra.mxu0 0
        %578 = vmatprep.subr.bf16.mxu0 0
        %579 = vmatpush1.bf16.msra.mxu0 0
        %580 = vmatprep.subr.bf16.mxu0 0
        %581 = vmatpush1.bf16.msra.mxu0 0
        %582 = vmatprep.subr.bf16.mxu0 0
        %583 = vmatpush1.bf16.msra.mxu0 0
        %584 = vmatprep.subr.bf16.mxu0 0
        %585 = vmatpush1.bf16.msra.mxu0 0
        %586 = vmatprep.subr.bf16.mxu0 0
        %587 = vmatpush1.bf16.msra.mxu0 0
        %588 = vmatprep.subr.bf16.mxu0 0
        %589 = vmatpush1.bf16.msra.mxu0 0
        %590 = vmatprep.subr.bf16.mxu0 0
        %591 = vmatpush1.bf16.msra.mxu0 0
        %592 = vmatprep.mubr.bf16.mxu0 0
        %593 = vmatmul.mubr.bf16.gmra.mrb[0].mxu0 %v480
        %v594 = vpop.f32.mrb[0].mxu0
        %v595 = vadd.f32 0.0, %v594
        %v596 = vpop.f32.mrb[0].mxu0
        %v597 = vpop.f32.mrb[0].mxu0
        %v598 = vadd.f32 0.0, %v597
        %v599 = vpop.f32.mrb[0].mxu0
        %600 = vmatprep.mubr.bf16.mxu0 0
        %601 = vmatmul.mubr.bf16.gmra.mrb[0].mxu0 %v481
        %v602 = vpop.f32.mrb[0].mxu0
        %v603 = vadd.f32 0.0, %v602
        %v604 = vpop.f32.mrb[0].mxu0
        %v605 = vpop.f32.mrb[0].mxu0
        %v606 = vadd.f32 0.0, %v605
        %v607 = vpop.f32.mrb[0].mxu0
        %608 = vmatprep.mubr.bf16.mxu0 0
        %609 = vmatmul.mubr.bf16.gmra.mrb[0].mxu0 %v482
        %v610 = vpop.f32.mrb[0].mxu0
        %v611 = vadd.f32 0.0, %v610
        %v612 = vpop.f32.mrb[0].mxu0
        %v613 = vpop.f32.mrb[0].mxu0
        %v614 = vadd.f32 0.0, %v613
        %v615 = vpop.f32.mrb[0].mxu0
        %616 = vmatprep.mubr.bf16.mxu0 0
        %617 = vmatmul.mubr.bf16.gmra.mrb[0].mxu0 %v483
        %v618 = vpop.f32.mrb[0].mxu0
        %v619 = vadd.f32 0.0, %v618
        %v620 = vpop.f32.mrb[0].mxu0
        %v621 = vpop.f32.mrb[0].mxu0
        %v622 = vadd.f32 0.0, %v621
        %v623 = vpop.f32.mrb[0].mxu0
        %624 = vmatprep.mubr.bf16.mxu0 0
        %625 = vmatmul.mubr.bf16.gmra.mrb[0].mxu0 %v484
        %v626 = vpop.f32.mrb[0].mxu0
        %v627 = vadd.f32 0.0, %v626
        %v628 = vpop.f32.mrb[0].mxu0
        %v629 = vpop.f32.mrb[0].mxu0
        %v630 = vadd.f32 0.0, %v629
        %v631 = vpop.f32.mrb[0].mxu0
        %632 = vmatprep.mubr.bf16.mxu0 0
        %633 = vmatmul.mubr.bf16.gmra.mrb[0].mxu0 %v485
        %v634 = vpop.f32.mrb[0].mxu0
        %v635 = vadd.f32 0.0, %v634
        %v636 = vpop.f32.mrb[0].mxu0
        %v637 = vpop.f32.mrb[0].mxu0
        %v638 = vadd.f32 0.0, %v637
        %v639 = vpop.f32.mrb[0].mxu0
        %640 = vmatprep.mubr.bf16.mxu0 0
        %641 = vmatmul.mubr.bf16.gmra.mrb[0].mxu0 %v486
        %v642 = vpop.f32.mrb[0].mxu0
        %v643 = vadd.f32 0.0, %v642
        %v644 = vpop.f32.mrb[0].mxu0
        %v645 = vpop.f32.mrb[0].mxu0
        %v646 = vadd.f32 0.0, %v645
        %v647 = vpop.f32.mrb[0].mxu0
        %648 = vmatprep.mubr.bf16.mxu0 0
        %649 = vmatmul.mubr.bf16.gmra.mrb[0].mxu0 %v487
        %v650 = vpop.f32.mrb[0].mxu0
        %v651 = vadd.f32 0.0, %v650
        %v652 = vpop.f32.mrb[0].mxu0
        %v653 = vpop.f32.mrb[0].mxu0
        %v654 = vadd.f32 0.0, %v653
        %v655 = vpop.f32.mrb[0].mxu0
        %656 = vmatprep.mubr.bf16.mxu0 0
        %657 = vmatmul.mubr.bf16.gmra.mrb[0].mxu0 %v488
        %v658 = vpop.f32.mrb[0].mxu0
        %v659 = vadd.f32 0.0, %v658
        %v660 = vpop.f32.mrb[0].mxu0
        %v661 = vpop.f32.mrb[0].mxu0
        %v662 = vadd.f32 0.0, %v661
        %v663 = vpop.f32.mrb[0].mxu0
        %664 = vmatprep.mubr.bf16.mxu0 0
        %665 = vmatmul.mubr.bf16.gmra.mrb[0].mxu0 %v489
        %v666 = vpop.f32.mrb[0].mxu0
        %v667 = vadd.f32 0.0, %v666
        %v668 = vpop.f32.mrb[0].mxu0
        %v669 = vpop.f32.mrb[0].mxu0
        %v670 = vadd.f32 0.0, %v669
        %v671 = vpop.f32.mrb[0].mxu0
        %672 = vmatprep.mubr.bf16.mxu0 0
        %673 = vmatmul.mubr.bf16.gmra.mrb[0].mxu0 %v490
        %v674 = vpop.f32.mrb[0].mxu0
        %v675 = vadd.f32 0.0, %v674
        %v676 = vpop.f32.mrb[0].mxu0
        %v677 = vpop.f32.mrb[0].mxu0
        %v678 = vadd.f32 0.0, %v677
        %v679 = vpop.f32.mrb[0].mxu0
        %680 = vmatprep.mubr.bf16.mxu0 0
        %681 = vmatmul.mubr.bf16.gmra.mrb[0].mxu0 %v491
        %v682 = vpop.f32.mrb[0].mxu0
        %v683 = vadd.f32 0.0, %v682
        %v684 = vpop.f32.mrb[0].mxu0
        %v685 = vpop.f32.mrb[0].mxu0
        %v686 = vadd.f32 0.0, %v685
        %v687 = vpop.f32.mrb[0].mxu0
        %688 = vmatprep.mubr.bf16.mxu0 0
        %689 = vmatmul.mubr.bf16.gmra.mrb[0].mxu0 %v492
        %v690 = vpop.f32.mrb[0].mxu0
        %v691 = vadd.f32 0.0, %v690
        %v692 = vpop.f32.mrb[0].mxu0
        %v693 = vpop.f32.mrb[0].mxu0
        %v694 = vadd.f32 0.0, %v693
        %v695 = vpop.f32.mrb[0].mxu0
        %696 = vmatprep.mubr.bf16.mxu0 0
        %697 = vmatmul.mubr.bf16.gmra.mrb[0].mxu0 %v493
        %v698 = vpop.f32.mrb[0].mxu0
        %v699 = vadd.f32 0.0, %v698
        %v700 = vpop.f32.mrb[0].mxu0
        %v701 = vpop.f32.mrb[0].mxu0
        %v702 = vadd.f32 0.0, %v701
        %v703 = vpop.f32.mrb[0].mxu0
        %704 = vmatprep.mubr.bf16.mxu0 0
        %705 = vmatmul.mubr.bf16.gmra.mrb[0].mxu0 %v494
        %v706 = vpop.f32.mrb[0].mxu0
        %v707 = vadd.f32 0.0, %v706
        %v708 = vpop.f32.mrb[0].mxu0
        %v709 = vpop.f32.mrb[0].mxu0
        %v710 = vadd.f32 0.0, %v709
        %v711 = vpop.f32.mrb[0].mxu0
        %712 = vmatprep.mubr.bf16.mxu0 0
        %713 = vmatmul.mubr.bf16.gmra.mrb[0].mxu0 %v495
        %v714 = vpop.f32.mrb[0].mxu0
        %v715 = vadd.f32 0.0, %v714
        %v716 = vpop.f32.mrb[0].mxu0
        %v717 = vpop.f32.mrb[0].mxu0
        %v718 = vadd.f32 0.0, %v717
        %v719 = vpop.f32.mrb[0].mxu0
        %720 = vdwg.mxu0
        %v721 = vadd.f32 %v336, %v595
        %v722 = vadd.f32 %v337, %v598
        %v723 = vadd.f32 %v338, %v603
        %v724 = vadd.f32 %v339, %v606
        %v725 = vadd.f32 %v340, %v611
        %v726 = vadd.f32 %v341, %v614
        %v727 = vadd.f32 %v342, %v619
        %v728 = vadd.f32 %v343, %v622
        %v729 = vadd.f32 %v344, %v627
        %v730 = vadd.f32 %v345, %v630
        %v731 = vadd.f32 %v346, %v635
        %v732 = vadd.f32 %v347, %v638
        %v733 = vadd.f32 %v348, %v643
        %v734 = vadd.f32 %v349, %v646
        %v735 = vadd.f32 %v350, %v651
        %v736 = vadd.f32 %v351, %v654
        %v737 = vadd.f32 %v352, %v659
        %v738 = vadd.f32 %v353, %v662
        %v739 = vadd.f32 %v354, %v667
        %v740 = vadd.f32 %v355, %v670
        %v741 = vadd.f32 %v356, %v675
        %v742 = vadd.f32 %v357, %v678
        %v743 = vadd.f32 %v358, %v683
        %v744 = vadd.f32 %v359, %v686
        %v745 = vadd.f32 %v360, %v691
        %v746 = vadd.f32 %v361, %v694
        %v747 = vadd.f32 %v362, %v699
        %v748 = vadd.f32 %v363, %v702
        %v749 = vadd.f32 %v364, %v707
        %v750 = vadd.f32 %v365, %v710
        %v751 = vadd.f32 %v366, %v715
        %v752 = vadd.f32 %v367, %v718
        %753 = vst [vmem:[#allocation2] sm:$0xff] %v721
        %754 = vst [vmem:[#allocation2 + $0x8] sm:$0xff] %v722
        %755 = vst [vmem:[#allocation2 + $0x10] sm:$0xff] %v723
        %756 = vst [vmem:[#allocation2 + $0x18] sm:$0xff] %v724
        %757 = vst [vmem:[#allocation2 + $0x20] sm:$0xff] %v725
        %758 = vst [vmem:[#allocation2 + $0x28] sm:$0xff] %v726
        %759 = vst [vmem:[#allocation2 + $0x30] sm:$0xff] %v727
        %760 = vst [vmem:[#allocation2 + $0x38] sm:$0xff] %v728
        %761 = vst [vmem:[#allocation2 + $0x40] sm:$0xff] %v729
        %762 = vst [vmem:[#allocation2 + $0x48] sm:$0xff] %v730
        %763 = vst [vmem:[#allocation2 + $0x50] sm:$0xff] %v731
        %764 = vst [vmem:[#allocation2 + $0x58] sm:$0xff] %v732
        %765 = vst [vmem:[#allocation2 + $0x60] sm:$0xff] %v733
        %766 = vst [vmem:[#allocation2 + $0x68] sm:$0xff] %v734
        %767 = vst [vmem:[#allocation2 + $0x70] sm:$0xff] %v735
        %768 = vst [vmem:[#allocation2 + $0x78] sm:$0xff] %v736
        %769 = vst [vmem:[#allocation2 + $0x80] sm:$0xff] %v737
        %770 = vst [vmem:[#allocation2 + $0x88] sm:$0xff] %v738
        %771 = vst [vmem:[#allocation2 + $0x90] sm:$0xff] %v739
        %772 = vst [vmem:[#allocation2 + $0x98] sm:$0xff] %v740
        %773 = vst [vmem:[#allocation2 + $0xa0] sm:$0xff] %v741
        %774 = vst [vmem:[#allocation2 + $0xa8] sm:$0xff] %v742
        %775 = vst [vmem:[#allocation2 + $0xb0] sm:$0xff] %v743
        %776 = vst [vmem:[#allocation2 + $0xb8] sm:$0xff] %v744
        %777 = vst [vmem:[#allocation2 + $0xc0] sm:$0xff] %v745
        %778 = vst [vmem:[#allocation2 + $0xc8] sm:$0xff] %v746
        %779 = vst [vmem:[#allocation2 + $0xd0] sm:$0xff] %v747
        %780 = vst [vmem:[#allocation2 + $0xd8] sm:$0xff] %v748
        %781 = vst [vmem:[#allocation2 + $0xe0] sm:$0xff] %v749
        %782 = vst [vmem:[#allocation2 + $0xe8] sm:$0xff] %v750
        %783 = vst [vmem:[#allocation2 + $0xf0] sm:$0xff] %v751
        %784 = vst [vmem:[#allocation2 + $0xf8] sm:$0xff] %v752
        // Predicated region
        $region37: #{conv_d_forward.6} parent=31 // pred_check
          %p785 = pneg %p300
        $region38: #{conv_d_forward.6} parent=31 // pred_check_branch
          %787 = sbr.rel (%p785) target = $region40
        $region39: #{conv_d_forward.6} parent=31 // pred_region
          %v788 = vld [vmem:[#allocation2] sm:$0xff]
          %v789 = vld [vmem:[#allocation2 + $0x8] sm:$0xff]
          %v790 = vld [vmem:[#allocation2 + $0x10] sm:$0xff]
          %v791 = vld [vmem:[#allocation2 + $0x18] sm:$0xff]
          %v792 = vld [vmem:[#allocation2 + $0x20] sm:$0xff]
          %v793 = vld [vmem:[#allocation2 + $0x28] sm:$0xff]
          %v794 = vld [vmem:[#allocation2 + $0x30] sm:$0xff]
          %v795 = vld [vmem:[#allocation2 + $0x38] sm:$0xff]
          %v796 = vld [vmem:[#allocation2 + $0x40] sm:$0xff]
          %v797 = vld [vmem:[#allocation2 + $0x48] sm:$0xff]
          %v798 = vld [vmem:[#allocation2 + $0x50] sm:$0xff]
          %v799 = vld [vmem:[#allocation2 + $0x58] sm:$0xff]
          %v800 = vld [vmem:[#allocation2 + $0x60] sm:$0xff]
          %v801 = vld [vmem:[#allocation2 + $0x68] sm:$0xff]
          %v802 = vld [vmem:[#allocation2 + $0x70] sm:$0xff]
          %v803 = vld [vmem:[#allocation2 + $0x78] sm:$0xff]
          %v804 = vld [vmem:[#allocation2 + $0x80] sm:$0xff]
          %v805 = vld [vmem:[#allocation2 + $0x88] sm:$0xff]
          %v806 = vld [vmem:[#allocation2 + $0x90] sm:$0xff]
          %v807 = vld [vmem:[#allocation2 + $0x98] sm:$0xff]
          %v808 = vld [vmem:[#allocation2 + $0xa0] sm:$0xff]
          %v809 = vld [vmem:[#allocation2 + $0xa8] sm:$0xff]
          %v810 = vld [vmem:[#allocation2 + $0xb0] sm:$0xff]
          %v811 = vld [vmem:[#allocation2 + $0xb8] sm:$0xff]
          %v812 = vld [vmem:[#allocation2 + $0xc0] sm:$0xff]
          %v813 = vld [vmem:[#allocation2 + $0xc8] sm:$0xff]
          %v814 = vld [vmem:[#allocation2 + $0xd0] sm:$0xff]
          %v815 = vld [vmem:[#allocation2 + $0xd8] sm:$0xff]
          %v816 = vld [vmem:[#allocation2 + $0xe0] sm:$0xff]
          %v817 = vld [vmem:[#allocation2 + $0xe8] sm:$0xff]
          %v818 = vld [vmem:[#allocation2 + $0xf0] sm:$0xff]
          %v819 = vld [vmem:[#allocation2 + $0xf8] sm:$0xff]
          %v820 = vld [vmem:[%s289] sm:$0x1]
          %v822 = vlaneseq
          %v823 = vshrl.u32 %v822, 7
          %v824 = vsub.s32 0, %v823
          %v825 = vrot.slane %v820, %v824
          %v827 = vadd.f32 %v788, %v825
          %v828 = vadd.f32 %v789, %v825
          %v829 = vadd.f32 %v790, %v825
          %v830 = vadd.f32 %v791, %v825
          %v831 = vadd.f32 %v792, %v825
          %v832 = vadd.f32 %v793, %v825
          %v833 = vadd.f32 %v794, %v825
          %v834 = vadd.f32 %v795, %v825
          %v835 = vadd.f32 %v796, %v825
          %v836 = vadd.f32 %v797, %v825
          %v837 = vadd.f32 %v798, %v825
          %v838 = vadd.f32 %v799, %v825
          %v839 = vadd.f32 %v800, %v825
          %v840 = vadd.f32 %v801, %v825
          %v841 = vadd.f32 %v802, %v825
          %v842 = vadd.f32 %v803, %v825
          %v843 = vadd.f32 %v804, %v825
          %v844 = vadd.f32 %v805, %v825
          %v845 = vadd.f32 %v806, %v825
          %v846 = vadd.f32 %v807, %v825
          %v847 = vadd.f32 %v808, %v825
          %v848 = vadd.f32 %v809, %v825
          %v849 = vadd.f32 %v810, %v825
          %v850 = vadd.f32 %v811, %v825
          %v851 = vadd.f32 %v812, %v825
          %v852 = vadd.f32 %v813, %v825
          %v853 = vadd.f32 %v814, %v825
          %v854 = vadd.f32 %v815, %v825
          %v855 = vadd.f32 %v816, %v825
          %v856 = vadd.f32 %v817, %v825
          %v857 = vadd.f32 %v818, %v825
          %v858 = vadd.f32 %v819, %v825
          %vm859 = vcmp.ge.f32.partialorder %v827, 0.0
          %vm860 = vcmp.ge.f32.partialorder %v828, 0.0
          %vm861 = vcmp.ge.f32.partialorder %v829, 0.0
          %vm862 = vcmp.ge.f32.partialorder %v830, 0.0
          %vm863 = vcmp.ge.f32.partialorder %v831, 0.0
          %vm864 = vcmp.ge.f32.partialorder %v832, 0.0
          %vm865 = vcmp.ge.f32.partialorder %v833, 0.0
          %vm866 = vcmp.ge.f32.partialorder %v834, 0.0
          %vm867 = vcmp.ge.f32.partialorder %v835, 0.0
          %vm868 = vcmp.ge.f32.partialorder %v836, 0.0
          %vm869 = vcmp.ge.f32.partialorder %v837, 0.0
          %vm870 = vcmp.ge.f32.partialorder %v838, 0.0
          %vm871 = vcmp.ge.f32.partialorder %v839, 0.0
          %vm872 = vcmp.ge.f32.partialorder %v840, 0.0
          %vm873 = vcmp.ge.f32.partialorder %v841, 0.0
          %vm874 = vcmp.ge.f32.partialorder %v842, 0.0
          %vm875 = vcmp.ge.f32.partialorder %v843, 0.0
          %vm876 = vcmp.ge.f32.partialorder %v844, 0.0
          %vm877 = vcmp.ge.f32.partialorder %v845, 0.0
          %vm878 = vcmp.ge.f32.partialorder %v846, 0.0
          %vm879 = vcmp.ge.f32.partialorder %v847, 0.0
          %vm880 = vcmp.ge.f32.partialorder %v848, 0.0
          %vm881 = vcmp.ge.f32.partialorder %v849, 0.0
          %vm882 = vcmp.ge.f32.partialorder %v850, 0.0
          %vm883 = vcmp.ge.f32.partialorder %v851, 0.0
          %vm884 = vcmp.ge.f32.partialorder %v852, 0.0
          %vm885 = vcmp.ge.f32.partialorder %v853, 0.0
          %vm886 = vcmp.ge.f32.partialorder %v854, 0.0
          %vm887 = vcmp.ge.f32.partialorder %v855, 0.0
          %vm888 = vcmp.ge.f32.partialorder %v856, 0.0
          %vm889 = vcmp.ge.f32.partialorder %v857, 0.0
          %vm890 = vcmp.ge.f32.partialorder %v858, 0.0
          %v891 = vmul.f32 %v827, 0.2
          %v892 = vmul.f32 %v828, 0.2
          %v893 = vmul.f32 %v829, 0.2
          %v894 = vmul.f32 %v830, 0.2
          %v895 = vmul.f32 %v831, 0.2
          %v896 = vmul.f32 %v832, 0.2
          %v897 = vmul.f32 %v833, 0.2
          %v898 = vmul.f32 %v834, 0.2
          %v899 = vmul.f32 %v835, 0.2
          %v900 = vmul.f32 %v836, 0.2
          %v901 = vmul.f32 %v837, 0.2
          %v902 = vmul.f32 %v838, 0.2
          %v903 = vmul.f32 %v839, 0.2
          %v904 = vmul.f32 %v840, 0.2
          %v905 = vmul.f32 %v841, 0.2
          %v906 = vmul.f32 %v842, 0.2
          %v907 = vmul.f32 %v843, 0.2
          %v908 = vmul.f32 %v844, 0.2
          %v909 = vmul.f32 %v845, 0.2
          %v910 = vmul.f32 %v846, 0.2
          %v911 = vmul.f32 %v847, 0.2
          %v912 = vmul.f32 %v848, 0.2
          %v913 = vmul.f32 %v849, 0.2
          %v914 = vmul.f32 %v850, 0.2
          %v915 = vmul.f32 %v851, 0.2
          %v916 = vmul.f32 %v852, 0.2
          %v917 = vmul.f32 %v853, 0.2
          %v918 = vmul.f32 %v854, 0.2
          %v919 = vmul.f32 %v855, 0.2
          %v920 = vmul.f32 %v856, 0.2
          %v921 = vmul.f32 %v857, 0.2
          %v922 = vmul.f32 %v858, 0.2
          %v923 = vsel %vm859, %v827, %v891
          %v924 = vsel %vm860, %v828, %v892
          %v925 = vsel %vm861, %v829, %v893
          %v926 = vsel %vm862, %v830, %v894
          %v927 = vsel %vm863, %v831, %v895
          %v928 = vsel %vm864, %v832, %v896
          %v929 = vsel %vm865, %v833, %v897
          %v930 = vsel %vm866, %v834, %v898
          %v931 = vsel %vm867, %v835, %v899
          %v932 = vsel %vm868, %v836, %v900
          %v933 = vsel %vm869, %v837, %v901
          %v934 = vsel %vm870, %v838, %v902
          %v935 = vsel %vm871, %v839, %v903
          %v936 = vsel %vm872, %v840, %v904
          %v937 = vsel %vm873, %v841, %v905
          %v938 = vsel %vm874, %v842, %v906
          %v939 = vsel %vm875, %v843, %v907
          %v940 = vsel %vm876, %v844, %v908
          %v941 = vsel %vm877, %v845, %v909
          %v942 = vsel %vm878, %v846, %v910
          %v943 = vsel %vm879, %v847, %v911
          %v944 = vsel %vm880, %v848, %v912
          %v945 = vsel %vm881, %v849, %v913
          %v946 = vsel %vm882, %v850, %v914
          %v947 = vsel %vm883, %v851, %v915
          %v948 = vsel %vm884, %v852, %v916
          %v949 = vsel %vm885, %v853, %v917
          %v950 = vsel %vm886, %v854, %v918
          %v951 = vsel %vm887, %v855, %v919
          %v952 = vsel %vm888, %v856, %v920
          %v953 = vsel %vm889, %v857, %v921
          %v954 = vsel %vm890, %v858, %v922
          %v955 = vpack.c.bf16 %v924, %v923
          %v956 = vpack.c.bf16 %v926, %v925
          %v957 = vpack.c.bf16 %v928, %v927
          %v958 = vpack.c.bf16 %v930, %v929
          %v959 = vpack.c.bf16 %v932, %v931
          %v960 = vpack.c.bf16 %v934, %v933
          %v961 = vpack.c.bf16 %v936, %v935
          %v962 = vpack.c.bf16 %v938, %v937
          %v963 = vpack.c.bf16 %v940, %v939
          %v964 = vpack.c.bf16 %v942, %v941
          %v965 = vpack.c.bf16 %v944, %v943
          %v966 = vpack.c.bf16 %v946, %v945
          %v967 = vpack.c.bf16 %v948, %v947
          %v968 = vpack.c.bf16 %v950, %v949
          %v969 = vpack.c.bf16 %v952, %v951
          %v970 = vpack.c.bf16 %v954, %v953
          %v987 = vunpack.c.l.b16 %v955
          %v988 = vunpack.c.h.b16 %v955
          %v989 = vunpack.c.l.b16 %v956
          %v990 = vunpack.c.h.b16 %v956
          %v991 = vunpack.c.l.b16 %v957
          %v992 = vunpack.c.h.b16 %v957
          %v993 = vunpack.c.l.b16 %v958
          %v994 = vunpack.c.h.b16 %v958
          %v995 = vunpack.c.l.b16 %v959
          %v996 = vunpack.c.h.b16 %v959
          %v997 = vunpack.c.l.b16 %v960
          %v998 = vunpack.c.h.b16 %v960
          %v999 = vunpack.c.l.b16 %v961
          %v1000 = vunpack.c.h.b16 %v961
          %v1001 = vunpack.c.l.b16 %v962
          %v1002 = vunpack.c.h.b16 %v962
          %v1003 = vunpack.c.l.b16 %v963
          %v1004 = vunpack.c.h.b16 %v963
          %v1005 = vunpack.c.l.b16 %v964
          %v1006 = vunpack.c.h.b16 %v964
          %v1007 = vunpack.c.l.b16 %v965
          %v1008 = vunpack.c.h.b16 %v965
          %v1009 = vunpack.c.l.b16 %v966
          %v1010 = vunpack.c.h.b16 %v966
          %v1011 = vunpack.c.l.b16 %v967
          %v1012 = vunpack.c.h.b16 %v967
          %v1013 = vunpack.c.l.b16 %v968
          %v1014 = vunpack.c.h.b16 %v968
          %v1015 = vunpack.c.l.b16 %v969
          %v1016 = vunpack.c.h.b16 %v969
          %v1017 = vunpack.c.l.b16 %v970
          %v1018 = vunpack.c.h.b16 %v970
          %v1019 = vpack.c.b16 %v987, %v987
          %v1020 = vpack.c.b16 %v988, %v988
          %v1021 = vpack.c.b16 %v989, %v989
          %v1022 = vpack.c.b16 %v990, %v990
          %v1023 = vpack.c.b16 %v991, %v991
          %v1024 = vpack.c.b16 %v992, %v992
          %v1025 = vpack.c.b16 %v993, %v993
          %v1026 = vpack.c.b16 %v994, %v994
          %v1027 = vpack.c.b16 %v995, %v995
          %v1028 = vpack.c.b16 %v996, %v996
          %v1029 = vpack.c.b16 %v997, %v997
          %v1030 = vpack.c.b16 %v998, %v998
          %v1031 = vpack.c.b16 %v999, %v999
          %v1032 = vpack.c.b16 %v1000, %v1000
          %v1033 = vpack.c.b16 %v1001, %v1001
          %v1034 = vpack.c.b16 %v1002, %v1002
          %v1035 = vpack.c.b16 %v1003, %v1003
          %v1036 = vpack.c.b16 %v1004, %v1004
          %v1037 = vpack.c.b16 %v1005, %v1005
          %v1038 = vpack.c.b16 %v1006, %v1006
          %v1039 = vpack.c.b16 %v1007, %v1007
          %v1040 = vpack.c.b16 %v1008, %v1008
          %v1041 = vpack.c.b16 %v1009, %v1009
          %v1042 = vpack.c.b16 %v1010, %v1010
          %v1043 = vpack.c.b16 %v1011, %v1011
          %v1044 = vpack.c.b16 %v1012, %v1012
          %v1045 = vpack.c.b16 %v1013, %v1013
          %v1046 = vpack.c.b16 %v1014, %v1014
          %v1047 = vpack.c.b16 %v1015, %v1015
          %v1048 = vpack.c.b16 %v1016, %v1016
          %v1049 = vpack.c.b16 %v1017, %v1017
          %v1050 = vpack.c.b16 %v1018, %v1018
          %1083 = vst [vmem:[%s297] sm:$0xf] %v1019
          %1084 = vst [vmem:[%s297 + $0x4] sm:$0xf] %v1020
          %1085 = vst [vmem:[%s297 + $0x8] sm:$0xf] %v1021
          %1086 = vst [vmem:[%s297 + $0xc] sm:$0xf] %v1022
          %1087 = vst [vmem:[%s297 + $0x10] sm:$0xf] %v1023
          %1088 = vst [vmem:[%s297 + $0x14] sm:$0xf] %v1024
          %1089 = vst [vmem:[%s297 + $0x18] sm:$0xf] %v1025
          %1090 = vst [vmem:[%s297 + $0x1c] sm:$0xf] %v1026
          %1091 = vst [vmem:[%s297 + $0x20] sm:$0xf] %v1027
          %1092 = vst [vmem:[%s297 + $0x24] sm:$0xf] %v1028
          %1093 = vst [vmem:[%s297 + $0x28] sm:$0xf] %v1029
          %1094 = vst [vmem:[%s297 + $0x2c] sm:$0xf] %v1030
          %1095 = vst [vmem:[%s297 + $0x30] sm:$0xf] %v1031
          %1096 = vst [vmem:[%s297 + $0x34] sm:$0xf] %v1032
          %1097 = vst [vmem:[%s297 + $0x38] sm:$0xf] %v1033
          %1098 = vst [vmem:[%s297 + $0x3c] sm:$0xf] %v1034
          %1099 = vst [vmem:[%s297 + $0x40] sm:$0xf] %v1035
          %1100 = vst [vmem:[%s297 + $0x44] sm:$0xf] %v1036
          %1101 = vst [vmem:[%s297 + $0x48] sm:$0xf] %v1037
          %1102 = vst [vmem:[%s297 + $0x4c] sm:$0xf] %v1038
          %1103 = vst [vmem:[%s297 + $0x50] sm:$0xf] %v1039
          %1104 = vst [vmem:[%s297 + $0x54] sm:$0xf] %v1040
          %1105 = vst [vmem:[%s297 + $0x58] sm:$0xf] %v1041
          %1106 = vst [vmem:[%s297 + $0x5c] sm:$0xf] %v1042
          %1107 = vst [vmem:[%s297 + $0x60] sm:$0xf] %v1043
          %1108 = vst [vmem:[%s297 + $0x64] sm:$0xf] %v1044
          %1109 = vst [vmem:[%s297 + $0x68] sm:$0xf] %v1045
          %1110 = vst [vmem:[%s297 + $0x6c] sm:$0xf] %v1046
          %1111 = vst [vmem:[%s297 + $0x70] sm:$0xf] %v1047
          %1112 = vst [vmem:[%s297 + $0x74] sm:$0xf] %v1048
          %1113 = vst [vmem:[%s297 + $0x78] sm:$0xf] %v1049
          %1114 = vst [vmem:[%s297 + $0x7c] sm:$0xf] %v1050
        $region40: #{conv_d_forward.6} parent=31 // pred_fallthru
          _
        %s1115 = smul.u32 32, %s24
        %p1116 = scmp.lt.s32.totalorder %s1115, 63
        %s1117 = scalar_select %p1116, %s1115, 63
        %p1118 = scmp.lt.s32.totalorder %s25, 0
        %s1119 = scalar_select %p1118, %s25, 0
        %s1120 = sadd.s32 %s1119, %s1117
        %s1121 = smul.addr %s1120, 4
        %s1122 = scalar_lea.vmem %s3, %s1121
        %s1123 = sand.u32 %s158, 1
        %s1124 = scalar_lea.sflag [#allocation4], %s1123
        %s1125 = sand.u32 %s158, 1
        %s1126 = smul.addr %s1125, 2
        %s1127 = scalar_lea.vmem [#allocation3], %s1126
        // Predicated region
        $region41: #{conv_d_forward.6} parent=31 // pred_check
          %p1128 = pneg %p140
        $region42: #{conv_d_forward.6} parent=31 // pred_check_branch
          %1130 = sbr.rel (%p1128) target = $region44
        $region43: #{conv_d_forward.6} parent=31 // pred_region
          %s1131 = smul.u32 32, %s24
        $region44: #{conv_d_forward.6} parent=31 // pred_fallthru
          _
        // Predicated region
        $region45: #{conv_d_forward.6} parent=31 // pred_check
          %p1132 = pneg %p168
        $region46: #{conv_d_forward.6} parent=31 // pred_check_branch
          %1134 = sbr.rel (%p1132) target = $region48
        $region47: #{conv_d_forward.6} parent=31 // pred_region
          %s1136 = ssub.s32 32, 32
          %1137 = vsyncadd %s1124, %s1136
          %s1138 = sadd.s32 %s25, %s24
          %s1139 = smul.addr %s1138, 32
          %s1140 = scalar_lea.hbm %s4, %s1139
          %s1142 = sshll.u32 %s1127, 4
          %s1143 = int_to_ptr.vmem [resolvable:$true] %s1142
          %1145 = dma.vmem_to_hbm [thread:$0]  %s1143, 32, %s1140, %s1124
        $region48: #{conv_d_forward.6} parent=31 // pred_fallthru
          _
      $region32: #{conv_d_forward.6} parent=5 // pred_fallthru
        _
      %p1146 = scmp.le.s32.totalorder 2, %s14
      // Predicated region
      $region49: #{conv_d_forward.6} parent=5 // pred_check
        %p1147 = pneg %p1146
      $region50: #{conv_d_forward.6} parent=5 // pred_check_branch
        %1149 = sbr.rel (%p1147) target = $region52
      $region51: #{conv_d_forward.6} parent=5 // pred_region
        %s1150 = ssub.s32 %s14, 2
        // Predicated region
        $region53: #{conv_d_forward.6} parent=51 // pred_check
          %p1151 = pneg %p146
        $region54: #{conv_d_forward.6} parent=51 // pred_check_branch
          %1153 = sbr.rel (%p1151) target = $region56
        $region55: #{conv_d_forward.6} parent=51 // pred_region
          %s1154 = smul.u32 32, %s27
          %p1155 = scmp.lt.s32.totalorder %s1154, 63
          %s1156 = scalar_select %p1155, %s1154, 63
          %p1157 = scmp.lt.s32.totalorder %s28, 0
          %s1158 = scalar_select %p1157, %s28, 0
          %s1159 = sadd.s32 %s1158, %s1156
          %s1160 = smul.addr %s1159, 4
          %s1161 = scalar_lea.vmem %s3, %s1160
        $region56: #{conv_d_forward.6} parent=51 // pred_fallthru
          _
        // Predicated region
        $region57: #{conv_d_forward.6} parent=51 // pred_check
          %p1162 = pneg %p174
        $region58: #{conv_d_forward.6} parent=51 // pred_check_branch
          %1164 = sbr.rel (%p1162) target = $region60
        $region59: #{conv_d_forward.6} parent=51 // pred_region
          %s1165 = sand.u32 %s159, 1
          %s1166 = scalar_lea.sflag [#allocation4], %s1165
          %s1167 = sand.u32 %s159, 1
          %s1168 = smul.addr %s1167, 2
          %s1169 = scalar_lea.vmem [#allocation3], %s1168
          %1170 = dma.done %s1166, 32
        $region60: #{conv_d_forward.6} parent=51 // pred_fallthru
          _
      $region52: #{conv_d_forward.6} parent=5 // pred_fallthru
        _
    $region6: #{conv_d_forward.6} parent=1 // loop_footer
      %s18 = sadd.s32 1, %s14
    $region7: #{conv_d_forward.6} parent=1 // loop_footer_branch
      %13 = sbr.rel target = $region3
    $region8: #{conv_d_forward.6} parent=1 // loop_exit
      _
    %1171 = vsyncpa [#allocation4], 1
    %s1172 = scalar_lea.sflag [#allocation4], 1
    %1173 = vsyncpa %s1172, 1

// kernel: conv_d_forward.8
$region0: #{conv_d_forward.8}
  #allocation0 [shape = 'u32[]', space=smem, size = 0x4, offset = 0x4, fixed_abs, tag = 'smem constant byte address 0x4 - core index']
  #allocation1 [shape = 'u32[144,128]{1,0:T(1,128)}', space=vmem, size = 0x12000, scoped, tag = 'internal scratch']
  %s0 = inlined_call_operand.vmem [shape: bf16[128,128], index: 0, kind: input, shape index: {}]
  %s1 = inlined_call_operand.vmem [shape: f32[1,128], index: 1, kind: input, shape index: {}]
  %s2 = inlined_call_operand.vmem [shape: f32[1,128], index: 2, kind: input, shape index: {}]
  %s3 = inlined_call_operand.vmem [shape: bf16[128,128], index: 3, kind: output, shape index: {}]
  %s4 = sld [smem:[#allocation0]]
  $region22: #{conv_d_forward.8} parent=0
    _
  %s6 = ssub.s32 1, %s4
  %s7 = scalar_select 0, %s6, %s4
  // Predicated region
  $region2: #{conv_d_forward.8} parent=0 // pred_check
    _
  $region3: #{conv_d_forward.8} parent=0 // pred_check_branch
    %9 = sbr.rel (0) target = $region5
  $region4: #{conv_d_forward.8} parent=0 // pred_region
    _
  $region5: #{conv_d_forward.8} parent=0 // pred_fallthru
    _
  // Predicated region
  $region6: #{conv_d_forward.8} parent=0 // pred_check
    _
  $region7: #{conv_d_forward.8} parent=0 // pred_check_branch
    %11 = sbr.rel (0) target = $region9
  $region8: #{conv_d_forward.8} parent=0 // pred_region
    _
  $region9: #{conv_d_forward.8} parent=0 // pred_fallthru
    _
  // Predicated region
  $region10: #{conv_d_forward.8} parent=0 // pred_check
    _
  $region11: #{conv_d_forward.8} parent=0 // pred_check_branch
    %13 = sbr.rel (0) target = $region13
  $region12: #{conv_d_forward.8} parent=0 // pred_region
    _
  $region13: #{conv_d_forward.8} parent=0 // pred_fallthru
    _
  %v14 = vld [vmem:[%s0] sm:$0xf]
  %v15 = vld [vmem:[%s0 + $0x4] sm:$0xf]
  %v16 = vld [vmem:[%s0 + $0x8] sm:$0xf]
  %v17 = vld [vmem:[%s0 + $0xc] sm:$0xf]
  %v18 = vld [vmem:[%s0 + $0x10] sm:$0xf]
  %v19 = vld [vmem:[%s0 + $0x14] sm:$0xf]
  %v20 = vld [vmem:[%s0 + $0x18] sm:$0xf]
  %v21 = vld [vmem:[%s0 + $0x1c] sm:$0xf]
  %v22 = vld [vmem:[%s0 + $0x20] sm:$0xf]
  %v23 = vld [vmem:[%s0 + $0x24] sm:$0xf]
  %v24 = vld [vmem:[%s0 + $0x28] sm:$0xf]
  %v25 = vld [vmem:[%s0 + $0x2c] sm:$0xf]
  %v26 = vld [vmem:[%s0 + $0x30] sm:$0xf]
  %v27 = vld [vmem:[%s0 + $0x34] sm:$0xf]
  %v28 = vld [vmem:[%s0 + $0x38] sm:$0xf]
  %v29 = vld [vmem:[%s0 + $0x3c] sm:$0xf]
  %v30 = vunpack.c.l.bf16 %v14
  %v31 = vunpack.c.l.bf16 %v15
  %v32 = vunpack.c.l.bf16 %v16
  %v33 = vunpack.c.l.bf16 %v17
  %v34 = vunpack.c.l.bf16 %v18
  %v35 = vunpack.c.l.bf16 %v19
  %v36 = vunpack.c.l.bf16 %v20
  %v37 = vunpack.c.l.bf16 %v21
  %v38 = vunpack.c.l.bf16 %v22
  %v39 = vunpack.c.l.bf16 %v23
  %v40 = vunpack.c.l.bf16 %v24
  %v41 = vunpack.c.l.bf16 %v25
  %v42 = vunpack.c.l.bf16 %v26
  %v43 = vunpack.c.l.bf16 %v27
  %v44 = vunpack.c.l.bf16 %v28
  %v45 = vunpack.c.l.bf16 %v29
  %v46 = vld [vmem:[%s1] sm:$0x1]
  %v48 = vlaneseq
  %v49 = vshrl.u32 %v48, 7
  %v50 = vsub.s32 0, %v49
  %v51 = vrot.slane %v46, %v50
  %v53 = vmul.f32 %v30, %v51
  %v54 = vmul.f32 %v31, %v51
  %v55 = vmul.f32 %v32, %v51
  %v56 = vmul.f32 %v33, %v51
  %v57 = vmul.f32 %v34, %v51
  %v58 = vmul.f32 %v35, %v51
  %v59 = vmul.f32 %v36, %v51
  %v60 = vmul.f32 %v37, %v51
  %v61 = vmul.f32 %v38, %v51
  %v62 = vmul.f32 %v39, %v51
  %v63 = vmul.f32 %v40, %v51
  %v64 = vmul.f32 %v41, %v51
  %v65 = vmul.f32 %v42, %v51
  %v66 = vmul.f32 %v43, %v51
  %v67 = vmul.f32 %v44, %v51
  %v68 = vmul.f32 %v45, %v51
  %v69 = vld [vmem:[%s2] sm:$0x1]
  %v71 = vlaneseq
  %v72 = vshrl.u32 %v71, 7
  %v73 = vsub.s32 0, %v72
  %v74 = vrot.slane %v69, %v73
  %v76 = vadd.f32 %v53, %v74
  %v77 = vadd.f32 %v54, %v74
  %v78 = vadd.f32 %v55, %v74
  %v79 = vadd.f32 %v56, %v74
  %v80 = vadd.f32 %v57, %v74
  %v81 = vadd.f32 %v58, %v74
  %v82 = vadd.f32 %v59, %v74
  %v83 = vadd.f32 %v60, %v74
  %v84 = vadd.f32 %v61, %v74
  %v85 = vadd.f32 %v62, %v74
  %v86 = vadd.f32 %v63, %v74
  %v87 = vadd.f32 %v64, %v74
  %v88 = vadd.f32 %v65, %v74
  %v89 = vadd.f32 %v66, %v74
  %v90 = vadd.f32 %v67, %v74
  %v91 = vadd.f32 %v68, %v74
  %vm92 = vcmp.ge.f32.partialorder %v76, 0.0
  %vm93 = vcmp.ge.f32.partialorder %v77, 0.0
  %vm94 = vcmp.ge.f32.partialorder %v78, 0.0
  %vm95 = vcmp.ge.f32.partialorder %v79, 0.0
  %vm96 = vcmp.ge.f32.partialorder %v80, 0.0
  %vm97 = vcmp.ge.f32.partialorder %v81, 0.0
  %vm98 = vcmp.ge.f32.partialorder %v82, 0.0
  %vm99 = vcmp.ge.f32.partialorder %v83, 0.0
  %vm100 = vcmp.ge.f32.partialorder %v84, 0.0
  %vm101 = vcmp.ge.f32.partialorder %v85, 0.0
  %vm102 = vcmp.ge.f32.partialorder %v86, 0.0
  %vm103 = vcmp.ge.f32.partialorder %v87, 0.0
  %vm104 = vcmp.ge.f32.partialorder %v88, 0.0
  %vm105 = vcmp.ge.f32.partialorder %v89, 0.0
  %vm106 = vcmp.ge.f32.partialorder %v90, 0.0
  %vm107 = vcmp.ge.f32.partialorder %v91, 0.0
  %v108 = vmul.f32 %v76, 0.2
  %v109 = vmul.f32 %v77, 0.2
  %v110 = vmul.f32 %v78, 0.2
  %v111 = vmul.f32 %v79, 0.2
  %v112 = vmul.f32 %v80, 0.2
  %v113 = vmul.f32 %v81, 0.2
  %v114 = vmul.f32 %v82, 0.2
  %v115 = vmul.f32 %v83, 0.2
  %v116 = vmul.f32 %v84, 0.2
  %v117 = vmul.f32 %v85, 0.2
  %v118 = vmul.f32 %v86, 0.2
  %v119 = vmul.f32 %v87, 0.2
  %v120 = vmul.f32 %v88, 0.2
  %v121 = vmul.f32 %v89, 0.2
  %v122 = vmul.f32 %v90, 0.2
  %v123 = vmul.f32 %v91, 0.2
  %v124 = vsel %vm92, %v76, %v108
  %v125 = vsel %vm93, %v77, %v109
  %v126 = vsel %vm94, %v78, %v110
  %v127 = vsel %vm95, %v79, %v111
  %v128 = vsel %vm96, %v80, %v112
  %v129 = vsel %vm97, %v81, %v113
  %v130 = vsel %vm98, %v82, %v114
  %v131 = vsel %vm99, %v83, %v115
  %v132 = vsel %vm100, %v84, %v116
  %v133 = vsel %vm101, %v85, %v117
  %v134 = vsel %vm102, %v86, %v118
  %v135 = vsel %vm103, %v87, %v119
  %v136 = vsel %vm104, %v88, %v120
  %v137 = vsel %vm105, %v89, %v121
  %v138 = vsel %vm106, %v90, %v122
  %v139 = vsel %vm107, %v91, %v123
  %v140 = vpack.c.bf16 %v125, %v124
  %v141 = vpack.c.bf16 %v127, %v126
  %v142 = vpack.c.bf16 %v129, %v128
  %v143 = vpack.c.bf16 %v131, %v130
  %v144 = vpack.c.bf16 %v133, %v132
  %v145 = vpack.c.bf16 %v135, %v134
  %v146 = vpack.c.bf16 %v137, %v136
  %v147 = vpack.c.bf16 %v139, %v138
  %v156 = vunpack.c.l.b16 %v140
  %v157 = vunpack.c.h.b16 %v140
  %v158 = vunpack.c.l.b16 %v141
  %v159 = vunpack.c.h.b16 %v141
  %v160 = vunpack.c.l.b16 %v142
  %v161 = vunpack.c.h.b16 %v142
  %v162 = vunpack.c.l.b16 %v143
  %v163 = vunpack.c.h.b16 %v143
  %v164 = vunpack.c.l.b16 %v144
  %v165 = vunpack.c.h.b16 %v144
  %v166 = vunpack.c.l.b16 %v145
  %v167 = vunpack.c.h.b16 %v145
  %v168 = vunpack.c.l.b16 %v146
  %v169 = vunpack.c.h.b16 %v146
  %v170 = vunpack.c.l.b16 %v147
  %v171 = vunpack.c.h.b16 %v147
  %v172 = vpack.c.b16 %v156, %v156
  %v173 = vpack.c.b16 %v157, %v157
  %v174 = vpack.c.b16 %v158, %v158
  %v175 = vpack.c.b16 %v159, %v159
  %v176 = vpack.c.b16 %v160, %v160
  %v177 = vpack.c.b16 %v161, %v161
  %v178 = vpack.c.b16 %v162, %v162
  %v179 = vpack.c.b16 %v163, %v163
  %v180 = vpack.c.b16 %v164, %v164
  %v181 = vpack.c.b16 %v165, %v165
  %v182 = vpack.c.b16 %v166, %v166
  %v183 = vpack.c.b16 %v167, %v167
  %v184 = vpack.c.b16 %v168, %v168
  %v185 = vpack.c.b16 %v169, %v169
  %v186 = vpack.c.b16 %v170, %v170
  %v187 = vpack.c.b16 %v171, %v171
  %204 = vst [vmem:[%s3] sm:$0xf] %v172
  %205 = vst [vmem:[%s3 + $0x4] sm:$0xf] %v173
  %206 = vst [vmem:[%s3 + $0x8] sm:$0xf] %v174
  %207 = vst [vmem:[%s3 + $0xc] sm:$0xf] %v175
  %208 = vst [vmem:[%s3 + $0x10] sm:$0xf] %v176
  %209 = vst [vmem:[%s3 + $0x14] sm:$0xf] %v177
  %210 = vst [vmem:[%s3 + $0x18] sm:$0xf] %v178
  %211 = vst [vmem:[%s3 + $0x1c] sm:$0xf] %v179
  %212 = vst [vmem:[%s3 + $0x20] sm:$0xf] %v180
  %213 = vst [vmem:[%s3 + $0x24] sm:$0xf] %v181
  %214 = vst [vmem:[%s3 + $0x28] sm:$0xf] %v182
  %215 = vst [vmem:[%s3 + $0x2c] sm:$0xf] %v183
  %216 = vst [vmem:[%s3 + $0x30] sm:$0xf] %v184
  %217 = vst [vmem:[%s3 + $0x34] sm:$0xf] %v185
  %218 = vst [vmem:[%s3 + $0x38] sm:$0xf] %v186
  %219 = vst [vmem:[%s3 + $0x3c] sm:$0xf] %v187
  // Predicated region
  $region14: #{conv_d_forward.8} parent=0 // pred_check
    _
  $region15: #{conv_d_forward.8} parent=0 // pred_check_branch
    %221 = sbr.rel (0) target = $region17
  $region16: #{conv_d_forward.8} parent=0 // pred_region
    _
  $region17: #{conv_d_forward.8} parent=0 // pred_fallthru
    _
  // Predicated region
  $region18: #{conv_d_forward.8} parent=0 // pred_check
    _
  $region19: #{conv_d_forward.8} parent=0 // pred_check_branch
    %223 = sbr.rel (0) target = $region21
  $region20: #{conv_d_forward.8} parent=0 // pred_region
    _
  $region21: #{conv_d_forward.8} parent=0 // pred_fallthru
    _

// kernel: conv_d_forward.7
$region0: #{conv_d_forward.7}
  #allocation0 [shape = 'u32[]', space=smem, size = 0x4, offset = 0x4, fixed_abs, tag = 'smem constant byte address 0x4 - core index']
  #allocation1 [shape = 'u32[144,128]{1,0:T(1,128)}', space=vmem, size = 0x12000, scoped, tag = 'internal scratch']
  #allocation2 [shape = 'f32[128,128]{1,0:T(8,128)}', space=vmem, size = 0x10000, scoped, tag = 'scratch operand']
  %s0 = inlined_call_operand.vmem [shape: bf16[128,128], index: 0, kind: input, shape index: {}]
  %s1 = inlined_call_operand.vmem [shape: bf16[128,128], index: 1, kind: input, shape index: {}]
  %s2 = inlined_call_operand.vmem [shape: f32[1,128], index: 2, kind: input, shape index: {}]
  %s3 = inlined_call_operand.vmem [shape: bf16[128,128], index: 3, kind: output, shape index: {0}]
  %s4 = inlined_call_operand.vmem [shape: f32[1,2,128], index: 4, kind: output, shape index: {1}]
  %5 = xla_tuple %s3, %s4
  %s6 = sld [smem:[#allocation0]]
  $region38: #{conv_d_forward.7} parent=0
    _
  %s8 = ssub.s32 1, %s6
  %s9 = scalar_select 0, %s8, %s6
  // Predicated region
  $region2: #{conv_d_forward.7} parent=0 // pred_check
    _
  $region3: #{conv_d_forward.7} parent=0 // pred_check_branch
    %11 = sbr.rel (0) target = $region5
  $region4: #{conv_d_forward.7} parent=0 // pred_region
    _
  $region5: #{conv_d_forward.7} parent=0 // pred_fallthru
    _
  // Predicated region
  $region6: #{conv_d_forward.7} parent=0 // pred_check
    _
  $region7: #{conv_d_forward.7} parent=0 // pred_check_branch
    %13 = sbr.rel (0) target = $region9
  $region8: #{conv_d_forward.7} parent=0 // pred_region
    _
  $region9: #{conv_d_forward.7} parent=0 // pred_fallthru
    _
  // Predicated region
  $region10: #{conv_d_forward.7} parent=0 // pred_check
    _
  $region11: #{conv_d_forward.7} parent=0 // pred_check_branch
    %15 = sbr.rel (0) target = $region13
  $region12: #{conv_d_forward.7} parent=0 // pred_region
    _
  $region13: #{conv_d_forward.7} parent=0 // pred_fallthru
    _
  %p17 = scmp.eq.s32.totalorder 0, 0
  // Predicated region
  $region14: #{conv_d_forward.7} parent=0 // pred_check
    %p18 = pneg %p17
  $region15: #{conv_d_forward.7} parent=0 // pred_check_branch
    %20 = sbr.rel (%p18) target = $region17
  $region16: #{conv_d_forward.7} parent=0 // pred_region
    %21 = vst [vmem:[#allocation2] sm:$0xff] 0.0
    %22 = vst [vmem:[#allocation2 + $0x8] sm:$0xff] 0.0
    %23 = vst [vmem:[#allocation2 + $0x10] sm:$0xff] 0.0
    %24 = vst [vmem:[#allocation2 + $0x18] sm:$0xff] 0.0
    %25 = vst [vmem:[#allocation2 + $0x20] sm:$0xff] 0.0
    %26 = vst [vmem:[#allocation2 + $0x28] sm:$0xff] 0.0
    %27 = vst [vmem:[#allocation2 + $0x30] sm:$0xff] 0.0
    %28 = vst [vmem:[#allocation2 + $0x38] sm:$0xff] 0.0
    %29 = vst [vmem:[#allocation2 + $0x40] sm:$0xff] 0.0
    %30 = vst [vmem:[#allocation2 + $0x48] sm:$0xff] 0.0
    %31 = vst [vmem:[#allocation2 + $0x50] sm:$0xff] 0.0
    %32 = vst [vmem:[#allocation2 + $0x58] sm:$0xff] 0.0
    %33 = vst [vmem:[#allocation2 + $0x60] sm:$0xff] 0.0
    %34 = vst [vmem:[#allocation2 + $0x68] sm:$0xff] 0.0
    %35 = vst [vmem:[#allocation2 + $0x70] sm:$0xff] 0.0
    %36 = vst [vmem:[#allocation2 + $0x78] sm:$0xff] 0.0
  $region17: #{conv_d_forward.7} parent=0 // pred_fallthru
    _
  %v37 = vld [vmem:[#allocation2] sm:$0xff]
  %v38 = vld [vmem:[#allocation2 + $0x8] sm:$0xff]
  %v39 = vld [vmem:[#allocation2 + $0x10] sm:$0xff]
  %v40 = vld [vmem:[#allocation2 + $0x18] sm:$0xff]
  %v41 = vld [vmem:[#allocation2 + $0x20] sm:$0xff]
  %v42 = vld [vmem:[#allocation2 + $0x28] sm:$0xff]
  %v43 = vld [vmem:[#allocation2 + $0x30] sm:$0xff]
  %v44 = vld [vmem:[#allocation2 + $0x38] sm:$0xff]
  %v45 = vld [vmem:[#allocation2 + $0x40] sm:$0xff]
  %v46 = vld [vmem:[#allocation2 + $0x48] sm:$0xff]
  %v47 = vld [vmem:[#allocation2 + $0x50] sm:$0xff]
  %v48 = vld [vmem:[#allocation2 + $0x58] sm:$0xff]
  %v49 = vld [vmem:[#allocation2 + $0x60] sm:$0xff]
  %v50 = vld [vmem:[#allocation2 + $0x68] sm:$0xff]
  %v51 = vld [vmem:[#allocation2 + $0x70] sm:$0xff]
  %v52 = vld [vmem:[#allocation2 + $0x78] sm:$0xff]
  %v53 = vld [vmem:[%s0] sm:$0xf]
  %v54 = vld [vmem:[%s0 + $0x4] sm:$0xf]
  %v55 = vld [vmem:[%s0 + $0x8] sm:$0xf]
  %v56 = vld [vmem:[%s0 + $0xc] sm:$0xf]
  %v57 = vld [vmem:[%s0 + $0x10] sm:$0xf]
  %v58 = vld [vmem:[%s0 + $0x14] sm:$0xf]
  %v59 = vld [vmem:[%s0 + $0x18] sm:$0xf]
  %v60 = vld [vmem:[%s0 + $0x1c] sm:$0xf]
  %v61 = vld [vmem:[%s0 + $0x20] sm:$0xf]
  %v62 = vld [vmem:[%s0 + $0x24] sm:$0xf]
  %v63 = vld [vmem:[%s0 + $0x28] sm:$0xf]
  %v64 = vld [vmem:[%s0 + $0x2c] sm:$0xf]
  %v65 = vld [vmem:[%s0 + $0x30] sm:$0xf]
  %v66 = vld [vmem:[%s0 + $0x34] sm:$0xf]
  %v67 = vld [vmem:[%s0 + $0x38] sm:$0xf]
  %v68 = vld [vmem:[%s0 + $0x3c] sm:$0xf]
  %v69 = vld [vmem:[%s1] sm:$0xf]
  %v70 = vld [vmem:[%s1 + $0x4] sm:$0xf]
  %v71 = vld [vmem:[%s1 + $0x8] sm:$0xf]
  %v72 = vld [vmem:[%s1 + $0xc] sm:$0xf]
  %v73 = vld [vmem:[%s1 + $0x10] sm:$0xf]
  %v74 = vld [vmem:[%s1 + $0x14] sm:$0xf]
  %v75 = vld [vmem:[%s1 + $0x18] sm:$0xf]
  %v76 = vld [vmem:[%s1 + $0x1c] sm:$0xf]
  %v77 = vld [vmem:[%s1 + $0x20] sm:$0xf]
  %v78 = vld [vmem:[%s1 + $0x24] sm:$0xf]
  %v79 = vld [vmem:[%s1 + $0x28] sm:$0xf]
  %v80 = vld [vmem:[%s1 + $0x2c] sm:$0xf]
  %v81 = vld [vmem:[%s1 + $0x30] sm:$0xf]
  %v82 = vld [vmem:[%s1 + $0x34] sm:$0xf]
  %v83 = vld [vmem:[%s1 + $0x38] sm:$0xf]
  %v84 = vld [vmem:[%s1 + $0x3c] sm:$0xf]
  %v101 = vunpack.c.l.b16 %v53
  %v102 = vunpack.c.l.b16 %v54
  %v103 = vunpack.c.l.b16 %v55
  %v104 = vunpack.c.l.b16 %v56
  %v105 = vunpack.c.l.b16 %v57
  %v106 = vunpack.c.l.b16 %v58
  %v107 = vunpack.c.l.b16 %v59
  %v108 = vunpack.c.l.b16 %v60
  %v109 = vunpack.c.l.b16 %v61
  %v110 = vunpack.c.l.b16 %v62
  %v111 = vunpack.c.l.b16 %v63
  %v112 = vunpack.c.l.b16 %v64
  %v113 = vunpack.c.l.b16 %v65
  %v114 = vunpack.c.l.b16 %v66
  %v115 = vunpack.c.l.b16 %v67
  %v116 = vunpack.c.l.b16 %v68
  %v117 = vpack.c.b16 %v102, %v101
  %v118 = vpack.c.b16 %v104, %v103
  %v119 = vpack.c.b16 %v106, %v105
  %v120 = vpack.c.b16 %v108, %v107
  %v121 = vpack.c.b16 %v110, %v109
  %v122 = vpack.c.b16 %v112, %v111
  %v123 = vpack.c.b16 %v114, %v113
  %v124 = vpack.c.b16 %v116, %v115
  %v149 = vunpack.c.l.b16 %v69
  %v150 = vunpack.c.l.b16 %v70
  %v151 = vunpack.c.l.b16 %v71
  %v152 = vunpack.c.l.b16 %v72
  %v153 = vunpack.c.l.b16 %v73
  %v154 = vunpack.c.l.b16 %v74
  %v155 = vunpack.c.l.b16 %v75
  %v156 = vunpack.c.l.b16 %v76
  %v157 = vunpack.c.l.b16 %v77
  %v158 = vunpack.c.l.b16 %v78
  %v159 = vunpack.c.l.b16 %v79
  %v160 = vunpack.c.l.b16 %v80
  %v161 = vunpack.c.l.b16 %v81
  %v162 = vunpack.c.l.b16 %v82
  %v163 = vunpack.c.l.b16 %v83
  %v164 = vunpack.c.l.b16 %v84
  %v165 = vpack.c.b16 %v150, %v149
  %v166 = vpack.c.b16 %v152, %v151
  %v167 = vpack.c.b16 %v154, %v153
  %v168 = vpack.c.b16 %v156, %v155
  %v169 = vpack.c.b16 %v158, %v157
  %v170 = vpack.c.b16 %v160, %v159
  %v171 = vpack.c.b16 %v162, %v161
  %v172 = vpack.c.b16 %v164, %v163
  %181 = vmatprep.subr.bf16.mxu0 0
  %182 = vmatpush1.bf16.msra.mxu0 %v165
  %183 = vmatprep.subr.bf16.mxu0 0
  %184 = vmatpush1.bf16.msra.mxu0 %v166
  %185 = vmatprep.subr.bf16.mxu0 0
  %186 = vmatpush1.bf16.msra.mxu0 %v167
  %187 = vmatprep.subr.bf16.mxu0 0
  %188 = vmatpush1.bf16.msra.mxu0 %v168
  %189 = vmatprep.subr.bf16.mxu0 0
  %190 = vmatpush1.bf16.msra.mxu0 %v169
  %191 = vmatprep.subr.bf16.mxu0 0
  %192 = vmatpush1.bf16.msra.mxu0 %v170
  %193 = vmatprep.subr.bf16.mxu0 0
  %194 = vmatpush1.bf16.msra.mxu0 %v171
  %195 = vmatprep.subr.bf16.mxu0 0
  %196 = vmatpush1.bf16.msra.mxu0 %v172
  %197 = vmatprep.subr.bf16.mxu0 0
  %198 = vmatpush1.bf16.msra.mxu0 0
  %199 = vmatprep.subr.bf16.mxu0 0
  %200 = vmatpush1.bf16.msra.mxu0 0
  %201 = vmatprep.subr.bf16.mxu0 0
  %202 = vmatpush1.bf16.msra.mxu0 0
  %203 = vmatprep.subr.bf16.mxu0 0
  %204 = vmatpush1.bf16.msra.mxu0 0
  %205 = vmatprep.subr.bf16.mxu0 0
  %206 = vmatpush1.bf16.msra.mxu0 0
  %207 = vmatprep.subr.bf16.mxu0 0
  %208 = vmatpush1.bf16.msra.mxu0 0
  %209 = vmatprep.subr.bf16.mxu0 0
  %210 = vmatpush1.bf16.msra.mxu0 0
  %211 = vmatprep.subr.bf16.mxu0 0
  %212 = vmatpush1.bf16.msra.mxu0 0
  %213 = vmatprep.mubr.bf16.mxu0 0
  %214 = vmatmul.mubr.bf16.gmra.mrb[0].mxu0 %v117
  %v215 = vpop.f32.mrb[0].mxu0
  %v216 = vadd.f32 0.0, %v215
  %v217 = vpop.f32.mrb[0].mxu0
  %v218 = vpop.f32.mrb[0].mxu0
  %v219 = vadd.f32 0.0, %v218
  %v220 = vpop.f32.mrb[0].mxu0
  %221 = vmatprep.mubr.bf16.mxu0 0
  %222 = vmatmul.mubr.bf16.gmra.mrb[0].mxu0 %v118
  %v223 = vpop.f32.mrb[0].mxu0
  %v224 = vadd.f32 0.0, %v223
  %v225 = vpop.f32.mrb[0].mxu0
  %v226 = vpop.f32.mrb[0].mxu0
  %v227 = vadd.f32 0.0, %v226
  %v228 = vpop.f32.mrb[0].mxu0
  %229 = vmatprep.mubr.bf16.mxu0 0
  %230 = vmatmul.mubr.bf16.gmra.mrb[0].mxu0 %v119
  %v231 = vpop.f32.mrb[0].mxu0
  %v232 = vadd.f32 0.0, %v231
  %v233 = vpop.f32.mrb[0].mxu0
  %v234 = vpop.f32.mrb[0].mxu0
  %v235 = vadd.f32 0.0, %v234
  %v236 = vpop.f32.mrb[0].mxu0
  %237 = vmatprep.mubr.bf16.mxu0 0
  %238 = vmatmul.mubr.bf16.gmra.mrb[0].mxu0 %v120
  %v239 = vpop.f32.mrb[0].mxu0
  %v240 = vadd.f32 0.0, %v239
  %v241 = vpop.f32.mrb[0].mxu0
  %v242 = vpop.f32.mrb[0].mxu0
  %v243 = vadd.f32 0.0, %v242
  %v244 = vpop.f32.mrb[0].mxu0
  %245 = vmatprep.mubr.bf16.mxu0 0
  %246 = vmatmul.mubr.bf16.gmra.mrb[0].mxu0 %v121
  %v247 = vpop.f32.mrb[0].mxu0
  %v248 = vadd.f32 0.0, %v247
  %v249 = vpop.f32.mrb[0].mxu0
  %v250 = vpop.f32.mrb[0].mxu0
  %v251 = vadd.f32 0.0, %v250
  %v252 = vpop.f32.mrb[0].mxu0
  %253 = vmatprep.mubr.bf16.mxu0 0
  %254 = vmatmul.mubr.bf16.gmra.mrb[0].mxu0 %v122
  %v255 = vpop.f32.mrb[0].mxu0
  %v256 = vadd.f32 0.0, %v255
  %v257 = vpop.f32.mrb[0].mxu0
  %v258 = vpop.f32.mrb[0].mxu0
  %v259 = vadd.f32 0.0, %v258
  %v260 = vpop.f32.mrb[0].mxu0
  %261 = vmatprep.mubr.bf16.mxu0 0
  %262 = vmatmul.mubr.bf16.gmra.mrb[0].mxu0 %v123
  %v263 = vpop.f32.mrb[0].mxu0
  %v264 = vadd.f32 0.0, %v263
  %v265 = vpop.f32.mrb[0].mxu0
  %v266 = vpop.f32.mrb[0].mxu0
  %v267 = vadd.f32 0.0, %v266
  %v268 = vpop.f32.mrb[0].mxu0
  %269 = vmatprep.mubr.bf16.mxu0 0
  %270 = vmatmul.mubr.bf16.gmra.mrb[0].mxu0 %v124
  %v271 = vpop.f32.mrb[0].mxu0
  %v272 = vadd.f32 0.0, %v271
  %v273 = vpop.f32.mrb[0].mxu0
  %v274 = vpop.f32.mrb[0].mxu0
  %v275 = vadd.f32 0.0, %v274
  %v276 = vpop.f32.mrb[0].mxu0
  %277 = vdwg.mxu0
  %v278 = vadd.f32 %v37, %v216
  %v279 = vadd.f32 %v38, %v219
  %v280 = vadd.f32 %v39, %v224
  %v281 = vadd.f32 %v40, %v227
  %v282 = vadd.f32 %v41, %v232
  %v283 = vadd.f32 %v42, %v235
  %v284 = vadd.f32 %v43, %v240
  %v285 = vadd.f32 %v44, %v243
  %v286 = vadd.f32 %v45, %v248
  %v287 = vadd.f32 %v46, %v251
  %v288 = vadd.f32 %v47, %v256
  %v289 = vadd.f32 %v48, %v259
  %v290 = vadd.f32 %v49, %v264
  %v291 = vadd.f32 %v50, %v267
  %v292 = vadd.f32 %v51, %v272
  %v293 = vadd.f32 %v52, %v275
  %294 = vst [vmem:[#allocation2] sm:$0xff] %v278
  %295 = vst [vmem:[#allocation2 + $0x8] sm:$0xff] %v279
  %296 = vst [vmem:[#allocation2 + $0x10] sm:$0xff] %v280
  %297 = vst [vmem:[#allocation2 + $0x18] sm:$0xff] %v281
  %298 = vst [vmem:[#allocation2 + $0x20] sm:$0xff] %v282
  %299 = vst [vmem:[#allocation2 + $0x28] sm:$0xff] %v283
  %300 = vst [vmem:[#allocation2 + $0x30] sm:$0xff] %v284
  %301 = vst [vmem:[#allocation2 + $0x38] sm:$0xff] %v285
  %302 = vst [vmem:[#allocation2 + $0x40] sm:$0xff] %v286
  %303 = vst [vmem:[#allocation2 + $0x48] sm:$0xff] %v287
  %304 = vst [vmem:[#allocation2 + $0x50] sm:$0xff] %v288
  %305 = vst [vmem:[#allocation2 + $0x58] sm:$0xff] %v289
  %306 = vst [vmem:[#allocation2 + $0x60] sm:$0xff] %v290
  %307 = vst [vmem:[#allocation2 + $0x68] sm:$0xff] %v291
  %308 = vst [vmem:[#allocation2 + $0x70] sm:$0xff] %v292
  %309 = vst [vmem:[#allocation2 + $0x78] sm:$0xff] %v293
  // Predicated region
  $region18: #{conv_d_forward.7} parent=0 // pred_check
    %p310 = pneg %p17
  $region19: #{conv_d_forward.7} parent=0 // pred_check_branch
    %312 = sbr.rel (%p310) target = $region21
  $region20: #{conv_d_forward.7} parent=0 // pred_region
    %v313 = vld [vmem:[#allocation2] sm:$0xff]
    %v314 = vld [vmem:[#allocation2 + $0x8] sm:$0xff]
    %v315 = vld [vmem:[#allocation2 + $0x10] sm:$0xff]
    %v316 = vld [vmem:[#allocation2 + $0x18] sm:$0xff]
    %v317 = vld [vmem:[#allocation2 + $0x20] sm:$0xff]
    %v318 = vld [vmem:[#allocation2 + $0x28] sm:$0xff]
    %v319 = vld [vmem:[#allocation2 + $0x30] sm:$0xff]
    %v320 = vld [vmem:[#allocation2 + $0x38] sm:$0xff]
    %v321 = vld [vmem:[#allocation2 + $0x40] sm:$0xff]
    %v322 = vld [vmem:[#allocation2 + $0x48] sm:$0xff]
    %v323 = vld [vmem:[#allocation2 + $0x50] sm:$0xff]
    %v324 = vld [vmem:[#allocation2 + $0x58] sm:$0xff]
    %v325 = vld [vmem:[#allocation2 + $0x60] sm:$0xff]
    %v326 = vld [vmem:[#allocation2 + $0x68] sm:$0xff]
    %v327 = vld [vmem:[#allocation2 + $0x70] sm:$0xff]
    %v328 = vld [vmem:[#allocation2 + $0x78] sm:$0xff]
    %v329 = vld [vmem:[%s2] sm:$0x1]
    %v331 = vlaneseq
    %v332 = vshrl.u32 %v331, 7
    %v333 = vsub.s32 0, %v332
    %v334 = vrot.slane %v329, %v333
    %v336 = vadd.f32 %v313, %v334
    %v337 = vadd.f32 %v314, %v334
    %v338 = vadd.f32 %v315, %v334
    %v339 = vadd.f32 %v316, %v334
    %v340 = vadd.f32 %v317, %v334
    %v341 = vadd.f32 %v318, %v334
    %v342 = vadd.f32 %v319, %v334
    %v343 = vadd.f32 %v320, %v334
    %v344 = vadd.f32 %v321, %v334
    %v345 = vadd.f32 %v322, %v334
    %v346 = vadd.f32 %v323, %v334
    %v347 = vadd.f32 %v324, %v334
    %v348 = vadd.f32 %v325, %v334
    %v349 = vadd.f32 %v326, %v334
    %v350 = vadd.f32 %v327, %v334
    %v351 = vadd.f32 %v328, %v334
    %v352 = vpack.c.bf16 %v337, %v336
    %v353 = vpack.c.bf16 %v339, %v338
    %v354 = vpack.c.bf16 %v341, %v340
    %v355 = vpack.c.bf16 %v343, %v342
    %v356 = vpack.c.bf16 %v345, %v344
    %v357 = vpack.c.bf16 %v347, %v346
    %v358 = vpack.c.bf16 %v349, %v348
    %v359 = vpack.c.bf16 %v351, %v350
    %v368 = vunpack.c.l.b16 %v352
    %v369 = vunpack.c.h.b16 %v352
    %v370 = vunpack.c.l.b16 %v353
    %v371 = vunpack.c.h.b16 %v353
    %v372 = vunpack.c.l.b16 %v354
    %v373 = vunpack.c.h.b16 %v354
    %v374 = vunpack.c.l.b16 %v355
    %v375 = vunpack.c.h.b16 %v355
    %v376 = vunpack.c.l.b16 %v356
    %v377 = vunpack.c.h.b16 %v356
    %v378 = vunpack.c.l.b16 %v357
    %v379 = vunpack.c.h.b16 %v357
    %v380 = vunpack.c.l.b16 %v358
    %v381 = vunpack.c.h.b16 %v358
    %v382 = vunpack.c.l.b16 %v359
    %v383 = vunpack.c.h.b16 %v359
    %v384 = vpack.c.b16 %v368, %v368
    %v385 = vpack.c.b16 %v369, %v369
    %v386 = vpack.c.b16 %v370, %v370
    %v387 = vpack.c.b16 %v371, %v371
    %v388 = vpack.c.b16 %v372, %v372
    %v389 = vpack.c.b16 %v373, %v373
    %v390 = vpack.c.b16 %v374, %v374
    %v391 = vpack.c.b16 %v375, %v375
    %v392 = vpack.c.b16 %v376, %v376
    %v393 = vpack.c.b16 %v377, %v377
    %v394 = vpack.c.b16 %v378, %v378
    %v395 = vpack.c.b16 %v379, %v379
    %v396 = vpack.c.b16 %v380, %v380
    %v397 = vpack.c.b16 %v381, %v381
    %v398 = vpack.c.b16 %v382, %v382
    %v399 = vpack.c.b16 %v383, %v383
    %416 = vst [vmem:[%s3] sm:$0xf] %v384
    %417 = vst [vmem:[%s3 + $0x4] sm:$0xf] %v385
    %418 = vst [vmem:[%s3 + $0x8] sm:$0xf] %v386
    %419 = vst [vmem:[%s3 + $0xc] sm:$0xf] %v387
    %420 = vst [vmem:[%s3 + $0x10] sm:$0xf] %v388
    %421 = vst [vmem:[%s3 + $0x14] sm:$0xf] %v389
    %422 = vst [vmem:[%s3 + $0x18] sm:$0xf] %v390
    %423 = vst [vmem:[%s3 + $0x1c] sm:$0xf] %v391
    %424 = vst [vmem:[%s3 + $0x20] sm:$0xf] %v392
    %425 = vst [vmem:[%s3 + $0x24] sm:$0xf] %v393
    %426 = vst [vmem:[%s3 + $0x28] sm:$0xf] %v394
    %427 = vst [vmem:[%s3 + $0x2c] sm:$0xf] %v395
    %428 = vst [vmem:[%s3 + $0x30] sm:$0xf] %v396
    %429 = vst [vmem:[%s3 + $0x34] sm:$0xf] %v397
    %430 = vst [vmem:[%s3 + $0x38] sm:$0xf] %v398
    %431 = vst [vmem:[%s3 + $0x3c] sm:$0xf] %v399
    %v432 = vlaneseq
    %v433 = vshrl.u32 %v432, 7
    %v434 = vadd.s32 %v433, 8
    %v435 = vadd.s32 %v433, 16
    %v436 = vadd.s32 %v433, 24
    %v437 = vadd.s32 %v433, 32
    %v438 = vadd.s32 %v433, 40
    %v439 = vadd.s32 %v433, 48
    %v440 = vadd.s32 %v433, 56
    %v441 = vadd.s32 %v433, 64
    %v442 = vadd.s32 %v433, 72
    %v443 = vadd.s32 %v433, 80
    %v444 = vadd.s32 %v433, 88
    %v445 = vadd.s32 %v433, 96
    %v446 = vadd.s32 %v433, 104
    %v447 = vadd.s32 %v433, 112
    %v448 = vadd.s32 %v433, 120
    %s449 = smul.u32 0, 128
    %v450 = vstv %s449
    %v451 = vadd.s32 %v433, %v450
    %v452 = vadd.s32 %v434, %v450
    %v453 = vadd.s32 %v435, %v450
    %v454 = vadd.s32 %v436, %v450
    %v455 = vadd.s32 %v437, %v450
    %v456 = vadd.s32 %v438, %v450
    %v457 = vadd.s32 %v439, %v450
    %v458 = vadd.s32 %v440, %v450
    %v459 = vadd.s32 %v441, %v450
    %v460 = vadd.s32 %v442, %v450
    %v461 = vadd.s32 %v443, %v450
    %v462 = vadd.s32 %v444, %v450
    %v463 = vadd.s32 %v445, %v450
    %v464 = vadd.s32 %v446, %v450
    %v465 = vadd.s32 %v447, %v450
    %v466 = vadd.s32 %v448, %v450
    %vm467 = vcmp.lt.s32.totalorder %v451, 128
    %vm468 = vcmp.lt.s32.totalorder %v452, 128
    %vm469 = vcmp.lt.s32.totalorder %v453, 128
    %vm470 = vcmp.lt.s32.totalorder %v454, 128
    %vm471 = vcmp.lt.s32.totalorder %v455, 128
    %vm472 = vcmp.lt.s32.totalorder %v456, 128
    %vm473 = vcmp.lt.s32.totalorder %v457, 128
    %vm474 = vcmp.lt.s32.totalorder %v458, 128
    %vm475 = vcmp.lt.s32.totalorder %v459, 128
    %vm476 = vcmp.lt.s32.totalorder %v460, 128
    %vm477 = vcmp.lt.s32.totalorder %v461, 128
    %vm478 = vcmp.lt.s32.totalorder %v462, 128
    %vm479 = vcmp.lt.s32.totalorder %v463, 128
    %vm480 = vcmp.lt.s32.totalorder %v464, 128
    %vm481 = vcmp.lt.s32.totalorder %v465, 128
    %vm482 = vcmp.lt.s32.totalorder %v466, 128
    %v483 = vsel %vm467, 1, 0
    %v484 = vsel %vm468, 1, 0
    %v485 = vsel %vm469, 1, 0
    %v486 = vsel %vm470, 1, 0
    %v487 = vsel %vm471, 1, 0
    %v488 = vsel %vm472, 1, 0
    %v489 = vsel %vm473, 1, 0
    %v490 = vsel %vm474, 1, 0
    %v491 = vsel %vm475, 1, 0
    %v492 = vsel %vm476, 1, 0
    %v493 = vsel %vm477, 1, 0
    %v494 = vsel %vm478, 1, 0
    %v495 = vsel %vm479, 1, 0
    %v496 = vsel %vm480, 1, 0
    %v497 = vsel %vm481, 1, 0
    %v498 = vsel %vm482, 1, 0
    %v499 = vcvt.s32.f32 %v483
    %v500 = vcvt.s32.f32 %v484
    %v501 = vcvt.s32.f32 %v485
    %v502 = vcvt.s32.f32 %v486
    %v503 = vcvt.s32.f32 %v487
    %v504 = vcvt.s32.f32 %v488
    %v505 = vcvt.s32.f32 %v489
    %v506 = vcvt.s32.f32 %v490
    %v507 = vcvt.s32.f32 %v491
    %v508 = vcvt.s32.f32 %v492
    %v509 = vcvt.s32.f32 %v493
    %v510 = vcvt.s32.f32 %v494
    %v511 = vcvt.s32.f32 %v495
    %v512 = vcvt.s32.f32 %v496
    %v513 = vcvt.s32.f32 %v497
    %v514 = vcvt.s32.f32 %v498
    %v515 = vmul.f32 %v336, %v499
    %v516 = vmul.f32 %v337, %v500
    %v517 = vmul.f32 %v338, %v501
    %v518 = vmul.f32 %v339, %v502
    %v519 = vmul.f32 %v340, %v503
    %v520 = vmul.f32 %v341, %v504
    %v521 = vmul.f32 %v342, %v505
    %v522 = vmul.f32 %v343, %v506
    %v523 = vmul.f32 %v344, %v507
    %v524 = vmul.f32 %v345, %v508
    %v525 = vmul.f32 %v346, %v509
    %v526 = vmul.f32 %v347, %v510
    %v527 = vmul.f32 %v348, %v511
    %v528 = vmul.f32 %v349, %v512
    %v529 = vmul.f32 %v350, %v513
    %v530 = vmul.f32 %v351, %v514
    %v531 = vadd.f32 %v515, %v516
    %v532 = vadd.f32 %v531, %v517
    %v533 = vadd.f32 %v532, %v518
    %v534 = vadd.f32 %v533, %v519
    %v535 = vadd.f32 %v534, %v520
    %v536 = vadd.f32 %v535, %v521
    %v537 = vadd.f32 %v536, %v522
    %v538 = vadd.f32 %v537, %v523
    %v539 = vadd.f32 %v538, %v524
    %v540 = vadd.f32 %v539, %v525
    %v541 = vadd.f32 %v540, %v526
    %v542 = vadd.f32 %v541, %v527
    %v543 = vadd.f32 %v542, %v528
    %v544 = vadd.f32 %v543, %v529
    %v545 = vadd.f32 %v544, %v530
    %v546 = vrot.slane %v545, 4
    %v547 = vadd.f32 %v545, %v546
    %v548 = vrot.slane %v547, 2
    %v549 = vadd.f32 %v547, %v548
    %v550 = vrot.slane %v549, 1
    %v551 = vadd.f32 %v549, %v550
    %552 = vst [vmem:[%s4] sm:$0x1] %v551
    %v553 = vmul.f32 %v515, %v515
    %v554 = vmul.f32 %v516, %v516
    %v555 = vmul.f32 %v517, %v517
    %v556 = vmul.f32 %v518, %v518
    %v557 = vmul.f32 %v519, %v519
    %v558 = vmul.f32 %v520, %v520
    %v559 = vmul.f32 %v521, %v521
    %v560 = vmul.f32 %v522, %v522
    %v561 = vmul.f32 %v523, %v523
    %v562 = vmul.f32 %v524, %v524
    %v563 = vmul.f32 %v525, %v525
    %v564 = vmul.f32 %v526, %v526
    %v565 = vmul.f32 %v527, %v527
    %v566 = vmul.f32 %v528, %v528
    %v567 = vmul.f32 %v529, %v529
    %v568 = vmul.f32 %v530, %v530
    %v569 = vadd.f32 %v553, %v554
    %v570 = vadd.f32 %v569, %v555
    %v571 = vadd.f32 %v570, %v556
    %v572 = vadd.f32 %v571, %v557
    %v573 = vadd.f32 %v572, %v558
    %v574 = vadd.f32 %v573, %v559
    %v575 = vadd.f32 %v574, %v560
    %v576 = vadd.f32 %v575, %v561
    %v577 = vadd.f32 %v576, %v562
    %v578 = vadd.f32 %v577, %v563
    %v579 = vadd.f32 %v578, %v564
    %v580 = vadd.f32 %v579, %v565
    %v581 = vadd.f32 %v580, %v566
    %v582 = vadd.f32 %v581, %v567
    %v583 = vadd.f32 %v582, %v568
    %v584 = vrot.slane %v583, 4
    %v585 = vadd.f32 %v583, %v584
    %v586 = vrot.slane %v585, 2
    %v587 = vadd.f32 %v585, %v586
    %v588 = vrot.slane %v587, 1
    %v589 = vadd.f32 %v587, %v588
    %590 = vst [vmem:[%s4 + $0x1] sm:$0x1] %v589
  $region21: #{conv_d_forward.7} parent=0 // pred_fallthru
    _
  // Predicated region
  $region22: #{conv_d_forward.7} parent=0 // pred_check
    _
  $region23: #{conv_d_forward.7} parent=0 // pred_check_branch
    %592 = sbr.rel (0) target = $region25
  $region24: #{conv_d_forward.7} parent=0 // pred_region
    _
  $region25: #{conv_d_forward.7} parent=0 // pred_fallthru
    _
  // Predicated region
  $region26: #{conv_d_forward.7} parent=0 // pred_check
    _
  $region27: #{conv_d_forward.7} parent=0 // pred_check_branch
    %594 = sbr.rel (0) target = $region29
  $region28: #{conv_d_forward.7} parent=0 // pred_region
    _
  $region29: #{conv_d_forward.7} parent=0 // pred_fallthru
    _
  // Predicated region
  $region30: #{conv_d_forward.7} parent=0 // pred_check
    _
  $region31: #{conv_d_forward.7} parent=0 // pred_check_branch
    %596 = sbr.rel (0) target = $region33
  $region32: #{conv_d_forward.7} parent=0 // pred_region
    _
  $region33: #{conv_d_forward.7} parent=0 // pred_fallthru
    _
  // Predicated region
  $region34: #{conv_d_forward.7} parent=0 // pred_check
    _
  $region35: #{conv_d_forward.7} parent=0 // pred_check_branch
    %598 = sbr.rel (0) target = $region37
  $region36: #{conv_d_forward.7} parent=0 // pred_region
    _
  $region37: #{conv_d_forward.7} parent=0 // pred_fallthru
    _

// kernel: conv_d_forward.10
$region0: #{conv_d_forward.10}
  #allocation0 [shape = 'u32[]', space=smem, size = 0x4, offset = 0x4, fixed_abs, tag = 'smem constant byte address 0x4 - core index']
  #allocation1 [shape = 'u32[144,128]{1,0:T(1,128)}', space=vmem, size = 0x12000, scoped, tag = 'internal scratch']
  %s0 = inlined_call_operand.vmem [shape: bf16[32,128], index: 0, kind: input, shape index: {}]
  %s1 = inlined_call_operand.vmem [shape: f32[1,128], index: 1, kind: input, shape index: {}]
  %s2 = inlined_call_operand.vmem [shape: f32[1,128], index: 2, kind: input, shape index: {}]
  %s3 = inlined_call_operand.vmem [shape: bf16[32,128], index: 3, kind: output, shape index: {}]
  %s4 = sld [smem:[#allocation0]]
  $region22: #{conv_d_forward.10} parent=0
    _
  %s6 = ssub.s32 1, %s4
  %s7 = scalar_select 0, %s6, %s4
  // Predicated region
  $region2: #{conv_d_forward.10} parent=0 // pred_check
    _
  $region3: #{conv_d_forward.10} parent=0 // pred_check_branch
    %9 = sbr.rel (0) target = $region5
  $region4: #{conv_d_forward.10} parent=0 // pred_region
    _
  $region5: #{conv_d_forward.10} parent=0 // pred_fallthru
    _
  // Predicated region
  $region6: #{conv_d_forward.10} parent=0 // pred_check
    _
  $region7: #{conv_d_forward.10} parent=0 // pred_check_branch
    %11 = sbr.rel (0) target = $region9
  $region8: #{conv_d_forward.10} parent=0 // pred_region
    _
  $region9: #{conv_d_forward.10} parent=0 // pred_fallthru
    _
  // Predicated region
  $region10: #{conv_d_forward.10} parent=0 // pred_check
    _
  $region11: #{conv_d_forward.10} parent=0 // pred_check_branch
    %13 = sbr.rel (0) target = $region13
  $region12: #{conv_d_forward.10} parent=0 // pred_region
    _
  $region13: #{conv_d_forward.10} parent=0 // pred_fallthru
    _
  %v14 = vld [vmem:[%s0] sm:$0xf]
  %v15 = vld [vmem:[%s0 + $0x4] sm:$0xf]
  %v16 = vld [vmem:[%s0 + $0x8] sm:$0xf]
  %v17 = vld [vmem:[%s0 + $0xc] sm:$0xf]
  %v18 = vunpack.c.l.bf16 %v14
  %v19 = vunpack.c.l.bf16 %v15
  %v20 = vunpack.c.l.bf16 %v16
  %v21 = vunpack.c.l.bf16 %v17
  %v22 = vld [vmem:[%s1] sm:$0x1]
  %v24 = vlaneseq
  %v25 = vshrl.u32 %v24, 7
  %v26 = vsub.s32 0, %v25
  %v27 = vrot.slane %v22, %v26
  %v29 = vmul.f32 %v18, %v27
  %v30 = vmul.f32 %v19, %v27
  %v31 = vmul.f32 %v20, %v27
  %v32 = vmul.f32 %v21, %v27
  %v33 = vld [vmem:[%s2] sm:$0x1]
  %v35 = vlaneseq
  %v36 = vshrl.u32 %v35, 7
  %v37 = vsub.s32 0, %v36
  %v38 = vrot.slane %v33, %v37
  %v40 = vadd.f32 %v29, %v38
  %v41 = vadd.f32 %v30, %v38
  %v42 = vadd.f32 %v31, %v38
  %v43 = vadd.f32 %v32, %v38
  %vm44 = vcmp.ge.f32.partialorder %v40, 0.0
  %vm45 = vcmp.ge.f32.partialorder %v41, 0.0
  %vm46 = vcmp.ge.f32.partialorder %v42, 0.0
  %vm47 = vcmp.ge.f32.partialorder %v43, 0.0
  %v48 = vmul.f32 %v40, 0.2
  %v49 = vmul.f32 %v41, 0.2
  %v50 = vmul.f32 %v42, 0.2
  %v51 = vmul.f32 %v43, 0.2
  %v52 = vsel %vm44, %v40, %v48
  %v53 = vsel %vm45, %v41, %v49
  %v54 = vsel %vm46, %v42, %v50
  %v55 = vsel %vm47, %v43, %v51
  %v56 = vpack.c.bf16 %v53, %v52
  %v57 = vpack.c.bf16 %v55, %v54
  %v60 = vunpack.c.l.b16 %v56
  %v61 = vunpack.c.h.b16 %v56
  %v62 = vunpack.c.l.b16 %v57
  %v63 = vunpack.c.h.b16 %v57
  %v64 = vpack.c.b16 %v60, %v60
  %v65 = vpack.c.b16 %v61, %v61
  %v66 = vpack.c.b16 %v62, %v62
  %v67 = vpack.c.b16 %v63, %v63
  %72 = vst [vmem:[%s3] sm:$0xf] %v64
  %73 = vst [vmem:[%s3 + $0x4] sm:$0xf] %v65
  %74 = vst [vmem:[%s3 + $0x8] sm:$0xf] %v66
  %75 = vst [vmem:[%s3 + $0xc] sm:$0xf] %v67
  // Predicated region
  $region14: #{conv_d_forward.10} parent=0 // pred_check
    _
  $region15: #{conv_d_forward.10} parent=0 // pred_check_branch
    %77 = sbr.rel (0) target = $region17
  $region16: #{conv_d_forward.10} parent=0 // pred_region
    _
  $region17: #{conv_d_forward.10} parent=0 // pred_fallthru
    _
  // Predicated region
  $region18: #{conv_d_forward.10} parent=0 // pred_check
    _
  $region19: #{conv_d_forward.10} parent=0 // pred_check_branch
    %79 = sbr.rel (0) target = $region21
  $region20: #{conv_d_forward.10} parent=0 // pred_region
    _
  $region21: #{conv_d_forward.10} parent=0 // pred_fallthru
    _

// kernel: conv_d_forward.9
$region0: #{conv_d_forward.9}
  #allocation0 [shape = 'u32[]', space=smem, size = 0x4, offset = 0x4, fixed_abs, tag = 'smem constant byte address 0x4 - core index']
  #allocation1 [shape = 'u32[144,128]{1,0:T(1,128)}', space=vmem, size = 0x12000, scoped, tag = 'internal scratch']
  #allocation2 [shape = 'f32[32,128]{1,0:T(8,128)}', space=vmem, size = 0x4000, scoped, tag = 'scratch operand']
  %s0 = inlined_call_operand.vmem [shape: bf16[32,256], index: 0, kind: input, shape index: {}]
  %s1 = inlined_call_operand.vmem [shape: bf16[256,128], index: 1, kind: input, shape index: {}]
  %s2 = inlined_call_operand.vmem [shape: f32[1,128], index: 2, kind: input, shape index: {}]
  %s3 = inlined_call_operand.vmem [shape: bf16[32,128], index: 3, kind: output, shape index: {0}]
  %s4 = inlined_call_operand.vmem [shape: f32[1,2,128], index: 4, kind: output, shape index: {1}]
  %5 = xla_tuple %s3, %s4
  %s6 = sld [smem:[#allocation0]]
  $region38: #{conv_d_forward.9} parent=0
    _
  %s8 = ssub.s32 1, %s6
  %s9 = scalar_select 0, %s8, %s6
  // Predicated region
  $region2: #{conv_d_forward.9} parent=0 // pred_check
    _
  $region3: #{conv_d_forward.9} parent=0 // pred_check_branch
    %11 = sbr.rel (0) target = $region5
  $region4: #{conv_d_forward.9} parent=0 // pred_region
    _
  $region5: #{conv_d_forward.9} parent=0 // pred_fallthru
    _
  // Predicated region
  $region6: #{conv_d_forward.9} parent=0 // pred_check
    _
  $region7: #{conv_d_forward.9} parent=0 // pred_check_branch
    %13 = sbr.rel (0) target = $region9
  $region8: #{conv_d_forward.9} parent=0 // pred_region
    _
  $region9: #{conv_d_forward.9} parent=0 // pred_fallthru
    _
  // Predicated region
  $region10: #{conv_d_forward.9} parent=0 // pred_check
    _
  $region11: #{conv_d_forward.9} parent=0 // pred_check_branch
    %15 = sbr.rel (0) target = $region13
  $region12: #{conv_d_forward.9} parent=0 // pred_region
    _
  $region13: #{conv_d_forward.9} parent=0 // pred_fallthru
    _
  %p17 = scmp.eq.s32.totalorder 0, 0
  // Predicated region
  $region14: #{conv_d_forward.9} parent=0 // pred_check
    %p18 = pneg %p17
  $region15: #{conv_d_forward.9} parent=0 // pred_check_branch
    %20 = sbr.rel (%p18) target = $region17
  $region16: #{conv_d_forward.9} parent=0 // pred_region
    %21 = vst [vmem:[#allocation2] sm:$0xff] 0.0
    %22 = vst [vmem:[#allocation2 + $0x8] sm:$0xff] 0.0
    %23 = vst [vmem:[#allocation2 + $0x10] sm:$0xff] 0.0
    %24 = vst [vmem:[#allocation2 + $0x18] sm:$0xff] 0.0
  $region17: #{conv_d_forward.9} parent=0 // pred_fallthru
    _
  %v25 = vld [vmem:[#allocation2] sm:$0xff]
  %v26 = vld [vmem:[#allocation2 + $0x8] sm:$0xff]
  %v27 = vld [vmem:[#allocation2 + $0x10] sm:$0xff]
  %v28 = vld [vmem:[#allocation2 + $0x18] sm:$0xff]
  %v29 = vld [vmem:[%s0] sm:$0xff]
  %v30 = vld [vmem:[%s0 + $0x8] sm:$0xff]
  %v31 = vld [vmem:[%s0 + $0x10] sm:$0xff]
  %v32 = vld [vmem:[%s0 + $0x18] sm:$0xff]
  %v33 = vld [vmem:[%s1] sm:$0xf]
  %v34 = vld [vmem:[%s1 + $0x4] sm:$0xf]
  %v35 = vld [vmem:[%s1 + $0x8] sm:$0xf]
  %v36 = vld [vmem:[%s1 + $0xc] sm:$0xf]
  %v37 = vld [vmem:[%s1 + $0x10] sm:$0xf]
  %v38 = vld [vmem:[%s1 + $0x14] sm:$0xf]
  %v39 = vld [vmem:[%s1 + $0x18] sm:$0xf]
  %v40 = vld [vmem:[%s1 + $0x1c] sm:$0xf]
  %v41 = vld [vmem:[%s1 + $0x20] sm:$0xf]
  %v42 = vld [vmem:[%s1 + $0x24] sm:$0xf]
  %v43 = vld [vmem:[%s1 + $0x28] sm:$0xf]
  %v44 = vld [vmem:[%s1 + $0x2c] sm:$0xf]
  %v45 = vld [vmem:[%s1 + $0x30] sm:$0xf]
  %v46 = vld [vmem:[%s1 + $0x34] sm:$0xf]
  %v47 = vld [vmem:[%s1 + $0x38] sm:$0xf]
  %v48 = vld [vmem:[%s1 + $0x3c] sm:$0xf]
  %v49 = vld [vmem:[%s1 + $0x40] sm:$0xf]
  %v50 = vld [vmem:[%s1 + $0x44] sm:$0xf]
  %v51 = vld [vmem:[%s1 + $0x48] sm:$0xf]
  %v52 = vld [vmem:[%s1 + $0x4c] sm:$0xf]
  %v53 = vld [vmem:[%s1 + $0x50] sm:$0xf]
  %v54 = vld [vmem:[%s1 + $0x54] sm:$0xf]
  %v55 = vld [vmem:[%s1 + $0x58] sm:$0xf]
  %v56 = vld [vmem:[%s1 + $0x5c] sm:$0xf]
  %v57 = vld [vmem:[%s1 + $0x60] sm:$0xf]
  %v58 = vld [vmem:[%s1 + $0x64] sm:$0xf]
  %v59 = vld [vmem:[%s1 + $0x68] sm:$0xf]
  %v60 = vld [vmem:[%s1 + $0x6c] sm:$0xf]
  %v61 = vld [vmem:[%s1 + $0x70] sm:$0xf]
  %v62 = vld [vmem:[%s1 + $0x74] sm:$0xf]
  %v63 = vld [vmem:[%s1 + $0x78] sm:$0xf]
  %v64 = vld [vmem:[%s1 + $0x7c] sm:$0xf]
  %v69 = vunpack.c.l.b16 %v29
  %v70 = vunpack.c.h.b16 %v29
  %v71 = vunpack.c.l.b16 %v30
  %v72 = vunpack.c.h.b16 %v30
  %v73 = vunpack.c.l.b16 %v31
  %v74 = vunpack.c.h.b16 %v31
  %v75 = vunpack.c.l.b16 %v32
  %v76 = vunpack.c.h.b16 %v32
  %v77 = vpack.c.b16 %v71, %v69
  %v78 = vpack.c.b16 %v72, %v70
  %v79 = vpack.c.b16 %v75, %v73
  %v80 = vpack.c.b16 %v76, %v74
  %v117 = vunpack.c.l.b16 %v33
  %v118 = vunpack.c.l.b16 %v34
  %v119 = vunpack.c.l.b16 %v35
  %v120 = vunpack.c.l.b16 %v36
  %v121 = vunpack.c.l.b16 %v37
  %v122 = vunpack.c.l.b16 %v38
  %v123 = vunpack.c.l.b16 %v39
  %v124 = vunpack.c.l.b16 %v40
  %v125 = vunpack.c.l.b16 %v41
  %v126 = vunpack.c.l.b16 %v42
  %v127 = vunpack.c.l.b16 %v43
  %v128 = vunpack.c.l.b16 %v44
  %v129 = vunpack.c.l.b16 %v45
  %v130 = vunpack.c.l.b16 %v46
  %v131 = vunpack.c.l.b16 %v47
  %v132 = vunpack.c.l.b16 %v48
  %v133 = vunpack.c.l.b16 %v49
  %v134 = vunpack.c.l.b16 %v50
  %v135 = vunpack.c.l.b16 %v51
  %v136 = vunpack.c.l.b16 %v52
  %v137 = vunpack.c.l.b16 %v53
  %v138 = vunpack.c.l.b16 %v54
  %v139 = vunpack.c.l.b16 %v55
  %v140 = vunpack.c.l.b16 %v56
  %v141 = vunpack.c.l.b16 %v57
  %v142 = vunpack.c.l.b16 %v58
  %v143 = vunpack.c.l.b16 %v59
  %v144 = vunpack.c.l.b16 %v60
  %v145 = vunpack.c.l.b16 %v61
  %v146 = vunpack.c.l.b16 %v62
  %v147 = vunpack.c.l.b16 %v63
  %v148 = vunpack.c.l.b16 %v64
  %v149 = vpack.c.b16 %v118, %v117
  %v150 = vpack.c.b16 %v120, %v119
  %v151 = vpack.c.b16 %v122, %v121
  %v152 = vpack.c.b16 %v124, %v123
  %v153 = vpack.c.b16 %v126, %v125
  %v154 = vpack.c.b16 %v128, %v127
  %v155 = vpack.c.b16 %v130, %v129
  %v156 = vpack.c.b16 %v132, %v131
  %v157 = vpack.c.b16 %v134, %v133
  %v158 = vpack.c.b16 %v136, %v135
  %v159 = vpack.c.b16 %v138, %v137
  %v160 = vpack.c.b16 %v140, %v139
  %v161 = vpack.c.b16 %v142, %v141
  %v162 = vpack.c.b16 %v144, %v143
  %v163 = vpack.c.b16 %v146, %v145
  %v164 = vpack.c.b16 %v148, %v147
  %181 = vmatprep.subr.bf16.mxu0 0
  %182 = vmatpush1.bf16.msra.mxu0 %v149
  %183 = vmatprep.subr.bf16.mxu0 0
  %184 = vmatpush1.bf16.msra.mxu0 %v150
  %185 = vmatprep.subr.bf16.mxu0 0
  %186 = vmatpush1.bf16.msra.mxu0 %v151
  %187 = vmatprep.subr.bf16.mxu0 0
  %188 = vmatpush1.bf16.msra.mxu0 %v152
  %189 = vmatprep.subr.bf16.mxu0 0
  %190 = vmatpush1.bf16.msra.mxu0 %v153
  %191 = vmatprep.subr.bf16.mxu0 0
  %192 = vmatpush1.bf16.msra.mxu0 %v154
  %193 = vmatprep.subr.bf16.mxu0 0
  %194 = vmatpush1.bf16.msra.mxu0 %v155
  %195 = vmatprep.subr.bf16.mxu0 0
  %196 = vmatpush1.bf16.msra.mxu0 %v156
  %197 = vmatprep.subr.bf16.mxu0 0
  %198 = vmatpush1.bf16.msra.mxu0 %v157
  %199 = vmatprep.subr.bf16.mxu0 0
  %200 = vmatpush1.bf16.msra.mxu0 %v158
  %201 = vmatprep.subr.bf16.mxu0 0
  %202 = vmatpush1.bf16.msra.mxu0 %v159
  %203 = vmatprep.subr.bf16.mxu0 0
  %204 = vmatpush1.bf16.msra.mxu0 %v160
  %205 = vmatprep.subr.bf16.mxu0 0
  %206 = vmatpush1.bf16.msra.mxu0 %v161
  %207 = vmatprep.subr.bf16.mxu0 0
  %208 = vmatpush1.bf16.msra.mxu0 %v162
  %209 = vmatprep.subr.bf16.mxu0 0
  %210 = vmatpush1.bf16.msra.mxu0 %v163
  %211 = vmatprep.subr.bf16.mxu0 0
  %212 = vmatpush1.bf16.msra.mxu0 %v164
  %213 = vmatprep.mubr.bf16.mxu0 %v78
  %214 = vmatmul.mubr.bf16.gmra.mrb[0].mxu0 %v77
  %v215 = vpop.f32.mrb[0].mxu0
  %v216 = vadd.f32 0.0, %v215
  %v217 = vpop.f32.mrb[0].mxu0
  %v218 = vpop.f32.mrb[0].mxu0
  %v219 = vadd.f32 0.0, %v218
  %v220 = vpop.f32.mrb[0].mxu0
  %221 = vmatprep.mubr.bf16.mxu0 %v80
  %222 = vmatmul.mubr.bf16.gmra.mrb[0].mxu0 %v79
  %v223 = vpop.f32.mrb[0].mxu0
  %v224 = vadd.f32 0.0, %v223
  %v225 = vpop.f32.mrb[0].mxu0
  %v226 = vpop.f32.mrb[0].mxu0
  %v227 = vadd.f32 0.0, %v226
  %v228 = vpop.f32.mrb[0].mxu0
  %229 = vdwg.mxu0
  %v230 = vadd.f32 %v25, %v216
  %v231 = vadd.f32 %v26, %v219
  %v232 = vadd.f32 %v27, %v224
  %v233 = vadd.f32 %v28, %v227
  %234 = vst [vmem:[#allocation2] sm:$0xff] %v230
  %235 = vst [vmem:[#allocation2 + $0x8] sm:$0xff] %v231
  %236 = vst [vmem:[#allocation2 + $0x10] sm:$0xff] %v232
  %237 = vst [vmem:[#allocation2 + $0x18] sm:$0xff] %v233
  // Predicated region
  $region18: #{conv_d_forward.9} parent=0 // pred_check
    %p238 = pneg %p17
  $region19: #{conv_d_forward.9} parent=0 // pred_check_branch
    %240 = sbr.rel (%p238) target = $region21
  $region20: #{conv_d_forward.9} parent=0 // pred_region
    %v241 = vld [vmem:[#allocation2] sm:$0xff]
    %v242 = vld [vmem:[#allocation2 + $0x8] sm:$0xff]
    %v243 = vld [vmem:[#allocation2 + $0x10] sm:$0xff]
    %v244 = vld [vmem:[#allocation2 + $0x18] sm:$0xff]
    %v245 = vld [vmem:[%s2] sm:$0x1]
    %v247 = vlaneseq
    %v248 = vshrl.u32 %v247, 7
    %v249 = vsub.s32 0, %v248
    %v250 = vrot.slane %v245, %v249
    %v252 = vadd.f32 %v241, %v250
    %v253 = vadd.f32 %v242, %v250
    %v254 = vadd.f32 %v243, %v250
    %v255 = vadd.f32 %v244, %v250
    %v256 = vpack.c.bf16 %v253, %v252
    %v257 = vpack.c.bf16 %v255, %v254
    %v260 = vunpack.c.l.b16 %v256
    %v261 = vunpack.c.h.b16 %v256
    %v262 = vunpack.c.l.b16 %v257
    %v263 = vunpack.c.h.b16 %v257
    %v264 = vpack.c.b16 %v260, %v260
    %v265 = vpack.c.b16 %v261, %v261
    %v266 = vpack.c.b16 %v262, %v262
    %v267 = vpack.c.b16 %v263, %v263
    %272 = vst [vmem:[%s3] sm:$0xf] %v264
    %273 = vst [vmem:[%s3 + $0x4] sm:$0xf] %v265
    %274 = vst [vmem:[%s3 + $0x8] sm:$0xf] %v266
    %275 = vst [vmem:[%s3 + $0xc] sm:$0xf] %v267
    %v276 = vlaneseq
    %v277 = vshrl.u32 %v276, 7
    %v278 = vadd.s32 %v277, 8
    %v279 = vadd.s32 %v277, 16
    %v280 = vadd.s32 %v277, 24
    %s281 = smul.u32 0, 32
    %v282 = vstv %s281
    %v283 = vadd.s32 %v277, %v282
    %v284 = vadd.s32 %v278, %v282
    %v285 = vadd.s32 %v279, %v282
    %v286 = vadd.s32 %v280, %v282
    %vm287 = vcmp.lt.s32.totalorder %v283, 32
    %vm288 = vcmp.lt.s32.totalorder %v284, 32
    %vm289 = vcmp.lt.s32.totalorder %v285, 32
    %vm290 = vcmp.lt.s32.totalorder %v286, 32
    %v291 = vsel %vm287, 1, 0
    %v292 = vsel %vm288, 1, 0
    %v293 = vsel %vm289, 1, 0
    %v294 = vsel %vm290, 1, 0
    %v295 = vcvt.s32.f32 %v291
    %v296 = vcvt.s32.f32 %v292
    %v297 = vcvt.s32.f32 %v293
    %v298 = vcvt.s32.f32 %v294
    %v299 = vmul.f32 %v252, %v295
    %v300 = vmul.f32 %v253, %v296
    %v301 = vmul.f32 %v254, %v297
    %v302 = vmul.f32 %v255, %v298
    %v303 = vadd.f32 %v299, %v300
    %v304 = vadd.f32 %v303, %v301
    %v305 = vadd.f32 %v304, %v302
    %v306 = vrot.slane %v305, 4
    %v307 = vadd.f32 %v305, %v306
    %v308 = vrot.slane %v307, 2
    %v309 = vadd.f32 %v307, %v308
    %v310 = vrot.slane %v309, 1
    %v311 = vadd.f32 %v309, %v310
    %312 = vst [vmem:[%s4] sm:$0x1] %v311
    %v313 = vmul.f32 %v299, %v299
    %v314 = vmul.f32 %v300, %v300
    %v315 = vmul.f32 %v301, %v301
    %v316 = vmul.f32 %v302, %v302
    %v317 = vadd.f32 %v313, %v314
    %v318 = vadd.f32 %v317, %v315
    %v319 = vadd.f32 %v318, %v316
    %v320 = vrot.slane %v319, 4
    %v321 = vadd.f32 %v319, %v320
    %v322 = vrot.slane %v321, 2
    %v323 = vadd.f32 %v321, %v322
    %v324 = vrot.slane %v323, 1
    %v325 = vadd.f32 %v323, %v324
    %326 = vst [vmem:[%s4 + $0x1] sm:$0x1] %v325
  $region21: #{conv_d_forward.9} parent=0 // pred_fallthru
    _
  // Predicated region
  $region22: #{conv_d_forward.9} parent=0 // pred_check
    _
  $region23: #{conv_d_forward.9} parent=0 // pred_check_branch
    %328 = sbr.rel (0) target = $region25
  $region24: #{conv_d_forward.9} parent=0 // pred_region
    _
  $region25: #{conv_d_forward.9} parent=0 // pred_fallthru
    _
  // Predicated region
  $region26: #{conv_d_forward.9} parent=0 // pred_check
    _
  $region27: #{conv_d_forward.9} parent=0 // pred_check_branch
    %330 = sbr.rel (0) target = $region29
  $region28: #{conv_d_forward.9} parent=0 // pred_region
    _
  $region29: #{conv_d_forward.9} parent=0 // pred_fallthru
    _
  // Predicated region
  $region30: #{conv_d_forward.9} parent=0 // pred_check
    _
  $region31: #{conv_d_forward.9} parent=0 // pred_check_branch
    %332 = sbr.rel (0) target = $region33
  $region32: #{conv_d_forward.9} parent=0 // pred_region
    _
  $region33: #{conv_d_forward.9} parent=0 // pred_fallthru
    _
  // Predicated region
  $region34: #{conv_d_forward.9} parent=0 // pred_check
    _
  $region35: #{conv_d_forward.9} parent=0 // pred_check_branch
    %334 = sbr.rel (0) target = $region37
  $region36: #{conv_d_forward.9} parent=0 // pred_region
    _
  $region37: #{conv_d_forward.9} parent=0 // pred_fallthru
    _

// kernel: conv_d_forward.11
$region0: #{conv_d_forward.11}
  #allocation0 [shape = 'u32[]', space=smem, size = 0x4, offset = 0x4, fixed_abs, tag = 'smem constant byte address 0x4 - core index']
  #allocation1 [shape = 'u32[144,128]{1,0:T(1,128)}', space=vmem, size = 0x12000, scoped, tag = 'internal scratch']
  #allocation2 [shape = 'f32[8,128]{1,0:T(8,128)}', space=vmem, size = 0x1000, scoped, tag = 'scratch operand']
  %s0 = inlined_call_operand.vmem [shape: bf16[8,512], index: 0, kind: input, shape index: {}]
  %s1 = inlined_call_operand.vmem [shape: bf16[512,128], index: 1, kind: input, shape index: {}]
  %s2 = inlined_call_operand.vmem [shape: f32[1,128], index: 2, kind: input, shape index: {}]
  %s3 = inlined_call_operand.vmem [shape: bf16[8,128], index: 3, kind: output, shape index: {0}]
  %s4 = inlined_call_operand.hbm [shape: f32[1,2,128], index: 4, kind: output, shape index: {1}]
  %5 = xla_tuple %s3, %s4
  %s6 = sld [smem:[#allocation0]]
  $region38: #{conv_d_forward.11} parent=0
    _
  %s8 = ssub.s32 1, %s6
  %s9 = scalar_select 0, %s8, %s6
  $region1: #{conv_d_forward.11} parent=0
    #allocation3 [shape = 'u8[1024]{0}', space=vmem, size = 0x400, scoped, tag = 'output window, operand 1, single buffered']
    #allocation4 [shape = 's32[1]{0}', space=sflag, size = 0x4, scoped, tag = 'scoped memory for conv_d_forward.11']
    %10 = vsyncpa [#allocation4], 0
    // Predicated region
    $region2: #{conv_d_forward.11} parent=1 // pred_check
      _
    $region3: #{conv_d_forward.11} parent=1 // pred_check_branch
      %12 = sbr.rel (0) target = $region5
    $region4: #{conv_d_forward.11} parent=1 // pred_region
      _
    $region5: #{conv_d_forward.11} parent=1 // pred_fallthru
      _
    // Predicated region
    $region6: #{conv_d_forward.11} parent=1 // pred_check
      _
    $region7: #{conv_d_forward.11} parent=1 // pred_check_branch
      %14 = sbr.rel (0) target = $region9
    $region8: #{conv_d_forward.11} parent=1 // pred_region
      _
    $region9: #{conv_d_forward.11} parent=1 // pred_fallthru
      _
    // Predicated region
    $region10: #{conv_d_forward.11} parent=1 // pred_check
      _
    $region11: #{conv_d_forward.11} parent=1 // pred_check_branch
      %16 = sbr.rel (0) target = $region13
    $region12: #{conv_d_forward.11} parent=1 // pred_region
      _
    $region13: #{conv_d_forward.11} parent=1 // pred_fallthru
      _
    %p18 = scmp.eq.s32.totalorder 0, 0
    // Predicated region
    $region14: #{conv_d_forward.11} parent=1 // pred_check
      %p19 = pneg %p18
    $region15: #{conv_d_forward.11} parent=1 // pred_check_branch
      %21 = sbr.rel (%p19) target = $region17
    $region16: #{conv_d_forward.11} parent=1 // pred_region
      %22 = vst [vmem:[#allocation2] sm:$0xff] 0.0
    $region17: #{conv_d_forward.11} parent=1 // pred_fallthru
      _
    %v23 = vld [vmem:[#allocation2] sm:$0xff]
    %v24 = vld [vmem:[%s0] sm:$0xff]
    %v25 = vld [vmem:[%s0 + $0x8] sm:$0xff]
    %v26 = vld [vmem:[%s1] sm:$0xf]
    %v27 = vld [vmem:[%s1 + $0x4] sm:$0xf]
    %v28 = vld [vmem:[%s1 + $0x8] sm:$0xf]
    %v29 = vld [vmem:[%s1 + $0xc] sm:$0xf]
    %v30 = vld [vmem:[%s1 + $0x10] sm:$0xf]
    %v31 = vld [vmem:[%s1 + $0x14] sm:$0xf]
    %v32 = vld [vmem:[%s1 + $0x18] sm:$0xf]
    %v33 = vld [vmem:[%s1 + $0x1c] sm:$0xf]
    %v34 = vld [vmem:[%s1 + $0x20] sm:$0xf]
    %v35 = vld [vmem:[%s1 + $0x24] sm:$0xf]
    %v36 = vld [vmem:[%s1 + $0x28] sm:$0xf]
    %v37 = vld [vmem:[%s1 + $0x2c] sm:$0xf]
    %v38 = vld [vmem:[%s1 + $0x30] sm:$0xf]
    %v39 = vld [vmem:[%s1 + $0x34] sm:$0xf]
    %v40 = vld [vmem:[%s1 + $0x38] sm:$0xf]
    %v41 = vld [vmem:[%s1 + $0x3c] sm:$0xf]
    %v42 = vld [vmem:[%s1 + $0x40] sm:$0xf]
    %v43 = vld [vmem:[%s1 + $0x44] sm:$0xf]
    %v44 = vld [vmem:[%s1 + $0x48] sm:$0xf]
    %v45 = vld [vmem:[%s1 + $0x4c] sm:$0xf]
    %v46 = vld [vmem:[%s1 + $0x50] sm:$0xf]
    %v47 = vld [vmem:[%s1 + $0x54] sm:$0xf]
    %v48 = vld [vmem:[%s1 + $0x58] sm:$0xf]
    %v49 = vld [vmem:[%s1 + $0x5c] sm:$0xf]
    %v50 = vld [vmem:[%s1 + $0x60] sm:$0xf]
    %v51 = vld [vmem:[%s1 + $0x64] sm:$0xf]
    %v52 = vld [vmem:[%s1 + $0x68] sm:$0xf]
    %v53 = vld [vmem:[%s1 + $0x6c] sm:$0xf]
    %v54 = vld [vmem:[%s1 + $0x70] sm:$0xf]
    %v55 = vld [vmem:[%s1 + $0x74] sm:$0xf]
    %v56 = vld [vmem:[%s1 + $0x78] sm:$0xf]
    %v57 = vld [vmem:[%s1 + $0x7c] sm:$0xf]
    %v58 = vld [vmem:[%s1 + $0x80] sm:$0xf]
    %v59 = vld [vmem:[%s1 + $0x84] sm:$0xf]
    %v60 = vld [vmem:[%s1 + $0x88] sm:$0xf]
    %v61 = vld [vmem:[%s1 + $0x8c] sm:$0xf]
    %v62 = vld [vmem:[%s1 + $0x90] sm:$0xf]
    %v63 = vld [vmem:[%s1 + $0x94] sm:$0xf]
    %v64 = vld [vmem:[%s1 + $0x98] sm:$0xf]
    %v65 = vld [vmem:[%s1 + $0x9c] sm:$0xf]
    %v66 = vld [vmem:[%s1 + $0xa0] sm:$0xf]
    %v67 = vld [vmem:[%s1 + $0xa4] sm:$0xf]
    %v68 = vld [vmem:[%s1 + $0xa8] sm:$0xf]
    %v69 = vld [vmem:[%s1 + $0xac] sm:$0xf]
    %v70 = vld [vmem:[%s1 + $0xb0] sm:$0xf]
    %v71 = vld [vmem:[%s1 + $0xb4] sm:$0xf]
    %v72 = vld [vmem:[%s1 + $0xb8] sm:$0xf]
    %v73 = vld [vmem:[%s1 + $0xbc] sm:$0xf]
    %v74 = vld [vmem:[%s1 + $0xc0] sm:$0xf]
    %v75 = vld [vmem:[%s1 + $0xc4] sm:$0xf]
    %v76 = vld [vmem:[%s1 + $0xc8] sm:$0xf]
    %v77 = vld [vmem:[%s1 + $0xcc] sm:$0xf]
    %v78 = vld [vmem:[%s1 + $0xd0] sm:$0xf]
    %v79 = vld [vmem:[%s1 + $0xd4] sm:$0xf]
    %v80 = vld [vmem:[%s1 + $0xd8] sm:$0xf]
    %v81 = vld [vmem:[%s1 + $0xdc] sm:$0xf]
    %v82 = vld [vmem:[%s1 + $0xe0] sm:$0xf]
    %v83 = vld [vmem:[%s1 + $0xe4] sm:$0xf]
    %v84 = vld [vmem:[%s1 + $0xe8] sm:$0xf]
    %v85 = vld [vmem:[%s1 + $0xec] sm:$0xf]
    %v86 = vld [vmem:[%s1 + $0xf0] sm:$0xf]
    %v87 = vld [vmem:[%s1 + $0xf4] sm:$0xf]
    %v88 = vld [vmem:[%s1 + $0xf8] sm:$0xf]
    %v89 = vld [vmem:[%s1 + $0xfc] sm:$0xf]
    %v92 = vunpack.c.l.b16 %v24
    %v93 = vunpack.c.h.b16 %v24
    %v94 = vunpack.c.l.b16 %v25
    %v95 = vunpack.c.h.b16 %v25
    %v96 = vpack.c.b16 %v92, %v92
    %v97 = vpack.c.b16 %v93, %v93
    %v98 = vpack.c.b16 %v94, %v94
    %v99 = vpack.c.b16 %v95, %v95
    %v168 = vunpack.c.l.b16 %v26
    %v169 = vunpack.c.l.b16 %v27
    %v170 = vunpack.c.l.b16 %v28
    %v171 = vunpack.c.l.b16 %v29
    %v172 = vunpack.c.l.b16 %v30
    %v173 = vunpack.c.l.b16 %v31
    %v174 = vunpack.c.l.b16 %v32
    %v175 = vunpack.c.l.b16 %v33
    %v176 = vunpack.c.l.b16 %v34
    %v177 = vunpack.c.l.b16 %v35
    %v178 = vunpack.c.l.b16 %v36
    %v179 = vunpack.c.l.b16 %v37
    %v180 = vunpack.c.l.b16 %v38
    %v181 = vunpack.c.l.b16 %v39
    %v182 = vunpack.c.l.b16 %v40
    %v183 = vunpack.c.l.b16 %v41
    %v184 = vunpack.c.l.b16 %v42
    %v185 = vunpack.c.l.b16 %v43
    %v186 = vunpack.c.l.b16 %v44
    %v187 = vunpack.c.l.b16 %v45
    %v188 = vunpack.c.l.b16 %v46
    %v189 = vunpack.c.l.b16 %v47
    %v190 = vunpack.c.l.b16 %v48
    %v191 = vunpack.c.l.b16 %v49
    %v192 = vunpack.c.l.b16 %v50
    %v193 = vunpack.c.l.b16 %v51
    %v194 = vunpack.c.l.b16 %v52
    %v195 = vunpack.c.l.b16 %v53
    %v196 = vunpack.c.l.b16 %v54
    %v197 = vunpack.c.l.b16 %v55
    %v198 = vunpack.c.l.b16 %v56
    %v199 = vunpack.c.l.b16 %v57
    %v200 = vunpack.c.l.b16 %v58
    %v201 = vunpack.c.l.b16 %v59
    %v202 = vunpack.c.l.b16 %v60
    %v203 = vunpack.c.l.b16 %v61
    %v204 = vunpack.c.l.b16 %v62
    %v205 = vunpack.c.l.b16 %v63
    %v206 = vunpack.c.l.b16 %v64
    %v207 = vunpack.c.l.b16 %v65
    %v208 = vunpack.c.l.b16 %v66
    %v209 = vunpack.c.l.b16 %v67
    %v210 = vunpack.c.l.b16 %v68
    %v211 = vunpack.c.l.b16 %v69
    %v212 = vunpack.c.l.b16 %v70
    %v213 = vunpack.c.l.b16 %v71
    %v214 = vunpack.c.l.b16 %v72
    %v215 = vunpack.c.l.b16 %v73
    %v216 = vunpack.c.l.b16 %v74
    %v217 = vunpack.c.l.b16 %v75
    %v218 = vunpack.c.l.b16 %v76
    %v219 = vunpack.c.l.b16 %v77
    %v220 = vunpack.c.l.b16 %v78
    %v221 = vunpack.c.l.b16 %v79
    %v222 = vunpack.c.l.b16 %v80
    %v223 = vunpack.c.l.b16 %v81
    %v224 = vunpack.c.l.b16 %v82
    %v225 = vunpack.c.l.b16 %v83
    %v226 = vunpack.c.l.b16 %v84
    %v227 = vunpack.c.l.b16 %v85
    %v228 = vunpack.c.l.b16 %v86
    %v229 = vunpack.c.l.b16 %v87
    %v230 = vunpack.c.l.b16 %v88
    %v231 = vunpack.c.l.b16 %v89
    %v232 = vpack.c.b16 %v169, %v168
    %v233 = vpack.c.b16 %v171, %v170
    %v234 = vpack.c.b16 %v173, %v172
    %v235 = vpack.c.b16 %v175, %v174
    %v236 = vpack.c.b16 %v177, %v176
    %v237 = vpack.c.b16 %v179, %v178
    %v238 = vpack.c.b16 %v181, %v180
    %v239 = vpack.c.b16 %v183, %v182
    %v240 = vpack.c.b16 %v185, %v184
    %v241 = vpack.c.b16 %v187, %v186
    %v242 = vpack.c.b16 %v189, %v188
    %v243 = vpack.c.b16 %v191, %v190
    %v244 = vpack.c.b16 %v193, %v192
    %v245 = vpack.c.b16 %v195, %v194
    %v246 = vpack.c.b16 %v197, %v196
    %v247 = vpack.c.b16 %v199, %v198
    %v248 = vpack.c.b16 %v201, %v200
    %v249 = vpack.c.b16 %v203, %v202
    %v250 = vpack.c.b16 %v205, %v204
    %v251 = vpack.c.b16 %v207, %v206
    %v252 = vpack.c.b16 %v209, %v208
    %v253 = vpack.c.b16 %v211, %v210
    %v254 = vpack.c.b16 %v213, %v212
    %v255 = vpack.c.b16 %v215, %v214
    %v256 = vpack.c.b16 %v217, %v216
    %v257 = vpack.c.b16 %v219, %v218
    %v258 = vpack.c.b16 %v221, %v220
    %v259 = vpack.c.b16 %v223, %v222
    %v260 = vpack.c.b16 %v225, %v224
    %v261 = vpack.c.b16 %v227, %v226
    %v262 = vpack.c.b16 %v229, %v228
    %v263 = vpack.c.b16 %v231, %v230
    %296 = vmatprep.subr.bf16.mxu0 0
    %297 = vmatpush1.bf16.msra.mxu0 %v232
    %298 = vmatprep.subr.bf16.mxu0 0
    %299 = vmatpush1.bf16.msra.mxu0 %v233
    %300 = vmatprep.subr.bf16.mxu0 0
    %301 = vmatpush1.bf16.msra.mxu0 %v234
    %302 = vmatprep.subr.bf16.mxu0 0
    %303 = vmatpush1.bf16.msra.mxu0 %v235
    %304 = vmatprep.subr.bf16.mxu0 0
    %305 = vmatpush1.bf16.msra.mxu0 %v236
    %306 = vmatprep.subr.bf16.mxu0 0
    %307 = vmatpush1.bf16.msra.mxu0 %v237
    %308 = vmatprep.subr.bf16.mxu0 0
    %309 = vmatpush1.bf16.msra.mxu0 %v238
    %310 = vmatprep.subr.bf16.mxu0 0
    %311 = vmatpush1.bf16.msra.mxu0 %v239
    %312 = vmatprep.subr.bf16.mxu0 0
    %313 = vmatpush1.bf16.msra.mxu0 %v240
    %314 = vmatprep.subr.bf16.mxu0 0
    %315 = vmatpush1.bf16.msra.mxu0 %v241
    %316 = vmatprep.subr.bf16.mxu0 0
    %317 = vmatpush1.bf16.msra.mxu0 %v242
    %318 = vmatprep.subr.bf16.mxu0 0
    %319 = vmatpush1.bf16.msra.mxu0 %v243
    %320 = vmatprep.subr.bf16.mxu0 0
    %321 = vmatpush1.bf16.msra.mxu0 %v244
    %322 = vmatprep.subr.bf16.mxu0 0
    %323 = vmatpush1.bf16.msra.mxu0 %v245
    %324 = vmatprep.subr.bf16.mxu0 0
    %325 = vmatpush1.bf16.msra.mxu0 %v246
    %326 = vmatprep.subr.bf16.mxu0 0
    %327 = vmatpush1.bf16.msra.mxu0 %v247
    %328 = vmatprep.mubr.bf16.mxu0 %v97
    %329 = vmatmul.mubr.bf16.gmra.mrb[0].mxu0 %v96
    %v330 = vpop.f32.mrb[0].mxu0
    %v331 = vadd.f32 0.0, %v330
    %v332 = vpop.f32.mrb[0].mxu0
    %v333 = vpop.f32.mrb[0].mxu0
    %v334 = vpop.f32.mrb[0].mxu0
    %335 = vdwg.mxu0
    %336 = vmatprep.subr.bf16.mxu0 0
    %337 = vmatpush1.bf16.msra.mxu0 %v248
    %338 = vmatprep.subr.bf16.mxu0 0
    %339 = vmatpush1.bf16.msra.mxu0 %v249
    %340 = vmatprep.subr.bf16.mxu0 0
    %341 = vmatpush1.bf16.msra.mxu0 %v250
    %342 = vmatprep.subr.bf16.mxu0 0
    %343 = vmatpush1.bf16.msra.mxu0 %v251
    %344 = vmatprep.subr.bf16.mxu0 0
    %345 = vmatpush1.bf16.msra.mxu0 %v252
    %346 = vmatprep.subr.bf16.mxu0 0
    %347 = vmatpush1.bf16.msra.mxu0 %v253
    %348 = vmatprep.subr.bf16.mxu0 0
    %349 = vmatpush1.bf16.msra.mxu0 %v254
    %350 = vmatprep.subr.bf16.mxu0 0
    %351 = vmatpush1.bf16.msra.mxu0 %v255
    %352 = vmatprep.subr.bf16.mxu0 0
    %353 = vmatpush1.bf16.msra.mxu0 %v256
    %354 = vmatprep.subr.bf16.mxu0 0
    %355 = vmatpush1.bf16.msra.mxu0 %v257
    %356 = vmatprep.subr.bf16.mxu0 0
    %357 = vmatpush1.bf16.msra.mxu0 %v258
    %358 = vmatprep.subr.bf16.mxu0 0
    %359 = vmatpush1.bf16.msra.mxu0 %v259
    %360 = vmatprep.subr.bf16.mxu0 0
    %361 = vmatpush1.bf16.msra.mxu0 %v260
    %362 = vmatprep.subr.bf16.mxu0 0
    %363 = vmatpush1.bf16.msra.mxu0 %v261
    %364 = vmatprep.subr.bf16.mxu0 0
    %365 = vmatpush1.bf16.msra.mxu0 %v262
    %366 = vmatprep.subr.bf16.mxu0 0
    %367 = vmatpush1.bf16.msra.mxu0 %v263
    %368 = vmatprep.mubr.bf16.mxu0 %v99
    %369 = vmatmul.mubr.bf16.gmra.mrb[0].mxu0 %v98
    %v370 = vpop.f32.mrb[0].mxu0
    %v371 = vadd.f32 %v331, %v370
    %v372 = vpop.f32.mrb[0].mxu0
    %v373 = vpop.f32.mrb[0].mxu0
    %v374 = vpop.f32.mrb[0].mxu0
    %375 = vdwg.mxu0
    %v376 = vadd.f32 %v23, %v371
    %377 = vst [vmem:[#allocation2] sm:$0xff] %v376
    // Predicated region
    $region18: #{conv_d_forward.11} parent=1 // pred_check
      %p378 = pneg %p18
    $region19: #{conv_d_forward.11} parent=1 // pred_check_branch
      %380 = sbr.rel (%p378) target = $region21
    $region20: #{conv_d_forward.11} parent=1 // pred_region
      %v381 = vld [vmem:[#allocation2] sm:$0xff]
      %v382 = vld [vmem:[%s2] sm:$0x1]
      %v384 = vlaneseq
      %v385 = vshrl.u32 %v384, 7
      %v386 = vsub.s32 0, %v385
      %v387 = vrot.slane %v382, %v386
      %v389 = vadd.f32 %v381, %v387
      %v390 = vxor.u32 %v389, 2147483648
      %v391 = vmul.f32 %v390, 1.442695
      %v392 = vpow.pop %v391
      %v393 = vadd.f32 %v392, 1.0
      %v394 = vrcp.pop %v393
      %v395 = vmul.f32 1.0, %v394
      %v396 = vpack.c.bf16 %v395, %v395
      %397 = vst [vmem:[%s3] sm:$0xf] %v396
    $region21: #{conv_d_forward.11} parent=1 // pred_fallthru
      _
    // Predicated region
    $region22: #{conv_d_forward.11} parent=1 // pred_check
      _
    $region23: #{conv_d_forward.11} parent=1 // pred_check_branch
      %399 = sbr.rel (0) target = $region25
    $region24: #{conv_d_forward.11} parent=1 // pred_region
      _
    $region25: #{conv_d_forward.11} parent=1 // pred_fallthru
      _
    // Predicated region
    $region26: #{conv_d_forward.11} parent=1 // pred_check
      _
    $region27: #{conv_d_forward.11} parent=1 // pred_check_branch
      %401 = sbr.rel (0) target = $region29
    $region28: #{conv_d_forward.11} parent=1 // pred_region
      %s403 = ssub.s32 32, 32
      %404 = vsyncadd [#allocation4], %s403
      %s406 = sshll.u32 [#allocation3], 4
      %s407 = int_to_ptr.vmem [resolvable:$true] %s406
      %409 = dma.vmem_to_hbm [thread:$0]  %s407, 32, %s4, [#allocation4]
    $region29: #{conv_d_forward.11} parent=1 // pred_fallthru
      _
    // Predicated region
    $region30: #{conv_d_forward.11} parent=1 // pred_check
      _
    $region31: #{conv_d_forward.11} parent=1 // pred_check_branch
      %411 = sbr.rel (0) target = $region33
    $region32: #{conv_d_forward.11} parent=1 // pred_region
      _
    $region33: #{conv_d_forward.11} parent=1 // pred_fallthru
      _
    // Predicated region
    $region34: #{conv_d_forward.11} parent=1 // pred_check
      _
    $region35: #{conv_d_forward.11} parent=1 // pred_check_branch
      %413 = sbr.rel (0) target = $region37
    $region36: #{conv_d_forward.11} parent=1 // pred_region
      %414 = dma.done [#allocation4], 32
    $region37: #{conv_d_forward.11} parent=1 // pred_fallthru
      _
    %415 = vsyncpa [#allocation4], 1

</llo_original>
